<compile_context>
chip_gen: v7x
topology: tpu7x:2x2x1
jax: 0.10.0
libtpu: 0.0.40
codegen_flags: <defaults>
</compile_context>

<pallas_src>
import functools

import jax
import jax.numpy as jnp
from jax.experimental import pallas as pl
from jax.experimental.pallas import tpu as pltpu

LANE = 128   # channel padding multiple (vreg / MXU lane width)


def _round_up(x, m):
    return (x + m - 1) // m * m


# ----------------------------------------------------------------------------
# Pallas kernel: one (batch-block, row-tile) step of the bottleneck.
# ----------------------------------------------------------------------------
def _bottleneck_kernel(x_ref, xh_ref, w1_ref, b1_ref, w2_ref, b2_ref, o_ref,
                       col_ref, *, use_add):
    # x_ref  : (Nb, TH, W, Cinp)      input row tile (NHWC, lane-padded C)
    # xh_ref : (Nb, 1, 2, W, Cinp)    halo rows [row above tile, row below]
    #                                 (zeros when outside the image)
    # w1_ref : (Cinp, Chp)            BN-folded 1x1 conv weight
    # b1_ref : (1, Chp)   f32         BN-folded 1x1 conv bias
    # w2_ref : (3, 3*Chp, Coutp)      BN-folded 3x3 conv weight, dy-major;
    #                                 K packs the 3 dx taps (im2col along W)
    # b2_ref : (1, Coutp) f32
    # o_ref  : (Nb, TH, W, Coutp)
    # col_ref: (Nb, TH+2, W, 3*Chp)   VMEM scratch: im2col hidden map
    Nb, TH, W, Cinp = x_ref.shape
    Chp = w1_ref.shape[1]
    Coutp = o_ref.shape[3]
    cdt = col_ref.dtype

    x = x_ref[...]                                        # (Nb, TH, W, Cinp)
    xh = xh_ref[...].reshape(Nb, 2, W, Cinp)
    # [top halo row | tile rows | bottom halo row]  -> conv1 halo recompute
    xa = jnp.concatenate([xh[:, 0:1], x, xh[:, 1:2]], axis=1)  # (Nb,TH+2,W,Cinp)

    # --- conv1: 1x1 conv == one lane-dense matmul over fused (batch, rows, W)
    Ma = Nb * (TH + 2) * W
    h = jnp.dot(xa.reshape(Ma, Cinp), w1_ref[...],
                preferred_element_type=jnp.float32)        # (Ma, Chp) f32
    h = h + b1_ref[...]
    h = h * jax.nn.sigmoid(h)                              # SiLU in f32
    h = h.reshape(Nb, TH + 2, W, Chp)

    # --- im2col along dx: build the +-1 column shifts in-register (zero
    #     padded at the image edges) and store one lane-dense (.., 3*Chp)
    #     slab.  All scratch reads below are then fully sublane-aligned.
    zc = jnp.zeros((Nb, TH + 2, 1, Chp), jnp.float32)
    h_m1 = jnp.concatenate([zc, h[:, :, :W - 1, :]], axis=2)   # hidden[r, c-1]
    h_p1 = jnp.concatenate([h[:, :, 1:, :], zc], axis=2)       # hidden[r, c+1]
    col_ref[:, :, :, 0:Chp] = h_m1.astype(cdt)
    col_ref[:, :, :, Chp:2 * Chp] = h.astype(cdt)
    col_ref[:, :, :, 2 * Chp:3 * Chp] = h_p1.astype(cdt)

    # zero the halo rows that fall outside the image (conv2's zero padding).
    # Done per-step (not "once at step 0") because both grid axes are
    # "parallel": under megacore each core owns its own scratch copy.
    hi = pl.program_id(1)

    @pl.when(hi == 0)
    def _():
        col_ref[:, 0:1, :, :] = jnp.zeros((Nb, 1, W, 3 * Chp), cdt)

    @pl.when(hi == pl.num_programs(1) - 1)
    def _():
        col_ref[:, TH + 1:TH + 2, :, :] = jnp.zeros((Nb, 1, W, 3 * Chp), cdt)

    # --- conv2: 3x3 conv as 3 K-packed (K = 3*Chp) matmuls, vreg-resident
    #     f32 accumulator (chained adds -> MRB in-place accumulate on v7x).
    M = Nb * TH * W
    acc = jnp.dot(col_ref[:, 0:TH].reshape(M, 3 * Chp), w2_ref[0],
                  preferred_element_type=jnp.float32)
    acc = acc + jnp.dot(col_ref[:, 1:TH + 1].reshape(M, 3 * Chp), w2_ref[1],
                        preferred_element_type=jnp.float32)
    acc = acc + jnp.dot(col_ref[:, 2:TH + 2].reshape(M, 3 * Chp), w2_ref[2],
                        preferred_element_type=jnp.float32)

    y = acc + b2_ref[...]
    y = y * jax.nn.sigmoid(y)                              # SiLU in f32
    y = y.reshape(Nb, TH, W, Coutp)
    if use_add:                                            # shortcut, Cin==Cout
        y = y + x.astype(jnp.float32)
    o_ref[...] = y.astype(o_ref.dtype)


# ----------------------------------------------------------------------------
# Tile-size heuristics.
# ----------------------------------------------------------------------------
def _pick_row_tile(H, W, max_m=512):
    """Largest row tile TH | H whose conv2 M dim (TH*W) stays vreg-friendly,
    preferring >=2 row tiles so there is pipelining / dual-TC work at N=1."""
    cands = [t for t in range(1, H + 1) if H % t == 0]
    good = [t for t in cands if t * W <= max_m and H // t >= 2]
    if good:
        return max(good)
    ok = [t for t in cands if t * W <= max_m]
    return max(ok) if ok else 1


def _pick_batch_block(N, row_m, max_m=512):
    """Largest batch block keeping the fused M dim (Nb*TH*W) modest."""
    cands = [b for b in range(1, N + 1) if N % b == 0]
    ok = [b for b in cands if b * row_m <= max_m] or [1]
    return max(ok)


# ----------------------------------------------------------------------------
# Wrapper.
# ----------------------------------------------------------------------------
def bottleneck_yolo_pallas(x_nhwc, w1, b1, w2, b2, *, use_add=True,
                           compute_dtype=jnp.bfloat16, out_dtype=jnp.float32):
    """x_nhwc: (N, H, W, Cin) f32.  Weights are already BN-folded.

    Returns (N, H, W, Cout) in `out_dtype`.
    """
    N, H, W, Cin = x_nhwc.shape
    Ch = w1.shape[1]
    Cout = w2.shape[3]
    assert W % 8 == 0, "width is the sublane dim of every tile; keep 8-aligned"
    if use_add:
        assert Cin == Cout, "residual add requires Cin == Cout"

    # pad channels to the 128-lane width so matmuls and stores are lane-dense
    Cinp = _round_up(Cin, LANE)
    Chp = _round_up(Ch, LANE)
    Coutp = _round_up(Cout, LANE)

    xp = jnp.pad(x_nhwc, ((0, 0), (0, 0), (0, 0), (0, Cinp - Cin)))
    xp = xp.astype(compute_dtype)
    w1p = jnp.pad(w1, ((0, Cinp - Cin), (0, Chp - Ch))).astype(compute_dtype)
    b1p = jnp.pad(b1.reshape(1, -1),
                  ((0, 0), (0, Chp - Ch))).astype(jnp.float32)
    # (3,3,Ch,Cout) -> dy-major (3, 3*Chp, Coutp): K packs the 3 dx taps so
    # conv2 runs as 3 deep matmuls that fill the 256-deep v6e/v7x MXU.
    w2p = jnp.pad(w2, ((0, 0), (0, 0), (0, Chp - Ch), (0, Coutp - Cout)))
    w2p = w2p.reshape(3, 3 * Chp, Coutp).astype(compute_dtype)
    b2p = jnp.pad(b2.reshape(1, -1),
                  ((0, 0), (0, Coutp - Cout))).astype(jnp.float32)

    TH = _pick_row_tile(H, W)
    Nb = _pick_batch_block(N, TH * W)
    nH = H // TH

    # Halo rows for conv1 recompute: x_halo[n, h, 0] = row above tile h,
    # x_halo[n, h, 1] = row below tile h (zeros outside the image; the kernel
    # zeroes the corresponding hidden rows so conv2 sees true zero padding).
    zrow = jnp.zeros((N, 1, W, Cinp), compute_dtype)
    if nH > 1:
        top = jnp.concatenate([zrow, xp[:, TH - 1:H - 1:TH]], axis=1)
        bot = jnp.concatenate([xp[:, TH:H:TH], zrow], axis=1)
    else:
        top, bot = zrow, zrow
    x_halo = jnp.stack([top, bot], axis=2)            # (N, nH, 2, W, Cinp)

    # --- VMEM budget (double-buffered blocks + weights + scratch + headroom
    #     for the in-kernel f32 hidden map / shifted copies / accumulator) ---
    isz = jnp.dtype(compute_dtype).itemsize
    osz = jnp.dtype(out_dtype).itemsize
    blk_bytes = (Nb * TH * W * Cinp * isz
                 + Nb * 2 * W * Cinp * isz
                 + Nb * TH * W * Coutp * osz)
    wt_bytes = (Cinp * Chp + 9 * Chp * Coutp) * isz + (Chp + Coutp) * 4
    scr_bytes = Nb * (TH + 2) * W * 3 * Chp * isz
    vmem_limit = int(min(48 << 20,                      # conservative for v7x
                         max(2 * (2 * blk_bytes + 2 * wt_bytes + scr_bytes)
                             + (8 << 20), 16 << 20)))

    flops = 2 * N * H * W * (Cinp * Chp + 9 * Chp * Coutp)
    transcendentals = N * H * W * (Chp + Coutp)         # one exp per SiLU elem
    bytes_accessed = (xp.size * isz + x_halo.size * isz
                      + N * H * W * Coutp * osz
                      + w1p.size * isz + w2p.size * isz + (Chp + Coutp) * 4)

    kernel = functools.partial(_bottleneck_kernel, use_add=use_add)

    out = pl.pallas_call(
        kernel,
        out_shape=jax.ShapeDtypeStruct((N, H, W, Coutp), out_dtype),
        grid_spec=pltpu.PrefetchScalarGridSpec(
            num_scalar_prefetch=0,
            grid=(N // Nb, nH),
            in_specs=[
                pl.BlockSpec((Nb, TH, W, Cinp), lambda n, h: (n, h, 0, 0)),
                pl.BlockSpec((Nb, 1, 2, W, Cinp), lambda n, h: (n, h, 0, 0, 0)),
                pl.BlockSpec((Cinp, Chp), lambda n, h: (0, 0)),
                pl.BlockSpec((1, Chp), lambda n, h: (0, 0)),
                pl.BlockSpec((3, 3 * Chp, Coutp), lambda n, h: (0, 0, 0)),
                pl.BlockSpec((1, Coutp), lambda n, h: (0, 0)),
            ],
            out_specs=pl.BlockSpec((Nb, TH, W, Coutp), lambda n, h: (n, h, 0, 0)),
            scratch_shapes=[
                pltpu.VMEM((Nb, TH + 2, W, 3 * Chp), compute_dtype),
            ],
        ),
        compiler_params=pltpu.CompilerParams(
            dimension_semantics=("parallel", "parallel"),
            vmem_limit_bytes=vmem_limit,
        ),
        cost_estimate=pl.CostEstimate(
            flops=int(flops),
            transcendentals=int(transcendentals),
            bytes_accessed=int(bytes_accessed),
        ),
    )(xp, x_halo, w1p, b1p, w2p, b2p)

    if Coutp != Cout:
        # TODO(synk): for production keep channels 128-aligned downstream and
        # skip this slice (it is a separate HBM read/write pass in XLA).
        out = out[..., :Cout]
    return out


# ----------------------------------------------------------------------------
# Parameter construction (deterministic, synthetic) + BN folding.
# ----------------------------------------------------------------------------
def _fold_bn(w, gamma, beta, mean, var, eps=1e-5):
    """Fold eval-mode BatchNorm into a conv weight (out-channel last) + bias."""
    scale = gamma / jnp.sqrt(var + eps)                 # (Cout,)
    w_f = w * scale                                     # broadcast on last axis
    b_f = beta - mean * scale
    return w_f, b_f


def make_params(key, in_channels, out_channels, expansion=0.5):
    hidden = int(out_channels * expansion)
    k = jax.random.split(key, 10)
    # conv weights (channels-last layout: (Cin, Cout) / (kh, kw, Cin, Cout))
    w1 = 0.2 * jax.random.normal(k[0], (in_channels, hidden), jnp.float32)
    w2 = 0.2 * jax.random.normal(k[1], (3, 3, hidden, out_channels), jnp.float32)
    # BN params (eval-mode running stats)
    g1 = 1.0 + 0.1 * jax.random.normal(k[2], (hidden,), jnp.float32)
    b1 = 0.1 * jax.random.normal(k[3], (hidden,), jnp.float32)
    m1 = 0.05 * jax.random.normal(k[4], (hidden,), jnp.float32)
    v1 = 1.0 + 0.1 * jax.random.uniform(k[5], (hidden,), jnp.float32)
    g2 = 1.0 + 0.1 * jax.random.normal(k[6], (out_channels,), jnp.float32)
    b2 = 0.1 * jax.random.normal(k[7], (out_channels,), jnp.float32)
    m2 = 0.05 * jax.random.normal(k[8], (out_channels,), jnp.float32)
    v2 = 1.0 + 0.1 * jax.random.uniform(k[9], (out_channels,), jnp.float32)

    w1_f, b1_f = _fold_bn(w1, g1, b1, m1, v1)
    w2_f, b2_f = _fold_bn(w2, g2, b2, m2, v2)
    return w1_f, b1_f, w2_f, b2_f


# ----------------------------------------------------------------------------
# Pure-JAX reference (exact f32 module math, no Pallas) for correctness.
# ----------------------------------------------------------------------------
def reference_nhwc(x, w1, b1, w2, b2, use_add=True):
    N, H, W, _ = x.shape
    h = jnp.einsum('nhwc,cd->nhwd', x, w1) + b1.reshape(1, 1, 1, -1)
    h = h * jax.nn.sigmoid(h)
    hp = jnp.pad(h, ((0, 0), (1, 1), (1, 1), (0, 0)))
    y = jnp.zeros((N, H, W, w2.shape[-1]), jnp.float32)
    for dy in range(3):
        for dx in range(3):
            y = y + jnp.einsum('nhwc,cd->nhwd',
                               hp[:, dy:dy + H, dx:dx + W, :], w2[dy, dx])
    y = y + b2.reshape(1, 1, 1, -1)
    y = y * jax.nn.sigmoid(y)
    return y + x if use_add else y


if __name__ == "__main__":
    # Small shapes consistent with Bottleneck_YOLO(in=4, out=4, expansion=0.5)
    N, C, Hs, Ws = 2, 4, 16, 16
    key = jax.random.PRNGKey(0)
    kx, kp = jax.random.split(key)

    # PyTorch-style NCHW input, then move to kernel layout NHWC.
    x_nchw = jax.random.normal(kx, (N, C, Hs, Ws), jnp.float32)
    x_nhwc = jnp.transpose(x_nchw, (0, 2, 3, 1))

    w1, b1, w2, b2 = make_params(kp, in_channels=C, out_channels=C)
    ref_nchw = jnp.transpose(reference_nhwc(x_nhwc, w1, b1, w2, b2),
                             (0, 3, 1, 2))

    # strict check with the f32 compute path
    out32 = bottleneck_yolo_pallas(x_nhwc, w1, b1, w2, b2,
                                   compute_dtype=jnp.float32,
                                   out_dtype=jnp.float32)
    out32 = jax.block_until_ready(out32)
    out32_nchw = jnp.transpose(out32, (0, 3, 1, 2))
    assert out32_nchw.shape == (N, C, Hs, Ws)
    assert jnp.allclose(out32_nchw, ref_nchw, atol=1e-4, rtol=1e-4), \
        "f32 kernel mismatch vs reference"

    # no-residual variant (use_add=False path)
    ref_na = reference_nhwc(x_nhwc, w1, b1, w2, b2, use_add=False)
    out_na = bottleneck_yolo_pallas(x_nhwc, w1, b1, w2, b2, use_add=False,
                                    compute_dtype=jnp.float32,
                                    out_dtype=jnp.float32)
    out_na = jax.block_until_ready(out_na)
    assert jnp.allclose(out_na, ref_na, atol=1e-4, rtol=1e-4), \
        "use_add=False kernel mismatch vs reference"

    # fast bf16 compute + bf16 output path (bf16-appropriate tolerance)
    out16 = bottleneck_yolo_pallas(x_nhwc, w1, b1, w2, b2,
                                   compute_dtype=jnp.bfloat16,
                                   out_dtype=jnp.bfloat16)
    out16 = jax.block_until_ready(out16)
    out16_nchw = jnp.transpose(out16.astype(jnp.float32), (0, 3, 1, 2))
    assert jnp.allclose(out16_nchw, ref_nchw, atol=5e-2, rtol=5e-2), \
        "bf16 kernel mismatch vs reference"

    print("KERNEL_OK")
</pallas_src>

<mosaic_0001>
module attributes {stable_mosaic.version = 11 : i64} {
  func.func @_bottleneck_kernel(%arg0: i32, %arg1: i32, %arg2: memref<2x8x16x128xf32, #tpu.memory_space<vmem>>, %arg3: memref<2x1x2x16x128xf32, #tpu.memory_space<vmem>>, %arg4: memref<128x128xf32, #tpu.memory_space<vmem>>, %arg5: memref<1x128xf32, #tpu.memory_space<vmem>>, %arg6: memref<3x384x128xf32, #tpu.memory_space<vmem>>, %arg7: memref<1x128xf32, #tpu.memory_space<vmem>>, %arg8: memref<2x8x16x128xf32, #tpu.memory_space<vmem>>, %arg9: memref<2x10x16x384xf32, #tpu.memory_space<vmem>>) attributes {dimension_semantics = [#tpu.dimension_semantics<parallel>, #tpu.dimension_semantics<parallel>], iteration_bounds = array<i64: 1, 2>, scalar_prefetch = 0 : i64, scratch_operands = 1 : i64, tpu.core_type = #tpu.core_type<tc>, window_params = [{transform_indices = @transform_0, window_bounds = array<i64: 2, 8, 16, 128>}, {transform_indices = @transform_1, window_bounds = array<i64: 2, 1, 2, 16, 128>}, {pipeline_mode = #tpu.pipeline_mode<synchronous>, transform_indices = @transform_2, window_bounds = array<i64: 128, 128>}, {pipeline_mode = #tpu.pipeline_mode<synchronous>, transform_indices = @transform_3, window_bounds = array<i64: 1, 128>}, {pipeline_mode = #tpu.pipeline_mode<synchronous>, transform_indices = @transform_4, window_bounds = array<i64: 3, 384, 128>}, {pipeline_mode = #tpu.pipeline_mode<synchronous>, transform_indices = @transform_5, window_bounds = array<i64: 1, 128>}, {transform_indices = @transform_6, window_bounds = array<i64: 2, 8, 16, 128>}]} {
    %c0 = arith.constant 0 : index
    %c0_0 = arith.constant 0 : index
    %c0_1 = arith.constant 0 : index
    %c0_2 = arith.constant 0 : index
    %0 = vector.load %arg2[%c0, %c0_0, %c0_1, %c0_2] : memref<2x8x16x128xf32, #tpu.memory_space<vmem>>, vector<2x8x16x128xf32>
    %c0_3 = arith.constant 0 : index
    %c0_4 = arith.constant 0 : index
    %c0_5 = arith.constant 0 : index
    %c0_6 = arith.constant 0 : index
    %c0_7 = arith.constant 0 : index
    %1 = vector.load %arg3[%c0_3, %c0_4, %c0_5, %c0_6, %c0_7] : memref<2x1x2x16x128xf32, #tpu.memory_space<vmem>>, vector<2x1x2x16x128xf32>
    %2 = vector.shape_cast %1 : vector<2x1x2x16x128xf32> to vector<2x2x16x128xf32>
    %3 = vector.extract_strided_slice %2 {offsets = [0, 0, 0, 0], sizes = [2, 1, 16, 128], strides = [1, 1, 1, 1]} : vector<2x2x16x128xf32> to vector<2x1x16x128xf32>
    %4 = vector.extract_strided_slice %2 {offsets = [0, 1, 0, 0], sizes = [2, 1, 16, 128], strides = [1, 1, 1, 1]} : vector<2x2x16x128xf32> to vector<2x1x16x128xf32>
    %5 = tpu.concatenate %3, %0, %4 in 1 : vector<2x1x16x128xf32>, vector<2x8x16x128xf32>, vector<2x1x16x128xf32> -> vector<2x10x16x128xf32>
    %6 = vector.shape_cast %5 : vector<2x10x16x128xf32> to vector<320x128xf32>
    %c0_8 = arith.constant 0 : index
    %c0_9 = arith.constant 0 : index
    %7 = vector.load %arg4[%c0_8, %c0_9] : memref<128x128xf32, #tpu.memory_space<vmem>>, vector<128x128xf32>
    %cst = arith.constant dense<0.000000e+00> : vector<320x128xf32>
    %8 = tpu.matmul %6, %7, %cst {dimension_numbers = #tpu.dot_dimension_numbers<[1], [0], [0], [1], [0, 0, 1, 1], [], []>} : vector<320x128xf32>, vector<128x128xf32>, vector<320x128xf32> -> vector<320x128xf32>
    %c0_10 = arith.constant 0 : index
    %c0_11 = arith.constant 0 : index
    %9 = vector.load %arg5[%c0_10, %c0_11] : memref<1x128xf32, #tpu.memory_space<vmem>>, vector<1x128xf32>
    %10 = vector.broadcast %9 : vector<1x128xf32> to vector<320x128xf32>
    %11 = arith.addf %8, %10 : vector<320x128xf32>
    %12 = arith.negf %11 : vector<320x128xf32>
    %13 = math.exp %12 : vector<320x128xf32>
    %cst_12 = arith.constant 1.000000e+00 : f32
    %14 = vector.broadcast %cst_12 : f32 to vector<320x128xf32>
    %15 = arith.addf %14, %13 : vector<320x128xf32>
    %16 = arith.divf %14, %15 : vector<320x128xf32>
    %17 = arith.mulf %11, %16 : vector<320x128xf32>
    %18 = vector.shape_cast %17 : vector<320x128xf32> to vector<2x10x16x128xf32>
    %cst_13 = arith.constant 0.000000e+00 : f32
    %19 = vector.broadcast %cst_13 : f32 to vector<2x10x1x128xf32>
    %20 = vector.extract_strided_slice %18 {offsets = [0, 0, 0, 0], sizes = [2, 10, 15, 128], strides = [1, 1, 1, 1]} : vector<2x10x16x128xf32> to vector<2x10x15x128xf32>
    %21 = tpu.concatenate %19, %20 in 2 : vector<2x10x1x128xf32>, vector<2x10x15x128xf32> -> vector<2x10x16x128xf32>
    %22 = vector.extract_strided_slice %18 {offsets = [0, 0, 1, 0], sizes = [2, 10, 15, 128], strides = [1, 1, 1, 1]} : vector<2x10x16x128xf32> to vector<2x10x15x128xf32>
    %23 = tpu.concatenate %22, %19 in 2 : vector<2x10x15x128xf32>, vector<2x10x1x128xf32> -> vector<2x10x16x128xf32>
    %c0_14 = arith.constant 0 : index
    %c0_15 = arith.constant 0 : index
    %c0_16 = arith.constant 0 : index
    %c0_17 = arith.constant 0 : index
    %24 = vector.load %arg9[%c0_14, %c0_15, %c0_16, %c0_17] : memref<2x10x16x384xf32, #tpu.memory_space<vmem>>, vector<2x10x16x128xf32>
    tpu.vector_store %arg9[%c0_14, %c0_15, %c0_16, %c0_17], %21 {strides = array<i32>} : memref<2x10x16x384xf32, #tpu.memory_space<vmem>>, vector<2x10x16x128xf32>,
    %c0_18 = arith.constant 0 : index
    %c0_19 = arith.constant 0 : index
    %c0_20 = arith.constant 0 : index
    %c128 = arith.constant 128 : index
    %25 = vector.load %arg9[%c0_18, %c0_19, %c0_20, %c128] : memref<2x10x16x384xf32, #tpu.memory_space<vmem>>, vector<2x10x16x128xf32>
    tpu.vector_store %arg9[%c0_18, %c0_19, %c0_20, %c128], %18 {strides = array<i32>} : memref<2x10x16x384xf32, #tpu.memory_space<vmem>>, vector<2x10x16x128xf32>,
    %c0_21 = arith.constant 0 : index
    %c0_22 = arith.constant 0 : index
    %c0_23 = arith.constant 0 : index
    %c256 = arith.constant 256 : index
    %26 = vector.load %arg9[%c0_21, %c0_22, %c0_23, %c256] : memref<2x10x16x384xf32, #tpu.memory_space<vmem>>, vector<2x10x16x128xf32>
    tpu.vector_store %arg9[%c0_21, %c0_22, %c0_23, %c256], %23 {strides = array<i32>} : memref<2x10x16x384xf32, #tpu.memory_space<vmem>>, vector<2x10x16x128xf32>,
    %c0_i32 = arith.constant 0 : i32
    %27 = arith.cmpi eq, %arg1, %c0_i32 : i32
    %28 = arith.extui %27 : i1 to i32
    %c0_i32_24 = arith.constant 0 : i32
    %29 = arith.cmpi ne, %28, %c0_i32_24 : i32
    scf.if %29 {
      %cst_55 = arith.constant 0.000000e+00 : f32
      %62 = vector.broadcast %cst_55 : f32 to vector<2x1x16x384xf32>
      %c0_56 = arith.constant 0 : index
      %c0_57 = arith.constant 0 : index
      %c0_58 = arith.constant 0 : index
      %c0_59 = arith.constant 0 : index
      %63 = vector.load %arg9[%c0_56, %c0_57, %c0_58, %c0_59] : memref<2x10x16x384xf32, #tpu.memory_space<vmem>>, vector<2x1x16x384xf32>
      tpu.vector_store %arg9[%c0_56, %c0_57, %c0_58, %c0_59], %62 {strides = array<i32>} : memref<2x10x16x384xf32, #tpu.memory_space<vmem>>, vector<2x1x16x384xf32>,
    } else {
    }
    %c1_i32 = arith.constant 1 : i32
    %30 = arith.cmpi eq, %arg1, %c1_i32 : i32
    %31 = arith.extui %30 : i1 to i32
    %c0_i32_25 = arith.constant 0 : i32
    %32 = arith.cmpi ne, %31, %c0_i32_25 : i32
    scf.if %32 {
      %cst_55 = arith.constant 0.000000e+00 : f32
      %62 = vector.broadcast %cst_55 : f32 to vector<2x1x16x384xf32>
      %c0_56 = arith.constant 0 : index
      %c9 = arith.constant 9 : index
      %c0_57 = arith.constant 0 : index
      %c0_58 = arith.constant 0 : index
      %63 = vector.load %arg9[%c0_56, %c9, %c0_57, %c0_58] : memref<2x10x16x384xf32, #tpu.memory_space<vmem>>, vector<2x1x16x384xf32>
      tpu.vector_store %arg9[%c0_56, %c9, %c0_57, %c0_58], %62 {strides = array<i32>} : memref<2x10x16x384xf32, #tpu.memory_space<vmem>>, vector<2x1x16x384xf32>,
    } else {
    }
    %c0_26 = arith.constant 0 : index
    %c0_27 = arith.constant 0 : index
    %c0_28 = arith.constant 0 : index
    %c0_29 = arith.constant 0 : index
    %33 = vector.load %arg9[%c0_26, %c0_27, %c0_28, %c0_29] : memref<2x10x16x384xf32, #tpu.memory_space<vmem>>, vector<2x8x16x384xf32>
    %34 = vector.shape_cast %33 : vector<2x8x16x384xf32> to vector<256x384xf32>
    %c0_30 = arith.constant 0 : index
    %c0_31 = arith.constant 0 : index
    %c0_32 = arith.constant 0 : index
    %35 = vector.load %arg6[%c0_30, %c0_31, %c0_32] : memref<3x384x128xf32, #tpu.memory_space<vmem>>, vector<1x384x128xf32>
    %36 = vector.shape_cast %35 : vector<1x384x128xf32> to vector<384x128xf32>
    %cst_33 = arith.constant dense<0.000000e+00> : vector<256x128xf32>
    %37 = tpu.matmul %34, %36, %cst_33 {dimension_numbers = #tpu.dot_dimension_numbers<[1], [0], [0], [1], [0, 0, 1, 1], [], []>} : vector<256x384xf32>, vector<384x128xf32>, vector<256x128xf32> -> vector<256x128xf32>
    %c0_34 = arith.constant 0 : index
    %c1 = arith.constant 1 : index
    %c0_35 = arith.constant 0 : index
    %c0_36 = arith.constant 0 : index
    %38 = vector.load %arg9[%c0_34, %c1, %c0_35, %c0_36] : memref<2x10x16x384xf32, #tpu.memory_space<vmem>>, vector<2x8x16x384xf32>
    %39 = vector.shape_cast %38 : vector<2x8x16x384xf32> to vector<256x384xf32>
    %c1_37 = arith.constant 1 : index
    %c0_38 = arith.constant 0 : index
    %c0_39 = arith.constant 0 : index
    %40 = vector.load %arg6[%c1_37, %c0_38, %c0_39] : memref<3x384x128xf32, #tpu.memory_space<vmem>>, vector<1x384x128xf32>
    %41 = vector.shape_cast %40 : vector<1x384x128xf32> to vector<384x128xf32>
    %cst_40 = arith.constant dense<0.000000e+00> : vector<256x128xf32>
    %42 = tpu.matmul %39, %41, %cst_40 {dimension_numbers = #tpu.dot_dimension_numbers<[1], [0], [0], [1], [0, 0, 1, 1], [], []>} : vector<256x384xf32>, vector<384x128xf32>, vector<256x128xf32> -> vector<256x128xf32>
    %43 = arith.addf %37, %42 : vector<256x128xf32>
    %c0_41 = arith.constant 0 : index
    %c2 = arith.constant 2 : index
    %c0_42 = arith.constant 0 : index
    %c0_43 = arith.constant 0 : index
    %44 = vector.load %arg9[%c0_41, %c2, %c0_42, %c0_43] : memref<2x10x16x384xf32, #tpu.memory_space<vmem>>, vector<2x8x16x384xf32>
    %45 = vector.shape_cast %44 : vector<2x8x16x384xf32> to vector<256x384xf32>
    %c2_44 = arith.constant 2 : index
    %c0_45 = arith.constant 0 : index
    %c0_46 = arith.constant 0 : index
    %46 = vector.load %arg6[%c2_44, %c0_45, %c0_46] : memref<3x384x128xf32, #tpu.memory_space<vmem>>, vector<1x384x128xf32>
    %47 = vector.shape_cast %46 : vector<1x384x128xf32> to vector<384x128xf32>
    %cst_47 = arith.constant dense<0.000000e+00> : vector<256x128xf32>
    %48 = tpu.matmul %45, %47, %cst_47 {dimension_numbers = #tpu.dot_dimension_numbers<[1], [0], [0], [1], [0, 0, 1, 1], [], []>} : vector<256x384xf32>, vector<384x128xf32>, vector<256x128xf32> -> vector<256x128xf32>
    %49 = arith.addf %43, %48 : vector<256x128xf32>
    %c0_48 = arith.constant 0 : index
    %c0_49 = arith.constant 0 : index
    %50 = vector.load %arg7[%c0_48, %c0_49] : memref<1x128xf32, #tpu.memory_space<vmem>>, vector<1x128xf32>
    %51 = vector.broadcast %50 : vector<1x128xf32> to vector<256x128xf32>
    %52 = arith.addf %49, %51 : vector<256x128xf32>
    %53 = arith.negf %52 : vector<256x128xf32>
    %54 = math.exp %53 : vector<256x128xf32>
    %cst_50 = arith.constant 1.000000e+00 : f32
    %55 = vector.broadcast %cst_50 : f32 to vector<256x128xf32>
    %56 = arith.addf %55, %54 : vector<256x128xf32>
    %57 = arith.divf %55, %56 : vector<256x128xf32>
    %58 = arith.mulf %52, %57 : vector<256x128xf32>
    %59 = vector.shape_cast %58 : vector<256x128xf32> to vector<2x8x16x128xf32>
    %60 = arith.addf %59, %0 : vector<2x8x16x128xf32>
    %c0_51 = arith.constant 0 : index
    %c0_52 = arith.constant 0 : index
    %c0_53 = arith.constant 0 : index
    %c0_54 = arith.constant 0 : index
    %61 = vector.load %arg8[%c0_51, %c0_52, %c0_53, %c0_54] : memref<2x8x16x128xf32, #tpu.memory_space<vmem>>, vector<2x8x16x128xf32>
    tpu.vector_store %arg8[%c0_51, %c0_52, %c0_53, %c0_54], %60 {strides = array<i32>} : memref<2x8x16x128xf32, #tpu.memory_space<vmem>>, vector<2x8x16x128xf32>,
    return
  }
  func.func @transform_0(%arg0: i32, %arg1: i32) -> (i32, i32, i32, i32) {
    %c0_i32 = arith.constant 0 : i32
    %c0_i32_0 = arith.constant 0 : i32
    %c0_i32_1 = arith.constant 0 : i32
    return %arg0, %arg1, %c0_i32, %c0_i32_0 : i32, i32, i32, i32
  }
  func.func @transform_1(%arg0: i32, %arg1: i32) -> (i32, i32, i32, i32, i32) {
    %c0_i32 = arith.constant 0 : i32
    %c0_i32_0 = arith.constant 0 : i32
    %c0_i32_1 = arith.constant 0 : i32
    %c0_i32_2 = arith.constant 0 : i32
    return %arg0, %arg1, %c0_i32, %c0_i32_0, %c0_i32_1 : i32, i32, i32, i32, i32
  }
  func.func @transform_2(%arg0: i32, %arg1: i32) -> (i32, i32) {
    %c0_i32 = arith.constant 0 : i32
    %c0_i32_0 = arith.constant 0 : i32
    %c0_i32_1 = arith.constant 0 : i32
    return %c0_i32, %c0_i32_0 : i32, i32
  }
  func.func @transform_3(%arg0: i32, %arg1: i32) -> (i32, i32) {
    %c0_i32 = arith.constant 0 : i32
    %c0_i32_0 = arith.constant 0 : i32
    %c0_i32_1 = arith.constant 0 : i32
    return %c0_i32, %c0_i32_0 : i32, i32
  }
  func.func @transform_4(%arg0: i32, %arg1: i32) -> (i32, i32, i32) {
    %c0_i32 = arith.constant 0 : i32
    %c0_i32_0 = arith.constant 0 : i32
    %c0_i32_1 = arith.constant 0 : i32
    %c0_i32_2 = arith.constant 0 : i32
    return %c0_i32, %c0_i32_0, %c0_i32_1 : i32, i32, i32
  }
  func.func @transform_5(%arg0: i32, %arg1: i32) -> (i32, i32) {
    %c0_i32 = arith.constant 0 : i32
    %c0_i32_0 = arith.constant 0 : i32
    %c0_i32_1 = arith.constant 0 : i32
    return %c0_i32, %c0_i32_0 : i32, i32
  }
  func.func @transform_6(%arg0: i32, %arg1: i32) -> (i32, i32, i32, i32) {
    %c0_i32 = arith.constant 0 : i32
    %c0_i32_0 = arith.constant 0 : i32
    %c0_i32_1 = arith.constant 0 : i32
    return %arg0, %arg1, %c0_i32, %c0_i32_0 : i32, i32, i32, i32
  }
}

</mosaic_0001>

<llo_original>
// kernel: tpu_custom_call.1
$region0: #{tpu_custom_call.1}
  #allocation0 [shape = 'u32[]', space=smem, size = 0x4, offset = 0x4, fixed_abs, tag = 'smem constant byte address 0x4 - core index']
  #allocation1 [shape = 'u32[144,128]{1,0:T(1,128)}', space=vmem, size = 0x12000, scoped, tag = 'internal scratch']
  #allocation2 [shape = 'f32[2,10,16,384]{3,2,1,0:T(8,128)}', space=vmem, size = 0x78000, scoped, tag = 'scratch operand']
  #allocation12 [shape = 's32[]', space=sflag, size = 0x4, offset = 0, fixed_abs, tag = 'sflag constant byte address 0x0 - dummy sync flag']
  #allocation14 [shape = 's32[]', space=sflag, size = 0x4, offset = 0, fixed_abs, tag = 'sflag constant byte address 0x0 - dummy sync flag']
  #allocation16 [shape = 's32[]', space=sflag, size = 0x4, offset = 0, fixed_abs, tag = 'sflag constant byte address 0x0 - dummy sync flag']
  %s0 = inlined_call_operand.hbm [shape: f32[2,16,16,128], index: 0, kind: input, shape index: {}]
  %s1 = inlined_call_operand.hbm [shape: f32[2,2,2,16,128], index: 1, kind: input, shape index: {}]
  %s2 = inlined_call_operand.hbm [shape: f32[128,128], index: 2, kind: input, shape index: {}]
  %s3 = inlined_call_operand.vmem [shape: f32[1,128], index: 3, kind: input, shape index: {}]
  %s4 = inlined_call_operand.hbm [shape: f32[3,384,128], index: 4, kind: input, shape index: {}]
  %s5 = inlined_call_operand.vmem [shape: f32[1,128], index: 5, kind: input, shape index: {}]
  %s6 = inlined_call_operand.hbm [shape: f32[2,16,16,128], index: 6, kind: output, shape index: {}]
  %s7 = sld [smem:[#allocation0]]
  $region81: #{tpu_custom_call.1} parent=0
    _
  %s9 = ssub.s32 1, %s7
  %s10 = scalar_select 0, %s9, %s7
  $region1: #{tpu_custom_call.1} parent=0
    #allocation3 [shape = 'u8[262144]{0}', space=vmem, size = 0x40000, scoped, tag = 'input window, operand 0']
    #allocation4 [shape = 's32[2]{0}', space=sflag, size = 0x8, scoped, tag = 'scoped memory for tpu_custom_call.1']
    #allocation5 [shape = 's32[2]{0}', space=sflag, size = 0x8, scoped, tag = 'scoped memory for tpu_custom_call.1']
    #allocation6 [shape = 'u8[65536]{0}', space=vmem, size = 0x10000, scoped, tag = 'input window, operand 1']
    #allocation7 [shape = 's32[2]{0}', space=sflag, size = 0x8, scoped, tag = 'scoped memory for tpu_custom_call.1']
    #allocation8 [shape = 'u8[65536]{0}', space=vmem, size = 0x10000, scoped, tag = 'input window, operand 2, single buffered']
    #allocation9 [shape = 'u8[589824]{0}', space=vmem, size = 0x90000, scoped, tag = 'input window, operand 4, single buffered']
    #allocation10 [shape = 's32[1]{0}', space=sflag, size = 0x4, scoped, tag = 'scoped memory for tpu_custom_call.1']
    #allocation11 [shape = 'u8[262144]{0}', space=vmem, size = 0x40000, scoped, tag = 'output window, operand 0']
    %11 = vsyncpa [#allocation4], 0
    %s12 = scalar_lea.sflag [#allocation4], 1
    %13 = vsyncpa %s12, 0
    %14 = vsyncpa [#allocation7], 0
    %s15 = scalar_lea.sflag [#allocation7], 1
    %16 = vsyncpa %s15, 0
    %17 = vsyncpa [#allocation10], 0
    %18 = vsyncpa [#allocation5], 0
    %s19 = scalar_lea.sflag [#allocation5], 1
    %20 = vsyncpa %s19, 0
    loop: start=0, step=1, limit=4
    $region2: #{tpu_custom_call.1} parent=1 // loop_pre_header
      _
    $region3: #{tpu_custom_call.1} parent=1 // loop_header
      %s22 = sphi 0, %s26
      %p23 = scmp.ge.s32.totalorder %s22, 4
      %s29 = sphi 0, %s41
      %s30 = sphi 0, %s37
      %s31 = sphi 0, %s29
      %s32 = sphi 0, %s30
      %s33 = sphi 0, %s31
      %s34 = sphi 0, %s32
      %s46 = sphi 0, %s48
      %s49 = sphi 0, %s46
      %s50 = sphi 0, %s49
      %s66 = sphi 0, %s50
      %s74 = sphi 0, %s76
      %s77 = sphi 0, %s74
      %s78 = sphi 0, %s77
      %s94 = sphi 0, %s78
      %s98 = sphi 0, %s98
      %s100 = sphi 0, %s98
      %s101 = sphi 0, %s100
      %s115 = sphi 0, %s101
      %s119 = sphi 0, %s119
      %s121 = sphi 0, %s119
      %s122 = sphi 0, %s121
      %s136 = sphi 0, %s122
      %s140 = sphi 0, %s140
      %s142 = sphi 0, %s140
      %s143 = sphi 0, %s142
      %s157 = sphi 0, %s143
      %s161 = sphi 0, %s161
      %s163 = sphi 0, %s161
      %s164 = sphi 0, %s163
      %s178 = sphi 0, %s164
      %s186 = sphi 0, %s188
      %s189 = sphi 0, %s186
      %s190 = sphi 0, %s189
      %s206 = sphi 0, %s190
    $region4: #{tpu_custom_call.1} parent=1 // loop_header_branch
      %25 = sbr.rel (%p23) target = $region8
    $region5: #{tpu_custom_call.1} parent=1 // loop_body
      %s27 = ssub.s32 %s22, 1
      %s28 = ssub.s32 %s22, 2
      %s35 = sadd.s32 1, %s30
      %p36 = scmp.ge.s32.totalorder %s35, 2
      %s37 = scalar_select %p36, 0, %s35
      %s38 = sadd.s32 1, %s29
      %s39 = scalar_select %p36, %s38, %s29
      %p40 = scmp.ge.s32.totalorder %s39, 1
      %s41 = scalar_select %p40, 0, %s39
      %s42 = ssub.s32 %s29, %s41
      %s43 = ssub.s32 %s30, %s37
      %s44 = sor.u32 %s42, %s43
      %p45 = scmp.eq.s32.totalorder %s44, 0
      %s47 = sadd.s32 %s46, 1
      %s48 = scalar_select %p45, %s46, %s47
      %p51 = pneg %p45
      %p52 = scmp.eq.s32.totalorder %s22, 1
      %p53 = por %p51, %p52
      %p54 = scmp.ne.s32.totalorder %s46, %s49
      %p55 = scmp.eq.s32.totalorder %s22, 0
      %p56 = por %p54, %p55
      %p57 = scmp.ne.s32.totalorder %s46, %s49
      %p58 = scmp.eq.s32.totalorder %s27, 1
      %p59 = por %p57, %p58
      %p60 = scmp.ne.s32.totalorder %s49, %s50
      %p61 = scmp.eq.s32.totalorder %s27, 0
      %p62 = por %p60, %p61
      %p63 = scmp.ne.s32.totalorder %s49, %s50
      %p64 = scmp.eq.s32.totalorder %s28, 1
      %p65 = por %p63, %p64
      %p67 = scmp.ne.s32.totalorder %s50, %s66
      %p68 = scmp.eq.s32.totalorder %s28, 0
      %p69 = por %p67, %p68
      %s70 = ssub.s32 %s29, %s41
      %s71 = ssub.s32 %s30, %s37
      %s72 = sor.u32 %s70, %s71
      %p73 = scmp.eq.s32.totalorder %s72, 0
      %s75 = sadd.s32 %s74, 1
      %s76 = scalar_select %p73, %s74, %s75
      %p79 = pneg %p73
      %p80 = scmp.eq.s32.totalorder %s22, 1
      %p81 = por %p79, %p80
      %p82 = scmp.ne.s32.totalorder %s74, %s77
      %p83 = scmp.eq.s32.totalorder %s22, 0
      %p84 = por %p82, %p83
      %p85 = scmp.ne.s32.totalorder %s74, %s77
      %p86 = scmp.eq.s32.totalorder %s27, 1
      %p87 = por %p85, %p86
      %p88 = scmp.ne.s32.totalorder %s77, %s78
      %p89 = scmp.eq.s32.totalorder %s27, 0
      %p90 = por %p88, %p89
      %p91 = scmp.ne.s32.totalorder %s77, %s78
      %p92 = scmp.eq.s32.totalorder %s28, 1
      %p93 = por %p91, %p92
      %p95 = scmp.ne.s32.totalorder %s78, %s94
      %p96 = scmp.eq.s32.totalorder %s28, 0
      %p97 = por %p95, %p96
      %s99 = sadd.s32 %s98, 1
      %p102 = scmp.eq.s32.totalorder %s22, 1
      %p103 = scmp.ne.s32.totalorder %s98, %s100
      %p104 = scmp.eq.s32.totalorder %s22, 0
      %p105 = por %p103, %p104
      %p106 = scmp.ne.s32.totalorder %s98, %s100
      %p107 = scmp.eq.s32.totalorder %s27, 1
      %p108 = por %p106, %p107
      %p109 = scmp.ne.s32.totalorder %s100, %s101
      %p110 = scmp.eq.s32.totalorder %s27, 0
      %p111 = por %p109, %p110
      %p112 = scmp.ne.s32.totalorder %s100, %s101
      %p113 = scmp.eq.s32.totalorder %s28, 1
      %p114 = por %p112, %p113
      %p116 = scmp.ne.s32.totalorder %s101, %s115
      %p117 = scmp.eq.s32.totalorder %s28, 0
      %p118 = por %p116, %p117
      %s120 = sadd.s32 %s119, 1
      %p123 = scmp.eq.s32.totalorder %s22, 1
      %p124 = scmp.ne.s32.totalorder %s119, %s121
      %p125 = scmp.eq.s32.totalorder %s22, 0
      %p126 = por %p124, %p125
      %p127 = scmp.ne.s32.totalorder %s119, %s121
      %p128 = scmp.eq.s32.totalorder %s27, 1
      %p129 = por %p127, %p128
      %p130 = scmp.ne.s32.totalorder %s121, %s122
      %p131 = scmp.eq.s32.totalorder %s27, 0
      %p132 = por %p130, %p131
      %p133 = scmp.ne.s32.totalorder %s121, %s122
      %p134 = scmp.eq.s32.totalorder %s28, 1
      %p135 = por %p133, %p134
      %p137 = scmp.ne.s32.totalorder %s122, %s136
      %p138 = scmp.eq.s32.totalorder %s28, 0
      %p139 = por %p137, %p138
      %s141 = sadd.s32 %s140, 1
      %p144 = scmp.eq.s32.totalorder %s22, 1
      %p145 = scmp.ne.s32.totalorder %s140, %s142
      %p146 = scmp.eq.s32.totalorder %s22, 0
      %p147 = por %p145, %p146
      %p148 = scmp.ne.s32.totalorder %s140, %s142
      %p149 = scmp.eq.s32.totalorder %s27, 1
      %p150 = por %p148, %p149
      %p151 = scmp.ne.s32.totalorder %s142, %s143
      %p152 = scmp.eq.s32.totalorder %s27, 0
      %p153 = por %p151, %p152
      %p154 = scmp.ne.s32.totalorder %s142, %s143
      %p155 = scmp.eq.s32.totalorder %s28, 1
      %p156 = por %p154, %p155
      %p158 = scmp.ne.s32.totalorder %s143, %s157
      %p159 = scmp.eq.s32.totalorder %s28, 0
      %p160 = por %p158, %p159
      %s162 = sadd.s32 %s161, 1
      %p165 = scmp.eq.s32.totalorder %s22, 1
      %p166 = scmp.ne.s32.totalorder %s161, %s163
      %p167 = scmp.eq.s32.totalorder %s22, 0
      %p168 = por %p166, %p167
      %p169 = scmp.ne.s32.totalorder %s161, %s163
      %p170 = scmp.eq.s32.totalorder %s27, 1
      %p171 = por %p169, %p170
      %p172 = scmp.ne.s32.totalorder %s163, %s164
      %p173 = scmp.eq.s32.totalorder %s27, 0
      %p174 = por %p172, %p173
      %p175 = scmp.ne.s32.totalorder %s163, %s164
      %p176 = scmp.eq.s32.totalorder %s28, 1
      %p177 = por %p175, %p176
      %p179 = scmp.ne.s32.totalorder %s164, %s178
      %p180 = scmp.eq.s32.totalorder %s28, 0
      %p181 = por %p179, %p180
      %s182 = ssub.s32 %s29, %s41
      %s183 = ssub.s32 %s30, %s37
      %s184 = sor.u32 %s182, %s183
      %p185 = scmp.eq.s32.totalorder %s184, 0
      %s187 = sadd.s32 %s186, 1
      %s188 = scalar_select %p185, %s186, %s187
      %p191 = pneg %p185
      %p192 = scmp.eq.s32.totalorder %s22, 1
      %p193 = por %p191, %p192
      %p194 = scmp.ne.s32.totalorder %s186, %s189
      %p195 = scmp.eq.s32.totalorder %s22, 0
      %p196 = por %p194, %p195
      %p197 = scmp.ne.s32.totalorder %s186, %s189
      %p198 = scmp.eq.s32.totalorder %s27, 1
      %p199 = por %p197, %p198
      %p200 = scmp.ne.s32.totalorder %s189, %s190
      %p201 = scmp.eq.s32.totalorder %s27, 0
      %p202 = por %p200, %p201
      %p203 = scmp.ne.s32.totalorder %s189, %s190
      %p204 = scmp.eq.s32.totalorder %s28, 1
      %p205 = por %p203, %p204
      %p207 = scmp.ne.s32.totalorder %s190, %s206
      %p208 = scmp.eq.s32.totalorder %s28, 0
      %p209 = por %p207, %p208
      %p210 = scmp.le.s32.totalorder 1, %s22
      %p211 = scmp.lt.s32.totalorder %s22, 3
      %p212 = pnand %p210, %p211
      %p213 = pneg %p212
      // Predicated region
      $region9: #{tpu_custom_call.1} parent=5 // pred_check
        _
      $region10: #{tpu_custom_call.1} parent=5 // pred_check_branch
        %215 = sbr.rel (%p212) target = $region12
      $region11: #{tpu_custom_call.1} parent=5 // pred_region
        %s216 = ssub.s32 %s22, 1
        // Predicated region
        $region13: #{tpu_custom_call.1} parent=11 // pred_check
          %p217 = pneg %p111
        $region14: #{tpu_custom_call.1} parent=11 // pred_check_branch
          %219 = sbr.rel (%p217) target = $region16
        $region15: #{tpu_custom_call.1} parent=11 // pred_region
          %s221 = ssub.s32 2048, 2048
          %222 = vsyncadd [#allocation7], %s221
          %s223 = sshll.u32 [#allocation8], 4
          %s224 = int_to_ptr.vmem [resolvable:$true] %s223
          %229 = dma.hbm_to_vmem [thread:$0]  %s2, 2048, %s224, [#allocation7], 128, 128, 8
        $region16: #{tpu_custom_call.1} parent=11 // pred_fallthru
          _
        // Predicated region
        $region17: #{tpu_custom_call.1} parent=11 // pred_check
          %p230 = pneg %p132
        $region18: #{tpu_custom_call.1} parent=11 // pred_check_branch
          %232 = sbr.rel (%p230) target = $region20
        $region19: #{tpu_custom_call.1} parent=11 // pred_region
          _
        $region20: #{tpu_custom_call.1} parent=11 // pred_fallthru
          _
        // Predicated region
        $region21: #{tpu_custom_call.1} parent=11 // pred_check
          %p233 = pneg %p153
        $region22: #{tpu_custom_call.1} parent=11 // pred_check_branch
          %235 = sbr.rel (%p233) target = $region24
        $region23: #{tpu_custom_call.1} parent=11 // pred_region
          %s237 = ssub.s32 18432, 18432
          %238 = vsyncadd [#allocation10], %s237
          %s239 = sshll.u32 [#allocation9], 4
          %s240 = int_to_ptr.vmem [resolvable:$true] %s239
          %245 = dma.hbm_to_vmem [thread:$0]  %s4, 18432, %s240, [#allocation10], 128, 128, 8
        $region24: #{tpu_custom_call.1} parent=11 // pred_fallthru
          _
        // Predicated region
        $region25: #{tpu_custom_call.1} parent=11 // pred_check
          %p246 = pneg %p174
        $region26: #{tpu_custom_call.1} parent=11 // pred_check_branch
          %248 = sbr.rel (%p246) target = $region28
        $region27: #{tpu_custom_call.1} parent=11 // pred_region
          _
        $region28: #{tpu_custom_call.1} parent=11 // pred_fallthru
          _
      $region12: #{tpu_custom_call.1} parent=5 // pred_fallthru
        _
      %p249 = scmp.lt.s32.totalorder %s22, 2
      // Predicated region
      $region29: #{tpu_custom_call.1} parent=5 // pred_check
        %p250 = pneg %p249
      $region30: #{tpu_custom_call.1} parent=5 // pred_check_branch
        %252 = sbr.rel (%p250) target = $region32
      $region31: #{tpu_custom_call.1} parent=5 // pred_region
        // Predicated region
        $region33: #{tpu_custom_call.1} parent=31 // pred_check
          %p253 = pneg %p56
        $region34: #{tpu_custom_call.1} parent=31 // pred_check_branch
          %255 = sbr.rel (%p253) target = $region36
        $region35: #{tpu_custom_call.1} parent=31 // pred_region
          #allocation13 [shape = 'u32[6]{0}', space=smem, size = 0x18, scoped, tag = 'DMA stride descriptor']
          %s256 = sand.u32 %s46, 1
          %s257 = scalar_lea.sflag [#allocation4], %s256
          %s258 = sand.u32 %s46, 1
          %s259 = smul.addr %s258, 256
          %s260 = scalar_lea.vmem [#allocation3], %s259
          %s261 = smul.u32 2, %s29
          %s262 = smul.u32 8, %s30
          %s264 = ssub.s32 4096, 4096
          %265 = vsyncadd %s257, %s264
          %s266 = smul.addr %s262, 2
          %s267 = smul.addr %s261, 32
          %s268 = sadd.s32 %s266, %s267
          %s269 = smul.addr %s268, 128
          %s270 = scalar_lea.hbm %s0, %s269
          %s272 = sshll.u32 1, 14
          %s273 = sxor.u32 4294967295, %s272
          %s275 = sld [smem:[#allocation0]]
          %s276 = sadd.s32 2, %s275
          %s278 = sshll.u32 7, 26
          %s279 = sxor.u32 4294967295, %s278
          %s280 = sand.u32 0, %s279
          %s281 = sshll.u32 %s276, 26
          %s282 = sor.u32 %s280, %s281
          %s283 = sshll.u32 %s260, 4
          %s284 = int_to_ptr.vmem [resolvable:$true] %s283
          %290 = sst [smem:[#allocation13]] 4096
          %s291 = scalar_lea.smem [#allocation13], 1
          %292 = sst [smem:[%s291]] 2048
          %s293 = scalar_lea.smem [#allocation13], 2
          %294 = sst [smem:[%s293]] 16
          %s295 = scalar_lea.smem [#allocation13], 3
          %296 = sst [smem:[%s295]] 128
          %s297 = scalar_lea.smem [#allocation13], 4
          %298 = sst [smem:[%s297]] 128
          %s299 = scalar_lea.smem [#allocation13], 5
          %300 = sst [smem:[%s299]] 8
          %302 = dma.general %s270, 4096, %s284, %s257, [#allocation12], [#allocation13], %s282, 0
        $region36: #{tpu_custom_call.1} parent=31 // pred_fallthru
          _
        // Predicated region
        $region37: #{tpu_custom_call.1} parent=31 // pred_check
          %p303 = pneg %p84
        $region38: #{tpu_custom_call.1} parent=31 // pred_check_branch
          %305 = sbr.rel (%p303) target = $region40
        $region39: #{tpu_custom_call.1} parent=31 // pred_region
          #allocation15 [shape = 'u32[6]{0}', space=smem, size = 0x18, scoped, tag = 'DMA stride descriptor']
          %s306 = sand.u32 %s22, 1
          %s307 = scalar_lea.sflag [#allocation7], %s306
          %s308 = sand.u32 %s74, 1
          %s309 = smul.addr %s308, 64
          %s310 = scalar_lea.vmem [#allocation6], %s309
          %s311 = smul.u32 2, %s29
          %s313 = ssub.s32 1024, 1024
          %314 = vsyncadd %s307, %s313
          %s315 = smul.addr %s30, 4
          %s316 = smul.addr %s311, 8
          %s317 = sadd.s32 %s315, %s316
          %s318 = smul.addr %s317, 128
          %s319 = scalar_lea.hbm %s1, %s318
          %s321 = sshll.u32 1, 14
          %s322 = sxor.u32 4294967295, %s321
          %s324 = sld [smem:[#allocation0]]
          %s325 = sadd.s32 2, %s324
          %s327 = sshll.u32 7, 26
          %s328 = sxor.u32 4294967295, %s327
          %s329 = sand.u32 0, %s328
          %s330 = sshll.u32 %s325, 26
          %s331 = sor.u32 %s329, %s330
          %s332 = sshll.u32 %s310, 4
          %s333 = int_to_ptr.vmem [resolvable:$true] %s332
          %339 = sst [smem:[#allocation15]] 1024
          %s340 = scalar_lea.smem [#allocation15], 1
          %341 = sst [smem:[%s340]] 512
          %s342 = scalar_lea.smem [#allocation15], 2
          %343 = sst [smem:[%s342]] 4
          %s344 = scalar_lea.smem [#allocation15], 3
          %345 = sst [smem:[%s344]] 128
          %s346 = scalar_lea.smem [#allocation15], 4
          %347 = sst [smem:[%s346]] 128
          %s348 = scalar_lea.smem [#allocation15], 5
          %349 = sst [smem:[%s348]] 8
          %351 = dma.general %s319, 1024, %s333, %s307, [#allocation14], [#allocation15], %s331, 0
        $region40: #{tpu_custom_call.1} parent=31 // pred_fallthru
          _
      $region32: #{tpu_custom_call.1} parent=5 // pred_fallthru
        _
      %p352 = scmp.le.s32.totalorder 1, %s22
      %p353 = scmp.lt.s32.totalorder %s22, 3
      %p354 = pnand %p352, %p353
      %p355 = pneg %p354
      // Predicated region
      $region41: #{tpu_custom_call.1} parent=5 // pred_check
        _
      $region42: #{tpu_custom_call.1} parent=5 // pred_check_branch
        %357 = sbr.rel (%p354) target = $region44
      $region43: #{tpu_custom_call.1} parent=5 // pred_region
        %s358 = ssub.s32 %s22, 1
        %s359 = sand.u32 %s49, 1
        %s360 = scalar_lea.sflag [#allocation4], %s359
        %s361 = sand.u32 %s49, 1
        %s362 = smul.addr %s361, 256
        %s363 = scalar_lea.vmem [#allocation3], %s362
        // Predicated region
        $region45: #{tpu_custom_call.1} parent=43 // pred_check
          %p364 = pneg %p62
        $region46: #{tpu_custom_call.1} parent=43 // pred_check_branch
          %366 = sbr.rel (%p364) target = $region48
        $region47: #{tpu_custom_call.1} parent=43 // pred_region
          %367 = dma.done %s360, 4096
        $region48: #{tpu_custom_call.1} parent=43 // pred_fallthru
          _
        %s368 = sand.u32 %s27, 1
        %s369 = scalar_lea.sflag [#allocation7], %s368
        %s370 = sand.u32 %s77, 1
        %s371 = smul.addr %s370, 64
        %s372 = scalar_lea.vmem [#allocation6], %s371
        // Predicated region
        $region49: #{tpu_custom_call.1} parent=43 // pred_check
          %p373 = pneg %p90
        $region50: #{tpu_custom_call.1} parent=43 // pred_check_branch
          %375 = sbr.rel (%p373) target = $region52
        $region51: #{tpu_custom_call.1} parent=43 // pred_region
          %376 = dma.done %s369, 1024
        $region52: #{tpu_custom_call.1} parent=43 // pred_fallthru
          _
        // Predicated region
        $region53: #{tpu_custom_call.1} parent=43 // pred_check
          %p377 = pneg %p111
        $region54: #{tpu_custom_call.1} parent=43 // pred_check_branch
          %379 = sbr.rel (%p377) target = $region56
        $region55: #{tpu_custom_call.1} parent=43 // pred_region
          %380 = dma.done [#allocation7], 2048
        $region56: #{tpu_custom_call.1} parent=43 // pred_fallthru
          _
        // Predicated region
        $region57: #{tpu_custom_call.1} parent=43 // pred_check
          %p381 = pneg %p153
        $region58: #{tpu_custom_call.1} parent=43 // pred_check_branch
          %383 = sbr.rel (%p381) target = $region60
        $region59: #{tpu_custom_call.1} parent=43 // pred_region
          %384 = dma.done [#allocation10], 18432
        $region60: #{tpu_custom_call.1} parent=43 // pred_fallthru
          _
        %s385 = sand.u32 %s49, 1
        %s386 = scalar_lea.sflag [#allocation4], %s385
        %s387 = sand.u32 %s49, 1
        %s388 = smul.addr %s387, 256
        %s389 = scalar_lea.vmem [#allocation3], %s388
        %p390 = pneg %p62
        %p391 = pneg %p59
        %s392 = sand.u32 %s27, 1
        %s393 = scalar_lea.sflag [#allocation7], %s392
        %s394 = sand.u32 %s77, 1
        %s395 = smul.addr %s394, 64
        %s396 = scalar_lea.vmem [#allocation6], %s395
        %p397 = pneg %p90
        %p398 = pneg %p87
        %p399 = pneg %p111
        %p400 = pneg %p108
        %p401 = pneg %p132
        %p402 = pneg %p129
        %p403 = pneg %p153
        %p404 = pneg %p150
        %p405 = pneg %p174
        %p406 = pneg %p171
        %p407 = pneg %p202
        %p408 = pneg %p199
        %s409 = sand.u32 %s189, 1
        %s410 = scalar_lea.sflag [#allocation5], %s409
        %s411 = sand.u32 %s189, 1
        %s412 = smul.addr %s411, 256
        %s413 = scalar_lea.vmem [#allocation11], %s412
        %s414 = smul.u32 2, %s31
        %s415 = smul.u32 8, %s32
        %s416 = smul.u32 2, %s31
        %s417 = smul.u32 2, %s31
        %s418 = smul.u32 8, %s32
        %v419 = vld [vmem:[%s363] sm:$0xff]
        %v420 = vld [vmem:[%s363 + $0x8] sm:$0xff]
        %v421 = vld [vmem:[%s363 + $0x10] sm:$0xff]
        %v422 = vld [vmem:[%s363 + $0x18] sm:$0xff]
        %v423 = vld [vmem:[%s363 + $0x20] sm:$0xff]
        %v424 = vld [vmem:[%s363 + $0x28] sm:$0xff]
        %v425 = vld [vmem:[%s363 + $0x30] sm:$0xff]
        %v426 = vld [vmem:[%s363 + $0x38] sm:$0xff]
        %v427 = vld [vmem:[%s363 + $0x40] sm:$0xff]
        %v428 = vld [vmem:[%s363 + $0x48] sm:$0xff]
        %v429 = vld [vmem:[%s363 + $0x50] sm:$0xff]
        %v430 = vld [vmem:[%s363 + $0x58] sm:$0xff]
        %v431 = vld [vmem:[%s363 + $0x60] sm:$0xff]
        %v432 = vld [vmem:[%s363 + $0x68] sm:$0xff]
        %v433 = vld [vmem:[%s363 + $0x70] sm:$0xff]
        %v434 = vld [vmem:[%s363 + $0x78] sm:$0xff]
        %v435 = vld [vmem:[%s363 + $0x80] sm:$0xff]
        %v436 = vld [vmem:[%s363 + $0x88] sm:$0xff]
        %v437 = vld [vmem:[%s363 + $0x90] sm:$0xff]
        %v438 = vld [vmem:[%s363 + $0x98] sm:$0xff]
        %v439 = vld [vmem:[%s363 + $0xa0] sm:$0xff]
        %v440 = vld [vmem:[%s363 + $0xa8] sm:$0xff]
        %v441 = vld [vmem:[%s363 + $0xb0] sm:$0xff]
        %v442 = vld [vmem:[%s363 + $0xb8] sm:$0xff]
        %v443 = vld [vmem:[%s363 + $0xc0] sm:$0xff]
        %v444 = vld [vmem:[%s363 + $0xc8] sm:$0xff]
        %v445 = vld [vmem:[%s363 + $0xd0] sm:$0xff]
        %v446 = vld [vmem:[%s363 + $0xd8] sm:$0xff]
        %v447 = vld [vmem:[%s363 + $0xe0] sm:$0xff]
        %v448 = vld [vmem:[%s363 + $0xe8] sm:$0xff]
        %v449 = vld [vmem:[%s363 + $0xf0] sm:$0xff]
        %v450 = vld [vmem:[%s363 + $0xf8] sm:$0xff]
        %v451 = vld [vmem:[%s372] sm:$0xff]
        %v452 = vld [vmem:[%s372 + $0x8] sm:$0xff]
        %v453 = vld [vmem:[%s372 + $0x10] sm:$0xff]
        %v454 = vld [vmem:[%s372 + $0x18] sm:$0xff]
        %v455 = vld [vmem:[%s372 + $0x20] sm:$0xff]
        %v456 = vld [vmem:[%s372 + $0x28] sm:$0xff]
        %v457 = vld [vmem:[%s372 + $0x30] sm:$0xff]
        %v458 = vld [vmem:[%s372 + $0x38] sm:$0xff]
        %v459 = vld [vmem:[#allocation8] sm:$0xff]
        %v460 = vld [vmem:[#allocation8 + $0x8] sm:$0xff]
        %v461 = vld [vmem:[#allocation8 + $0x10] sm:$0xff]
        %v462 = vld [vmem:[#allocation8 + $0x18] sm:$0xff]
        %v463 = vld [vmem:[#allocation8 + $0x20] sm:$0xff]
        %v464 = vld [vmem:[#allocation8 + $0x28] sm:$0xff]
        %v465 = vld [vmem:[#allocation8 + $0x30] sm:$0xff]
        %v466 = vld [vmem:[#allocation8 + $0x38] sm:$0xff]
        %v467 = vld [vmem:[#allocation8 + $0x40] sm:$0xff]
        %v468 = vld [vmem:[#allocation8 + $0x48] sm:$0xff]
        %v469 = vld [vmem:[#allocation8 + $0x50] sm:$0xff]
        %v470 = vld [vmem:[#allocation8 + $0x58] sm:$0xff]
        %v471 = vld [vmem:[#allocation8 + $0x60] sm:$0xff]
        %v472 = vld [vmem:[#allocation8 + $0x68] sm:$0xff]
        %v473 = vld [vmem:[#allocation8 + $0x70] sm:$0xff]
        %v474 = vld [vmem:[#allocation8 + $0x78] sm:$0xff]
        %v475 = vld [vmem:[%s3] sm:$0x1]
        %v477 = vlaneseq
        %v478 = vshrl.u32 %v477, 7
        %v479 = vsub.s32 0, %v478
        %v480 = vrot.slane %v475, %v479
        %482 = vmatprep.subr.mxu0 0.0
        %483 = vmatpush1.msra.mxu0 %v459
        %484 = vmatprep.subr.mxu0 0.0
        %485 = vmatpush1.msra.mxu0 %v460
        %486 = vmatprep.subr.mxu0 0.0
        %487 = vmatpush1.msra.mxu0 %v461
        %488 = vmatprep.subr.mxu0 0.0
        %489 = vmatpush1.msra.mxu0 %v462
        %490 = vmatprep.subr.mxu0 0.0
        %491 = vmatpush1.msra.mxu0 %v463
        %492 = vmatprep.subr.mxu0 0.0
        %493 = vmatpush1.msra.mxu0 %v464
        %494 = vmatprep.subr.mxu0 0.0
        %495 = vmatpush1.msra.mxu0 %v465
        %496 = vmatprep.subr.mxu0 0.0
        %497 = vmatpush1.msra.mxu0 %v466
        %498 = vmatprep.subr.mxu0 0.0
        %499 = vmatpush1.msra.mxu0 %v467
        %500 = vmatprep.subr.mxu0 0.0
        %501 = vmatpush1.msra.mxu0 %v468
        %502 = vmatprep.subr.mxu0 0.0
        %503 = vmatpush1.msra.mxu0 %v469
        %504 = vmatprep.subr.mxu0 0.0
        %505 = vmatpush1.msra.mxu0 %v470
        %506 = vmatprep.subr.mxu0 0.0
        %507 = vmatpush1.msra.mxu0 %v471
        %508 = vmatprep.subr.mxu0 0.0
        %509 = vmatpush1.msra.mxu0 %v472
        %510 = vmatprep.subr.mxu0 0.0
        %511 = vmatpush1.msra.mxu0 %v473
        %512 = vmatprep.subr.mxu0 0.0
        %513 = vmatpush1.msra.mxu0 %v474
        %514 = vmatprep.subr.mxu0 0.0
        %515 = vmatpush1.msra.mxu0 0.0
        %516 = vmatprep.subr.mxu0 0.0
        %517 = vmatpush1.msra.mxu0 0.0
        %518 = vmatprep.subr.mxu0 0.0
        %519 = vmatpush1.msra.mxu0 0.0
        %520 = vmatprep.subr.mxu0 0.0
        %521 = vmatpush1.msra.mxu0 0.0
        %522 = vmatprep.subr.mxu0 0.0
        %523 = vmatpush1.msra.mxu0 0.0
        %524 = vmatprep.subr.mxu0 0.0
        %525 = vmatpush1.msra.mxu0 0.0
        %526 = vmatprep.subr.mxu0 0.0
        %527 = vmatpush1.msra.mxu0 0.0
        %528 = vmatprep.subr.mxu0 0.0
        %529 = vmatpush1.msra.mxu0 0.0
        %530 = vmatprep.subr.mxu0 0.0
        %531 = vmatpush1.msra.mxu0 0.0
        %532 = vmatprep.subr.mxu0 0.0
        %533 = vmatpush1.msra.mxu0 0.0
        %534 = vmatprep.subr.mxu0 0.0
        %535 = vmatpush1.msra.mxu0 0.0
        %536 = vmatprep.subr.mxu0 0.0
        %537 = vmatpush1.msra.mxu0 0.0
        %538 = vmatprep.subr.mxu0 0.0
        %539 = vmatpush1.msra.mxu0 0.0
        %540 = vmatprep.subr.mxu0 0.0
        %541 = vmatpush1.msra.mxu0 0.0
        %542 = vmatprep.subr.mxu0 0.0
        %543 = vmatpush1.msra.mxu0 0.0
        %544 = vmatprep.subr.mxu0 0.0
        %545 = vmatpush1.msra.mxu0 0.0
        %546 = vmatprep.mubr.f32.mxu0 0.0
        %547 = vmatmul.mubr.f32.gmra.mrb[0].mxu0 %v451
        %v548 = vpop.f32.mrb[0].mxu0
        %v549 = vadd.f32 %v480, %v548
        %v550 = vpop.f32.mrb[0].mxu0
        %551 = vmatprep.mubr.f32.mxu0 0.0
        %552 = vmatmul.mubr.f32.gmra.mrb[0].mxu0 %v452
        %v553 = vpop.f32.mrb[0].mxu0
        %v554 = vadd.f32 %v480, %v553
        %v555 = vpop.f32.mrb[0].mxu0
        %556 = vmatprep.mubr.f32.mxu0 0.0
        %557 = vmatmul.mubr.f32.gmra.mrb[0].mxu0 %v419
        %v558 = vpop.f32.mrb[0].mxu0
        %v559 = vadd.f32 %v480, %v558
        %v560 = vpop.f32.mrb[0].mxu0
        %561 = vmatprep.mubr.f32.mxu0 0.0
        %562 = vmatmul.mubr.f32.gmra.mrb[0].mxu0 %v420
        %v563 = vpop.f32.mrb[0].mxu0
        %v564 = vadd.f32 %v480, %v563
        %v565 = vpop.f32.mrb[0].mxu0
        %566 = vmatprep.mubr.f32.mxu0 0.0
        %567 = vmatmul.mubr.f32.gmra.mrb[0].mxu0 %v421
        %v568 = vpop.f32.mrb[0].mxu0
        %v569 = vadd.f32 %v480, %v568
        %v570 = vpop.f32.mrb[0].mxu0
        %571 = vmatprep.mubr.f32.mxu0 0.0
        %572 = vmatmul.mubr.f32.gmra.mrb[0].mxu0 %v422
        %v573 = vpop.f32.mrb[0].mxu0
        %v574 = vadd.f32 %v480, %v573
        %v575 = vpop.f32.mrb[0].mxu0
        %576 = vmatprep.mubr.f32.mxu0 0.0
        %577 = vmatmul.mubr.f32.gmra.mrb[0].mxu0 %v423
        %v578 = vpop.f32.mrb[0].mxu0
        %v579 = vadd.f32 %v480, %v578
        %v580 = vpop.f32.mrb[0].mxu0
        %581 = vmatprep.mubr.f32.mxu0 0.0
        %582 = vmatmul.mubr.f32.gmra.mrb[0].mxu0 %v424
        %v583 = vpop.f32.mrb[0].mxu0
        %v584 = vadd.f32 %v480, %v583
        %v585 = vpop.f32.mrb[0].mxu0
        %586 = vmatprep.mubr.f32.mxu0 0.0
        %587 = vmatmul.mubr.f32.gmra.mrb[0].mxu0 %v425
        %v588 = vpop.f32.mrb[0].mxu0
        %v589 = vadd.f32 %v480, %v588
        %v590 = vpop.f32.mrb[0].mxu0
        %591 = vmatprep.mubr.f32.mxu0 0.0
        %592 = vmatmul.mubr.f32.gmra.mrb[0].mxu0 %v426
        %v593 = vpop.f32.mrb[0].mxu0
        %v594 = vadd.f32 %v480, %v593
        %v595 = vpop.f32.mrb[0].mxu0
        %596 = vmatprep.mubr.f32.mxu0 0.0
        %597 = vmatmul.mubr.f32.gmra.mrb[0].mxu0 %v427
        %v598 = vpop.f32.mrb[0].mxu0
        %v599 = vadd.f32 %v480, %v598
        %v600 = vpop.f32.mrb[0].mxu0
        %601 = vmatprep.mubr.f32.mxu0 0.0
        %602 = vmatmul.mubr.f32.gmra.mrb[0].mxu0 %v428
        %v603 = vpop.f32.mrb[0].mxu0
        %v604 = vadd.f32 %v480, %v603
        %v605 = vpop.f32.mrb[0].mxu0
        %606 = vmatprep.mubr.f32.mxu0 0.0
        %607 = vmatmul.mubr.f32.gmra.mrb[0].mxu0 %v429
        %v608 = vpop.f32.mrb[0].mxu0
        %v609 = vadd.f32 %v480, %v608
        %v610 = vpop.f32.mrb[0].mxu0
        %611 = vmatprep.mubr.f32.mxu0 0.0
        %612 = vmatmul.mubr.f32.gmra.mrb[0].mxu0 %v430
        %v613 = vpop.f32.mrb[0].mxu0
        %v614 = vadd.f32 %v480, %v613
        %v615 = vpop.f32.mrb[0].mxu0
        %616 = vmatprep.mubr.f32.mxu0 0.0
        %617 = vmatmul.mubr.f32.gmra.mrb[0].mxu0 %v431
        %v618 = vpop.f32.mrb[0].mxu0
        %v619 = vadd.f32 %v480, %v618
        %v620 = vpop.f32.mrb[0].mxu0
        %621 = vmatprep.mubr.f32.mxu0 0.0
        %622 = vmatmul.mubr.f32.gmra.mrb[0].mxu0 %v432
        %v623 = vpop.f32.mrb[0].mxu0
        %v624 = vadd.f32 %v480, %v623
        %v625 = vpop.f32.mrb[0].mxu0
        %626 = vmatprep.mubr.f32.mxu0 0.0
        %627 = vmatmul.mubr.f32.gmra.mrb[0].mxu0 %v433
        %v628 = vpop.f32.mrb[0].mxu0
        %v629 = vadd.f32 %v480, %v628
        %v630 = vpop.f32.mrb[0].mxu0
        %631 = vmatprep.mubr.f32.mxu0 0.0
        %632 = vmatmul.mubr.f32.gmra.mrb[0].mxu0 %v434
        %v633 = vpop.f32.mrb[0].mxu0
        %v634 = vadd.f32 %v480, %v633
        %v635 = vpop.f32.mrb[0].mxu0
        %636 = vmatprep.mubr.f32.mxu0 0.0
        %637 = vmatmul.mubr.f32.gmra.mrb[0].mxu0 %v453
        %v638 = vpop.f32.mrb[0].mxu0
        %v639 = vadd.f32 %v480, %v638
        %v640 = vpop.f32.mrb[0].mxu0
        %641 = vmatprep.mubr.f32.mxu0 0.0
        %642 = vmatmul.mubr.f32.gmra.mrb[0].mxu0 %v454
        %v643 = vpop.f32.mrb[0].mxu0
        %v644 = vadd.f32 %v480, %v643
        %v645 = vpop.f32.mrb[0].mxu0
        %646 = vmatprep.mubr.f32.mxu0 0.0
        %647 = vmatmul.mubr.f32.gmra.mrb[0].mxu0 %v455
        %v648 = vpop.f32.mrb[0].mxu0
        %v649 = vadd.f32 %v480, %v648
        %v650 = vpop.f32.mrb[0].mxu0
        %651 = vmatprep.mubr.f32.mxu0 0.0
        %652 = vmatmul.mubr.f32.gmra.mrb[0].mxu0 %v456
        %v653 = vpop.f32.mrb[0].mxu0
        %v654 = vadd.f32 %v480, %v653
        %v655 = vpop.f32.mrb[0].mxu0
        %656 = vmatprep.mubr.f32.mxu0 0.0
        %657 = vmatmul.mubr.f32.gmra.mrb[0].mxu0 %v435
        %v658 = vpop.f32.mrb[0].mxu0
        %v659 = vadd.f32 %v480, %v658
        %v660 = vpop.f32.mrb[0].mxu0
        %661 = vmatprep.mubr.f32.mxu0 0.0
        %662 = vmatmul.mubr.f32.gmra.mrb[0].mxu0 %v436
        %v663 = vpop.f32.mrb[0].mxu0
        %v664 = vadd.f32 %v480, %v663
        %v665 = vpop.f32.mrb[0].mxu0
        %666 = vmatprep.mubr.f32.mxu0 0.0
        %667 = vmatmul.mubr.f32.gmra.mrb[0].mxu0 %v437
        %v668 = vpop.f32.mrb[0].mxu0
        %v669 = vadd.f32 %v480, %v668
        %v670 = vpop.f32.mrb[0].mxu0
        %671 = vmatprep.mubr.f32.mxu0 0.0
        %672 = vmatmul.mubr.f32.gmra.mrb[0].mxu0 %v438
        %v673 = vpop.f32.mrb[0].mxu0
        %v674 = vadd.f32 %v480, %v673
        %v675 = vpop.f32.mrb[0].mxu0
        %676 = vmatprep.mubr.f32.mxu0 0.0
        %677 = vmatmul.mubr.f32.gmra.mrb[0].mxu0 %v439
        %v678 = vpop.f32.mrb[0].mxu0
        %v679 = vadd.f32 %v480, %v678
        %v680 = vpop.f32.mrb[0].mxu0
        %681 = vmatprep.mubr.f32.mxu0 0.0
        %682 = vmatmul.mubr.f32.gmra.mrb[0].mxu0 %v440
        %v683 = vpop.f32.mrb[0].mxu0
        %v684 = vadd.f32 %v480, %v683
        %v685 = vpop.f32.mrb[0].mxu0
        %686 = vmatprep.mubr.f32.mxu0 0.0
        %687 = vmatmul.mubr.f32.gmra.mrb[0].mxu0 %v441
        %v688 = vpop.f32.mrb[0].mxu0
        %v689 = vadd.f32 %v480, %v688
        %v690 = vpop.f32.mrb[0].mxu0
        %691 = vmatprep.mubr.f32.mxu0 0.0
        %692 = vmatmul.mubr.f32.gmra.mrb[0].mxu0 %v442
        %v693 = vpop.f32.mrb[0].mxu0
        %v694 = vadd.f32 %v480, %v693
        %v695 = vpop.f32.mrb[0].mxu0
        %696 = vmatprep.mubr.f32.mxu0 0.0
        %697 = vmatmul.mubr.f32.gmra.mrb[0].mxu0 %v443
        %v698 = vpop.f32.mrb[0].mxu0
        %v699 = vadd.f32 %v480, %v698
        %v700 = vpop.f32.mrb[0].mxu0
        %701 = vmatprep.mubr.f32.mxu0 0.0
        %702 = vmatmul.mubr.f32.gmra.mrb[0].mxu0 %v444
        %v703 = vpop.f32.mrb[0].mxu0
        %v704 = vadd.f32 %v480, %v703
        %v705 = vpop.f32.mrb[0].mxu0
        %706 = vmatprep.mubr.f32.mxu0 0.0
        %707 = vmatmul.mubr.f32.gmra.mrb[0].mxu0 %v445
        %v708 = vpop.f32.mrb[0].mxu0
        %v709 = vadd.f32 %v480, %v708
        %v710 = vpop.f32.mrb[0].mxu0
        %711 = vmatprep.mubr.f32.mxu0 0.0
        %712 = vmatmul.mubr.f32.gmra.mrb[0].mxu0 %v446
        %v713 = vpop.f32.mrb[0].mxu0
        %v714 = vadd.f32 %v480, %v713
        %v715 = vpop.f32.mrb[0].mxu0
        %716 = vmatprep.mubr.f32.mxu0 0.0
        %717 = vmatmul.mubr.f32.gmra.mrb[0].mxu0 %v447
        %v718 = vpop.f32.mrb[0].mxu0
        %v719 = vadd.f32 %v480, %v718
        %v720 = vpop.f32.mrb[0].mxu0
        %721 = vmatprep.mubr.f32.mxu0 0.0
        %722 = vmatmul.mubr.f32.gmra.mrb[0].mxu0 %v448
        %v723 = vpop.f32.mrb[0].mxu0
        %v724 = vadd.f32 %v480, %v723
        %v725 = vpop.f32.mrb[0].mxu0
        %726 = vmatprep.mubr.f32.mxu0 0.0
        %727 = vmatmul.mubr.f32.gmra.mrb[0].mxu0 %v449
        %v728 = vpop.f32.mrb[0].mxu0
        %v729 = vadd.f32 %v480, %v728
        %v730 = vpop.f32.mrb[0].mxu0
        %731 = vmatprep.mubr.f32.mxu0 0.0
        %732 = vmatmul.mubr.f32.gmra.mrb[0].mxu0 %v450
        %v733 = vpop.f32.mrb[0].mxu0
        %v734 = vadd.f32 %v480, %v733
        %v735 = vpop.f32.mrb[0].mxu0
        %736 = vmatprep.mubr.f32.mxu0 0.0
        %737 = vmatmul.mubr.f32.gmra.mrb[0].mxu0 %v457
        %v738 = vpop.f32.mrb[0].mxu0
        %v739 = vadd.f32 %v480, %v738
        %v740 = vpop.f32.mrb[0].mxu0
        %741 = vmatprep.mubr.f32.mxu0 0.0
        %742 = vmatmul.mubr.f32.gmra.mrb[0].mxu0 %v458
        %v743 = vpop.f32.mrb[0].mxu0
        %v744 = vadd.f32 %v480, %v743
        %v745 = vpop.f32.mrb[0].mxu0
        %746 = vdwg.mxu0
        %v747 = vxor.u32 %v549, 2147483648
        %v748 = vxor.u32 %v554, 2147483648
        %v749 = vxor.u32 %v559, 2147483648
        %v750 = vxor.u32 %v564, 2147483648
        %v751 = vxor.u32 %v569, 2147483648
        %v752 = vxor.u32 %v574, 2147483648
        %v753 = vxor.u32 %v579, 2147483648
        %v754 = vxor.u32 %v584, 2147483648
        %v755 = vxor.u32 %v589, 2147483648
        %v756 = vxor.u32 %v594, 2147483648
        %v757 = vxor.u32 %v599, 2147483648
        %v758 = vxor.u32 %v604, 2147483648
        %v759 = vxor.u32 %v609, 2147483648
        %v760 = vxor.u32 %v614, 2147483648
        %v761 = vxor.u32 %v619, 2147483648
        %v762 = vxor.u32 %v624, 2147483648
        %v763 = vxor.u32 %v629, 2147483648
        %v764 = vxor.u32 %v634, 2147483648
        %v765 = vxor.u32 %v639, 2147483648
        %v766 = vxor.u32 %v644, 2147483648
        %v767 = vxor.u32 %v649, 2147483648
        %v768 = vxor.u32 %v654, 2147483648
        %v769 = vxor.u32 %v659, 2147483648
        %v770 = vxor.u32 %v664, 2147483648
        %v771 = vxor.u32 %v669, 2147483648
        %v772 = vxor.u32 %v674, 2147483648
        %v773 = vxor.u32 %v679, 2147483648
        %v774 = vxor.u32 %v684, 2147483648
        %v775 = vxor.u32 %v689, 2147483648
        %v776 = vxor.u32 %v694, 2147483648
        %v777 = vxor.u32 %v699, 2147483648
        %v778 = vxor.u32 %v704, 2147483648
        %v779 = vxor.u32 %v709, 2147483648
        %v780 = vxor.u32 %v714, 2147483648
        %v781 = vxor.u32 %v719, 2147483648
        %v782 = vxor.u32 %v724, 2147483648
        %v783 = vxor.u32 %v729, 2147483648
        %v784 = vxor.u32 %v734, 2147483648
        %v785 = vxor.u32 %v739, 2147483648
        %v786 = vxor.u32 %v744, 2147483648
        %v787 = vmul.f32 %v747, 1.442695
        %v788 = vpow.pop %v787
        %v789 = vmul.f32 %v748, 1.442695
        %v790 = vpow.pop %v789
        %v791 = vmul.f32 %v749, 1.442695
        %v792 = vpow.pop %v791
        %v793 = vmul.f32 %v750, 1.442695
        %v794 = vpow.pop %v793
        %v795 = vmul.f32 %v751, 1.442695
        %v796 = vpow.pop %v795
        %v797 = vmul.f32 %v752, 1.442695
        %v798 = vpow.pop %v797
        %v799 = vmul.f32 %v753, 1.442695
        %v800 = vpow.pop %v799
        %v801 = vmul.f32 %v754, 1.442695
        %v802 = vpow.pop %v801
        %v803 = vmul.f32 %v755, 1.442695
        %v804 = vpow.pop %v803
        %v805 = vmul.f32 %v756, 1.442695
        %v806 = vpow.pop %v805
        %v807 = vmul.f32 %v757, 1.442695
        %v808 = vpow.pop %v807
        %v809 = vmul.f32 %v758, 1.442695
        %v810 = vpow.pop %v809
        %v811 = vmul.f32 %v759, 1.442695
        %v812 = vpow.pop %v811
        %v813 = vmul.f32 %v760, 1.442695
        %v814 = vpow.pop %v813
        %v815 = vmul.f32 %v761, 1.442695
        %v816 = vpow.pop %v815
        %v817 = vmul.f32 %v762, 1.442695
        %v818 = vpow.pop %v817
        %v819 = vmul.f32 %v763, 1.442695
        %v820 = vpow.pop %v819
        %v821 = vmul.f32 %v764, 1.442695
        %v822 = vpow.pop %v821
        %v823 = vmul.f32 %v765, 1.442695
        %v824 = vpow.pop %v823
        %v825 = vmul.f32 %v766, 1.442695
        %v826 = vpow.pop %v825
        %v827 = vmul.f32 %v767, 1.442695
        %v828 = vpow.pop %v827
        %v829 = vmul.f32 %v768, 1.442695
        %v830 = vpow.pop %v829
        %v831 = vmul.f32 %v769, 1.442695
        %v832 = vpow.pop %v831
        %v833 = vmul.f32 %v770, 1.442695
        %v834 = vpow.pop %v833
        %v835 = vmul.f32 %v771, 1.442695
        %v836 = vpow.pop %v835
        %v837 = vmul.f32 %v772, 1.442695
        %v838 = vpow.pop %v837
        %v839 = vmul.f32 %v773, 1.442695
        %v840 = vpow.pop %v839
        %v841 = vmul.f32 %v774, 1.442695
        %v842 = vpow.pop %v841
        %v843 = vmul.f32 %v775, 1.442695
        %v844 = vpow.pop %v843
        %v845 = vmul.f32 %v776, 1.442695
        %v846 = vpow.pop %v845
        %v847 = vmul.f32 %v777, 1.442695
        %v848 = vpow.pop %v847
        %v849 = vmul.f32 %v778, 1.442695
        %v850 = vpow.pop %v849
        %v851 = vmul.f32 %v779, 1.442695
        %v852 = vpow.pop %v851
        %v853 = vmul.f32 %v780, 1.442695
        %v854 = vpow.pop %v853
        %v855 = vmul.f32 %v781, 1.442695
        %v856 = vpow.pop %v855
        %v857 = vmul.f32 %v782, 1.442695
        %v858 = vpow.pop %v857
        %v859 = vmul.f32 %v783, 1.442695
        %v860 = vpow.pop %v859
        %v861 = vmul.f32 %v784, 1.442695
        %v862 = vpow.pop %v861
        %v863 = vmul.f32 %v785, 1.442695
        %v864 = vpow.pop %v863
        %v865 = vmul.f32 %v786, 1.442695
        %v866 = vpow.pop %v865
        %v867 = vadd.f32 %v788, 1.0
        %v868 = vadd.f32 %v790, 1.0
        %v869 = vadd.f32 %v792, 1.0
        %v870 = vadd.f32 %v794, 1.0
        %v871 = vadd.f32 %v796, 1.0
        %v872 = vadd.f32 %v798, 1.0
        %v873 = vadd.f32 %v800, 1.0
        %v874 = vadd.f32 %v802, 1.0
        %v875 = vadd.f32 %v804, 1.0
        %v876 = vadd.f32 %v806, 1.0
        %v877 = vadd.f32 %v808, 1.0
        %v878 = vadd.f32 %v810, 1.0
        %v879 = vadd.f32 %v812, 1.0
        %v880 = vadd.f32 %v814, 1.0
        %v881 = vadd.f32 %v816, 1.0
        %v882 = vadd.f32 %v818, 1.0
        %v883 = vadd.f32 %v820, 1.0
        %v884 = vadd.f32 %v822, 1.0
        %v885 = vadd.f32 %v824, 1.0
        %v886 = vadd.f32 %v826, 1.0
        %v887 = vadd.f32 %v828, 1.0
        %v888 = vadd.f32 %v830, 1.0
        %v889 = vadd.f32 %v832, 1.0
        %v890 = vadd.f32 %v834, 1.0
        %v891 = vadd.f32 %v836, 1.0
        %v892 = vadd.f32 %v838, 1.0
        %v893 = vadd.f32 %v840, 1.0
        %v894 = vadd.f32 %v842, 1.0
        %v895 = vadd.f32 %v844, 1.0
        %v896 = vadd.f32 %v846, 1.0
        %v897 = vadd.f32 %v848, 1.0
        %v898 = vadd.f32 %v850, 1.0
        %v899 = vadd.f32 %v852, 1.0
        %v900 = vadd.f32 %v854, 1.0
        %v901 = vadd.f32 %v856, 1.0
        %v902 = vadd.f32 %v858, 1.0
        %v903 = vadd.f32 %v860, 1.0
        %v904 = vadd.f32 %v862, 1.0
        %v905 = vadd.f32 %v864, 1.0
        %v906 = vadd.f32 %v866, 1.0
        %v907 = vrcp.pop %v867
        %v908 = vmul.f32 1.0, %v907
        %v909 = vrcp.pop %v868
        %v910 = vmul.f32 1.0, %v909
        %v911 = vrcp.pop %v869
        %v912 = vmul.f32 1.0, %v911
        %v913 = vrcp.pop %v870
        %v914 = vmul.f32 1.0, %v913
        %v915 = vrcp.pop %v871
        %v916 = vmul.f32 1.0, %v915
        %v917 = vrcp.pop %v872
        %v918 = vmul.f32 1.0, %v917
        %v919 = vrcp.pop %v873
        %v920 = vmul.f32 1.0, %v919
        %v921 = vrcp.pop %v874
        %v922 = vmul.f32 1.0, %v921
        %v923 = vrcp.pop %v875
        %v924 = vmul.f32 1.0, %v923
        %v925 = vrcp.pop %v876
        %v926 = vmul.f32 1.0, %v925
        %v927 = vrcp.pop %v877
        %v928 = vmul.f32 1.0, %v927
        %v929 = vrcp.pop %v878
        %v930 = vmul.f32 1.0, %v929
        %v931 = vrcp.pop %v879
        %v932 = vmul.f32 1.0, %v931
        %v933 = vrcp.pop %v880
        %v934 = vmul.f32 1.0, %v933
        %v935 = vrcp.pop %v881
        %v936 = vmul.f32 1.0, %v935
        %v937 = vrcp.pop %v882
        %v938 = vmul.f32 1.0, %v937
        %v939 = vrcp.pop %v883
        %v940 = vmul.f32 1.0, %v939
        %v941 = vrcp.pop %v884
        %v942 = vmul.f32 1.0, %v941
        %v943 = vrcp.pop %v885
        %v944 = vmul.f32 1.0, %v943
        %v945 = vrcp.pop %v886
        %v946 = vmul.f32 1.0, %v945
        %v947 = vrcp.pop %v887
        %v948 = vmul.f32 1.0, %v947
        %v949 = vrcp.pop %v888
        %v950 = vmul.f32 1.0, %v949
        %v951 = vrcp.pop %v889
        %v952 = vmul.f32 1.0, %v951
        %v953 = vrcp.pop %v890
        %v954 = vmul.f32 1.0, %v953
        %v955 = vrcp.pop %v891
        %v956 = vmul.f32 1.0, %v955
        %v957 = vrcp.pop %v892
        %v958 = vmul.f32 1.0, %v957
        %v959 = vrcp.pop %v893
        %v960 = vmul.f32 1.0, %v959
        %v961 = vrcp.pop %v894
        %v962 = vmul.f32 1.0, %v961
        %v963 = vrcp.pop %v895
        %v964 = vmul.f32 1.0, %v963
        %v965 = vrcp.pop %v896
        %v966 = vmul.f32 1.0, %v965
        %v967 = vrcp.pop %v897
        %v968 = vmul.f32 1.0, %v967
        %v969 = vrcp.pop %v898
        %v970 = vmul.f32 1.0, %v969
        %v971 = vrcp.pop %v899
        %v972 = vmul.f32 1.0, %v971
        %v973 = vrcp.pop %v900
        %v974 = vmul.f32 1.0, %v973
        %v975 = vrcp.pop %v901
        %v976 = vmul.f32 1.0, %v975
        %v977 = vrcp.pop %v902
        %v978 = vmul.f32 1.0, %v977
        %v979 = vrcp.pop %v903
        %v980 = vmul.f32 1.0, %v979
        %v981 = vrcp.pop %v904
        %v982 = vmul.f32 1.0, %v981
        %v983 = vrcp.pop %v905
        %v984 = vmul.f32 1.0, %v983
        %v985 = vrcp.pop %v906
        %v986 = vmul.f32 1.0, %v985
        %v987 = vmul.f32 %v549, %v908
        %v988 = vmul.f32 %v554, %v910
        %v989 = vmul.f32 %v559, %v912
        %v990 = vmul.f32 %v564, %v914
        %v991 = vmul.f32 %v569, %v916
        %v992 = vmul.f32 %v574, %v918
        %v993 = vmul.f32 %v579, %v920
        %v994 = vmul.f32 %v584, %v922
        %v995 = vmul.f32 %v589, %v924
        %v996 = vmul.f32 %v594, %v926
        %v997 = vmul.f32 %v599, %v928
        %v998 = vmul.f32 %v604, %v930
        %v999 = vmul.f32 %v609, %v932
        %v1000 = vmul.f32 %v614, %v934
        %v1001 = vmul.f32 %v619, %v936
        %v1002 = vmul.f32 %v624, %v938
        %v1003 = vmul.f32 %v629, %v940
        %v1004 = vmul.f32 %v634, %v942
        %v1005 = vmul.f32 %v639, %v944
        %v1006 = vmul.f32 %v644, %v946
        %v1007 = vmul.f32 %v649, %v948
        %v1008 = vmul.f32 %v654, %v950
        %v1009 = vmul.f32 %v659, %v952
        %v1010 = vmul.f32 %v664, %v954
        %v1011 = vmul.f32 %v669, %v956
        %v1012 = vmul.f32 %v674, %v958
        %v1013 = vmul.f32 %v679, %v960
        %v1014 = vmul.f32 %v684, %v962
        %v1015 = vmul.f32 %v689, %v964
        %v1016 = vmul.f32 %v694, %v966
        %v1017 = vmul.f32 %v699, %v968
        %v1018 = vmul.f32 %v704, %v970
        %v1019 = vmul.f32 %v709, %v972
        %v1020 = vmul.f32 %v714, %v974
        %v1021 = vmul.f32 %v719, %v976
        %v1022 = vmul.f32 %v724, %v978
        %v1023 = vmul.f32 %v729, %v980
        %v1024 = vmul.f32 %v734, %v982
        %v1025 = vmul.f32 %v739, %v984
        %v1026 = vmul.f32 %v744, %v986
        %vm1067 = vcmask 1040384
        %v1068 = vrot.slane %v987, 7
        %v1069 = vrot.slane %v988, 7
        %v1070 = vsel %vm1067, %v1068, %v1069
        %v1071 = vrot.slane %v989, 7
        %v1072 = vrot.slane %v990, 7
        %v1073 = vsel %vm1067, %v1071, %v1072
        %v1074 = vrot.slane %v991, 7
        %v1075 = vrot.slane %v992, 7
        %v1076 = vsel %vm1067, %v1074, %v1075
        %v1077 = vrot.slane %v993, 7
        %v1078 = vrot.slane %v994, 7
        %v1079 = vsel %vm1067, %v1077, %v1078
        %v1080 = vrot.slane %v995, 7
        %v1081 = vrot.slane %v996, 7
        %v1082 = vsel %vm1067, %v1080, %v1081
        %v1083 = vrot.slane %v997, 7
        %v1084 = vrot.slane %v998, 7
        %v1085 = vsel %vm1067, %v1083, %v1084
        %v1086 = vrot.slane %v999, 7
        %v1087 = vrot.slane %v1000, 7
        %v1088 = vsel %vm1067, %v1086, %v1087
        %v1089 = vrot.slane %v1001, 7
        %v1090 = vrot.slane %v1002, 7
        %v1091 = vsel %vm1067, %v1089, %v1090
        %v1092 = vrot.slane %v1003, 7
        %v1093 = vrot.slane %v1004, 7
        %v1094 = vsel %vm1067, %v1092, %v1093
        %v1095 = vrot.slane %v1005, 7
        %v1096 = vrot.slane %v1006, 7
        %v1097 = vsel %vm1067, %v1095, %v1096
        %v1098 = vrot.slane %v1007, 7
        %v1099 = vrot.slane %v1008, 7
        %v1100 = vsel %vm1067, %v1098, %v1099
        %v1101 = vrot.slane %v1009, 7
        %v1102 = vrot.slane %v1010, 7
        %v1103 = vsel %vm1067, %v1101, %v1102
        %v1104 = vrot.slane %v1011, 7
        %v1105 = vrot.slane %v1012, 7
        %v1106 = vsel %vm1067, %v1104, %v1105
        %v1107 = vrot.slane %v1013, 7
        %v1108 = vrot.slane %v1014, 7
        %v1109 = vsel %vm1067, %v1107, %v1108
        %v1110 = vrot.slane %v1015, 7
        %v1111 = vrot.slane %v1016, 7
        %v1112 = vsel %vm1067, %v1110, %v1111
        %v1113 = vrot.slane %v1017, 7
        %v1114 = vrot.slane %v1018, 7
        %v1115 = vsel %vm1067, %v1113, %v1114
        %v1116 = vrot.slane %v1019, 7
        %v1117 = vrot.slane %v1020, 7
        %v1118 = vsel %vm1067, %v1116, %v1117
        %v1119 = vrot.slane %v1021, 7
        %v1120 = vrot.slane %v1022, 7
        %v1121 = vsel %vm1067, %v1119, %v1120
        %v1122 = vrot.slane %v1023, 7
        %v1123 = vrot.slane %v1024, 7
        %v1124 = vsel %vm1067, %v1122, %v1123
        %v1125 = vrot.slane %v1025, 7
        %v1126 = vrot.slane %v1026, 7
        %v1127 = vsel %vm1067, %v1125, %v1126
        %v1168 = vsel %vm1067, 0.0, %v1068
        %v1169 = vsel %vm1067, 0.0, %v1071
        %v1170 = vsel %vm1067, 0.0, %v1074
        %v1171 = vsel %vm1067, 0.0, %v1077
        %v1172 = vsel %vm1067, 0.0, %v1080
        %v1173 = vsel %vm1067, 0.0, %v1083
        %v1174 = vsel %vm1067, 0.0, %v1086
        %v1175 = vsel %vm1067, 0.0, %v1089
        %v1176 = vsel %vm1067, 0.0, %v1092
        %v1177 = vsel %vm1067, 0.0, %v1095
        %v1178 = vsel %vm1067, 0.0, %v1098
        %v1179 = vsel %vm1067, 0.0, %v1101
        %v1180 = vsel %vm1067, 0.0, %v1104
        %v1181 = vsel %vm1067, 0.0, %v1107
        %v1182 = vsel %vm1067, 0.0, %v1110
        %v1183 = vsel %vm1067, 0.0, %v1113
        %v1184 = vsel %vm1067, 0.0, %v1116
        %v1185 = vsel %vm1067, 0.0, %v1119
        %v1186 = vsel %vm1067, 0.0, %v1122
        %v1187 = vsel %vm1067, 0.0, %v1125
        %vm1188 = vcmask 1046528
        %v1189 = vrot.slane %v987, 1
        %v1190 = vrot.slane %v988, 1
        %v1191 = vsel %vm1188, %v1189, %v1190
        %v1192 = vrot.slane %v989, 1
        %v1193 = vrot.slane %v990, 1
        %v1194 = vsel %vm1188, %v1192, %v1193
        %v1195 = vrot.slane %v991, 1
        %v1196 = vrot.slane %v992, 1
        %v1197 = vsel %vm1188, %v1195, %v1196
        %v1198 = vrot.slane %v993, 1
        %v1199 = vrot.slane %v994, 1
        %v1200 = vsel %vm1188, %v1198, %v1199
        %v1201 = vrot.slane %v995, 1
        %v1202 = vrot.slane %v996, 1
        %v1203 = vsel %vm1188, %v1201, %v1202
        %v1204 = vrot.slane %v997, 1
        %v1205 = vrot.slane %v998, 1
        %v1206 = vsel %vm1188, %v1204, %v1205
        %v1207 = vrot.slane %v999, 1
        %v1208 = vrot.slane %v1000, 1
        %v1209 = vsel %vm1188, %v1207, %v1208
        %v1210 = vrot.slane %v1001, 1
        %v1211 = vrot.slane %v1002, 1
        %v1212 = vsel %vm1188, %v1210, %v1211
        %v1213 = vrot.slane %v1003, 1
        %v1214 = vrot.slane %v1004, 1
        %v1215 = vsel %vm1188, %v1213, %v1214
        %v1216 = vrot.slane %v1005, 1
        %v1217 = vrot.slane %v1006, 1
        %v1218 = vsel %vm1188, %v1216, %v1217
        %v1219 = vrot.slane %v1007, 1
        %v1220 = vrot.slane %v1008, 1
        %v1221 = vsel %vm1188, %v1219, %v1220
        %v1222 = vrot.slane %v1009, 1
        %v1223 = vrot.slane %v1010, 1
        %v1224 = vsel %vm1188, %v1222, %v1223
        %v1225 = vrot.slane %v1011, 1
        %v1226 = vrot.slane %v1012, 1
        %v1227 = vsel %vm1188, %v1225, %v1226
        %v1228 = vrot.slane %v1013, 1
        %v1229 = vrot.slane %v1014, 1
        %v1230 = vsel %vm1188, %v1228, %v1229
        %v1231 = vrot.slane %v1015, 1
        %v1232 = vrot.slane %v1016, 1
        %v1233 = vsel %vm1188, %v1231, %v1232
        %v1234 = vrot.slane %v1017, 1
        %v1235 = vrot.slane %v1018, 1
        %v1236 = vsel %vm1188, %v1234, %v1235
        %v1237 = vrot.slane %v1019, 1
        %v1238 = vrot.slane %v1020, 1
        %v1239 = vsel %vm1188, %v1237, %v1238
        %v1240 = vrot.slane %v1021, 1
        %v1241 = vrot.slane %v1022, 1
        %v1242 = vsel %vm1188, %v1240, %v1241
        %v1243 = vrot.slane %v1023, 1
        %v1244 = vrot.slane %v1024, 1
        %v1245 = vsel %vm1188, %v1243, %v1244
        %v1246 = vrot.slane %v1025, 1
        %v1247 = vrot.slane %v1026, 1
        %v1248 = vsel %vm1188, %v1246, %v1247
        %v1289 = vsel %vm1188, %v1190, 0.0
        %v1290 = vsel %vm1188, %v1193, 0.0
        %v1291 = vsel %vm1188, %v1196, 0.0
        %v1292 = vsel %vm1188, %v1199, 0.0
        %v1293 = vsel %vm1188, %v1202, 0.0
        %v1294 = vsel %vm1188, %v1205, 0.0
        %v1295 = vsel %vm1188, %v1208, 0.0
        %v1296 = vsel %vm1188, %v1211, 0.0
        %v1297 = vsel %vm1188, %v1214, 0.0
        %v1298 = vsel %vm1188, %v1217, 0.0
        %v1299 = vsel %vm1188, %v1220, 0.0
        %v1300 = vsel %vm1188, %v1223, 0.0
        %v1301 = vsel %vm1188, %v1226, 0.0
        %v1302 = vsel %vm1188, %v1229, 0.0
        %v1303 = vsel %vm1188, %v1232, 0.0
        %v1304 = vsel %vm1188, %v1235, 0.0
        %v1305 = vsel %vm1188, %v1238, 0.0
        %v1306 = vsel %vm1188, %v1241, 0.0
        %v1307 = vsel %vm1188, %v1244, 0.0
        %v1308 = vsel %vm1188, %v1247, 0.0
        %1309 = vst [vmem:[#allocation2] sm:$0xff] %v1168
        %1310 = vst [vmem:[#allocation2 + $0x18] sm:$0xff] %v1070
        %1311 = vst [vmem:[#allocation2 + $0x30] sm:$0xff] %v1169
        %1312 = vst [vmem:[#allocation2 + $0x48] sm:$0xff] %v1073
        %1313 = vst [vmem:[#allocation2 + $0x60] sm:$0xff] %v1170
        %1314 = vst [vmem:[#allocation2 + $0x78] sm:$0xff] %v1076
        %1315 = vst [vmem:[#allocation2 + $0x90] sm:$0xff] %v1171
        %1316 = vst [vmem:[#allocation2 + $0xa8] sm:$0xff] %v1079
        %1317 = vst [vmem:[#allocation2 + $0xc0] sm:$0xff] %v1172
        %1318 = vst [vmem:[#allocation2 + $0xd8] sm:$0xff] %v1082
        %1319 = vst [vmem:[#allocation2 + $0xf0] sm:$0xff] %v1173
        %1320 = vst [vmem:[#allocation2 + $0x108] sm:$0xff] %v1085
        %1321 = vst [vmem:[#allocation2 + $0x120] sm:$0xff] %v1174
        %1322 = vst [vmem:[#allocation2 + $0x138] sm:$0xff] %v1088
        %1323 = vst [vmem:[#allocation2 + $0x150] sm:$0xff] %v1175
        %1324 = vst [vmem:[#allocation2 + $0x168] sm:$0xff] %v1091
        %1325 = vst [vmem:[#allocation2 + $0x180] sm:$0xff] %v1176
        %1326 = vst [vmem:[#allocation2 + $0x198] sm:$0xff] %v1094
        %1327 = vst [vmem:[#allocation2 + $0x1b0] sm:$0xff] %v1177
        %1328 = vst [vmem:[#allocation2 + $0x1c8] sm:$0xff] %v1097
        %1329 = vst [vmem:[#allocation2 + $0x1e0] sm:$0xff] %v1178
        %1330 = vst [vmem:[#allocation2 + $0x1f8] sm:$0xff] %v1100
        %1331 = vst [vmem:[#allocation2 + $0x210] sm:$0xff] %v1179
        %1332 = vst [vmem:[#allocation2 + $0x228] sm:$0xff] %v1103
        %1333 = vst [vmem:[#allocation2 + $0x240] sm:$0xff] %v1180
        %1334 = vst [vmem:[#allocation2 + $0x258] sm:$0xff] %v1106
        %1335 = vst [vmem:[#allocation2 + $0x270] sm:$0xff] %v1181
        %1336 = vst [vmem:[#allocation2 + $0x288] sm:$0xff] %v1109
        %1337 = vst [vmem:[#allocation2 + $0x2a0] sm:$0xff] %v1182
        %1338 = vst [vmem:[#allocation2 + $0x2b8] sm:$0xff] %v1112
        %1339 = vst [vmem:[#allocation2 + $0x2d0] sm:$0xff] %v1183
        %1340 = vst [vmem:[#allocation2 + $0x2e8] sm:$0xff] %v1115
        %1341 = vst [vmem:[#allocation2 + $0x300] sm:$0xff] %v1184
        %1342 = vst [vmem:[#allocation2 + $0x318] sm:$0xff] %v1118
        %1343 = vst [vmem:[#allocation2 + $0x330] sm:$0xff] %v1185
        %1344 = vst [vmem:[#allocation2 + $0x348] sm:$0xff] %v1121
        %1345 = vst [vmem:[#allocation2 + $0x360] sm:$0xff] %v1186
        %1346 = vst [vmem:[#allocation2 + $0x378] sm:$0xff] %v1124
        %1347 = vst [vmem:[#allocation2 + $0x390] sm:$0xff] %v1187
        %1348 = vst [vmem:[#allocation2 + $0x3a8] sm:$0xff] %v1127
        %1349 = vst [vmem:[#allocation2 + $0x8] sm:$0xff] %v987
        %1350 = vst [vmem:[#allocation2 + $0x20] sm:$0xff] %v988
        %1351 = vst [vmem:[#allocation2 + $0x38] sm:$0xff] %v989
        %1352 = vst [vmem:[#allocation2 + $0x50] sm:$0xff] %v990
        %1353 = vst [vmem:[#allocation2 + $0x68] sm:$0xff] %v991
        %1354 = vst [vmem:[#allocation2 + $0x80] sm:$0xff] %v992
        %1355 = vst [vmem:[#allocation2 + $0x98] sm:$0xff] %v993
        %1356 = vst [vmem:[#allocation2 + $0xb0] sm:$0xff] %v994
        %1357 = vst [vmem:[#allocation2 + $0xc8] sm:$0xff] %v995
        %1358 = vst [vmem:[#allocation2 + $0xe0] sm:$0xff] %v996
        %1359 = vst [vmem:[#allocation2 + $0xf8] sm:$0xff] %v997
        %1360 = vst [vmem:[#allocation2 + $0x110] sm:$0xff] %v998
        %1361 = vst [vmem:[#allocation2 + $0x128] sm:$0xff] %v999
        %1362 = vst [vmem:[#allocation2 + $0x140] sm:$0xff] %v1000
        %1363 = vst [vmem:[#allocation2 + $0x158] sm:$0xff] %v1001
        %1364 = vst [vmem:[#allocation2 + $0x170] sm:$0xff] %v1002
        %1365 = vst [vmem:[#allocation2 + $0x188] sm:$0xff] %v1003
        %1366 = vst [vmem:[#allocation2 + $0x1a0] sm:$0xff] %v1004
        %1367 = vst [vmem:[#allocation2 + $0x1b8] sm:$0xff] %v1005
        %1368 = vst [vmem:[#allocation2 + $0x1d0] sm:$0xff] %v1006
        %1369 = vst [vmem:[#allocation2 + $0x1e8] sm:$0xff] %v1007
        %1370 = vst [vmem:[#allocation2 + $0x200] sm:$0xff] %v1008
        %1371 = vst [vmem:[#allocation2 + $0x218] sm:$0xff] %v1009
        %1372 = vst [vmem:[#allocation2 + $0x230] sm:$0xff] %v1010
        %1373 = vst [vmem:[#allocation2 + $0x248] sm:$0xff] %v1011
        %1374 = vst [vmem:[#allocation2 + $0x260] sm:$0xff] %v1012
        %1375 = vst [vmem:[#allocation2 + $0x278] sm:$0xff] %v1013
        %1376 = vst [vmem:[#allocation2 + $0x290] sm:$0xff] %v1014
        %1377 = vst [vmem:[#allocation2 + $0x2a8] sm:$0xff] %v1015
        %1378 = vst [vmem:[#allocation2 + $0x2c0] sm:$0xff] %v1016
        %1379 = vst [vmem:[#allocation2 + $0x2d8] sm:$0xff] %v1017
        %1380 = vst [vmem:[#allocation2 + $0x2f0] sm:$0xff] %v1018
        %1381 = vst [vmem:[#allocation2 + $0x308] sm:$0xff] %v1019
        %1382 = vst [vmem:[#allocation2 + $0x320] sm:$0xff] %v1020
        %1383 = vst [vmem:[#allocation2 + $0x338] sm:$0xff] %v1021
        %1384 = vst [vmem:[#allocation2 + $0x350] sm:$0xff] %v1022
        %1385 = vst [vmem:[#allocation2 + $0x368] sm:$0xff] %v1023
        %1386 = vst [vmem:[#allocation2 + $0x380] sm:$0xff] %v1024
        %1387 = vst [vmem:[#allocation2 + $0x398] sm:$0xff] %v1025
        %1388 = vst [vmem:[#allocation2 + $0x3b0] sm:$0xff] %v1026
        %1389 = vst [vmem:[#allocation2 + $0x10] sm:$0xff] %v1191
        %1390 = vst [vmem:[#allocation2 + $0x28] sm:$0xff] %v1289
        %1391 = vst [vmem:[#allocation2 + $0x40] sm:$0xff] %v1194
        %1392 = vst [vmem:[#allocation2 + $0x58] sm:$0xff] %v1290
        %1393 = vst [vmem:[#allocation2 + $0x70] sm:$0xff] %v1197
        %1394 = vst [vmem:[#allocation2 + $0x88] sm:$0xff] %v1291
        %1395 = vst [vmem:[#allocation2 + $0xa0] sm:$0xff] %v1200
        %1396 = vst [vmem:[#allocation2 + $0xb8] sm:$0xff] %v1292
        %1397 = vst [vmem:[#allocation2 + $0xd0] sm:$0xff] %v1203
        %1398 = vst [vmem:[#allocation2 + $0xe8] sm:$0xff] %v1293
        %1399 = vst [vmem:[#allocation2 + $0x100] sm:$0xff] %v1206
        %1400 = vst [vmem:[#allocation2 + $0x118] sm:$0xff] %v1294
        %1401 = vst [vmem:[#allocation2 + $0x130] sm:$0xff] %v1209
        %1402 = vst [vmem:[#allocation2 + $0x148] sm:$0xff] %v1295
        %1403 = vst [vmem:[#allocation2 + $0x160] sm:$0xff] %v1212
        %1404 = vst [vmem:[#allocation2 + $0x178] sm:$0xff] %v1296
        %1405 = vst [vmem:[#allocation2 + $0x190] sm:$0xff] %v1215
        %1406 = vst [vmem:[#allocation2 + $0x1a8] sm:$0xff] %v1297
        %1407 = vst [vmem:[#allocation2 + $0x1c0] sm:$0xff] %v1218
        %1408 = vst [vmem:[#allocation2 + $0x1d8] sm:$0xff] %v1298
        %1409 = vst [vmem:[#allocation2 + $0x1f0] sm:$0xff] %v1221
        %1410 = vst [vmem:[#allocation2 + $0x208] sm:$0xff] %v1299
        %1411 = vst [vmem:[#allocation2 + $0x220] sm:$0xff] %v1224
        %1412 = vst [vmem:[#allocation2 + $0x238] sm:$0xff] %v1300
        %1413 = vst [vmem:[#allocation2 + $0x250] sm:$0xff] %v1227
        %1414 = vst [vmem:[#allocation2 + $0x268] sm:$0xff] %v1301
        %1415 = vst [vmem:[#allocation2 + $0x280] sm:$0xff] %v1230
        %1416 = vst [vmem:[#allocation2 + $0x298] sm:$0xff] %v1302
        %1417 = vst [vmem:[#allocation2 + $0x2b0] sm:$0xff] %v1233
        %1418 = vst [vmem:[#allocation2 + $0x2c8] sm:$0xff] %v1303
        %1419 = vst [vmem:[#allocation2 + $0x2e0] sm:$0xff] %v1236
        %1420 = vst [vmem:[#allocation2 + $0x2f8] sm:$0xff] %v1304
        %1421 = vst [vmem:[#allocation2 + $0x310] sm:$0xff] %v1239
        %1422 = vst [vmem:[#allocation2 + $0x328] sm:$0xff] %v1305
        %1423 = vst [vmem:[#allocation2 + $0x340] sm:$0xff] %v1242
        %1424 = vst [vmem:[#allocation2 + $0x358] sm:$0xff] %v1306
        %1425 = vst [vmem:[#allocation2 + $0x370] sm:$0xff] %v1245
        %1426 = vst [vmem:[#allocation2 + $0x388] sm:$0xff] %v1307
        %1427 = vst [vmem:[#allocation2 + $0x3a0] sm:$0xff] %v1248
        %1428 = vst [vmem:[#allocation2 + $0x3b8] sm:$0xff] %v1308
        %p1429 = scmp.eq.s32.totalorder %s32, 0
        // Predicated region
        $region61: #{tpu_custom_call.1} parent=43 // pred_check
          %p1430 = pneg %p1429
        $region62: #{tpu_custom_call.1} parent=43 // pred_check_branch
          %1432 = sbr.rel (%p1430) target = $region64
        $region63: #{tpu_custom_call.1} parent=43 // pred_region
          %1433 = vst [vmem:[#allocation2] sm:$0xff] 0.0
          %1434 = vst [vmem:[#allocation2 + $0x8] sm:$0xff] 0.0
          %1435 = vst [vmem:[#allocation2 + $0x10] sm:$0xff] 0.0
          %1436 = vst [vmem:[#allocation2 + $0x18] sm:$0xff] 0.0
          %1437 = vst [vmem:[#allocation2 + $0x20] sm:$0xff] 0.0
          %1438 = vst [vmem:[#allocation2 + $0x28] sm:$0xff] 0.0
          %1439 = vst [vmem:[#allocation2 + $0x1e0] sm:$0xff] 0.0
          %1440 = vst [vmem:[#allocation2 + $0x1e8] sm:$0xff] 0.0
          %1441 = vst [vmem:[#allocation2 + $0x1f0] sm:$0xff] 0.0
          %1442 = vst [vmem:[#allocation2 + $0x1f8] sm:$0xff] 0.0
          %1443 = vst [vmem:[#allocation2 + $0x200] sm:$0xff] 0.0
          %1444 = vst [vmem:[#allocation2 + $0x208] sm:$0xff] 0.0
        $region64: #{tpu_custom_call.1} parent=43 // pred_fallthru
          _
        %p1445 = scmp.eq.s32.totalorder %s32, 1
        // Predicated region
        $region65: #{tpu_custom_call.1} parent=43 // pred_check
          %p1446 = pneg %p1445
        $region66: #{tpu_custom_call.1} parent=43 // pred_check_branch
          %1448 = sbr.rel (%p1446) target = $region68
        $region67: #{tpu_custom_call.1} parent=43 // pred_region
          %s1449 = scalar_lea.vmem [#allocation2], 432
          %1450 = vst [vmem:[%s1449] sm:$0xff] 0.0
          %1451 = vst [vmem:[%s1449 + $0x8] sm:$0xff] 0.0
          %1452 = vst [vmem:[%s1449 + $0x10] sm:$0xff] 0.0
          %1453 = vst [vmem:[%s1449 + $0x18] sm:$0xff] 0.0
          %1454 = vst [vmem:[%s1449 + $0x20] sm:$0xff] 0.0
          %1455 = vst [vmem:[%s1449 + $0x28] sm:$0xff] 0.0
          %1456 = vst [vmem:[%s1449 + $0x1e0] sm:$0xff] 0.0
          %1457 = vst [vmem:[%s1449 + $0x1e8] sm:$0xff] 0.0
          %1458 = vst [vmem:[%s1449 + $0x1f0] sm:$0xff] 0.0
          %1459 = vst [vmem:[%s1449 + $0x1f8] sm:$0xff] 0.0
          %1460 = vst [vmem:[%s1449 + $0x200] sm:$0xff] 0.0
          %1461 = vst [vmem:[%s1449 + $0x208] sm:$0xff] 0.0
        $region68: #{tpu_custom_call.1} parent=43 // pred_fallthru
          _
        %v1462 = vld [vmem:[#allocation2] sm:$0xff]
        %v1463 = vld [vmem:[#allocation2 + $0x8] sm:$0xff]
        %v1464 = vld [vmem:[#allocation2 + $0x10] sm:$0xff]
        %v1465 = vld [vmem:[#allocation2 + $0x18] sm:$0xff]
        %v1466 = vld [vmem:[#allocation2 + $0x20] sm:$0xff]
        %v1467 = vld [vmem:[#allocation2 + $0x28] sm:$0xff]
        %v1468 = vld [vmem:[#allocation2 + $0x30] sm:$0xff]
        %v1469 = vld [vmem:[#allocation2 + $0x38] sm:$0xff]
        %v1470 = vld [vmem:[#allocation2 + $0x40] sm:$0xff]
        %v1471 = vld [vmem:[#allocation2 + $0x48] sm:$0xff]
        %v1472 = vld [vmem:[#allocation2 + $0x50] sm:$0xff]
        %v1473 = vld [vmem:[#allocation2 + $0x58] sm:$0xff]
        %v1474 = vld [vmem:[#allocation2 + $0x60] sm:$0xff]
        %v1475 = vld [vmem:[#allocation2 + $0x68] sm:$0xff]
        %v1476 = vld [vmem:[#allocation2 + $0x70] sm:$0xff]
        %v1477 = vld [vmem:[#allocation2 + $0x78] sm:$0xff]
        %v1478 = vld [vmem:[#allocation2 + $0x80] sm:$0xff]
        %v1479 = vld [vmem:[#allocation2 + $0x88] sm:$0xff]
        %v1480 = vld [vmem:[#allocation2 + $0x90] sm:$0xff]
        %v1481 = vld [vmem:[#allocation2 + $0x98] sm:$0xff]
        %v1482 = vld [vmem:[#allocation2 + $0xa0] sm:$0xff]
        %v1483 = vld [vmem:[#allocation2 + $0xa8] sm:$0xff]
        %v1484 = vld [vmem:[#allocation2 + $0xb0] sm:$0xff]
        %v1485 = vld [vmem:[#allocation2 + $0xb8] sm:$0xff]
        %v1486 = vld [vmem:[#allocation2 + $0xc0] sm:$0xff]
        %v1487 = vld [vmem:[#allocation2 + $0xc8] sm:$0xff]
        %v1488 = vld [vmem:[#allocation2 + $0xd0] sm:$0xff]
        %v1489 = vld [vmem:[#allocation2 + $0xd8] sm:$0xff]
        %v1490 = vld [vmem:[#allocation2 + $0xe0] sm:$0xff]
        %v1491 = vld [vmem:[#allocation2 + $0xe8] sm:$0xff]
        %v1492 = vld [vmem:[#allocation2 + $0xf0] sm:$0xff]
        %v1493 = vld [vmem:[#allocation2 + $0xf8] sm:$0xff]
        %v1494 = vld [vmem:[#allocation2 + $0x100] sm:$0xff]
        %v1495 = vld [vmem:[#allocation2 + $0x108] sm:$0xff]
        %v1496 = vld [vmem:[#allocation2 + $0x110] sm:$0xff]
        %v1497 = vld [vmem:[#allocation2 + $0x118] sm:$0xff]
        %v1498 = vld [vmem:[#allocation2 + $0x120] sm:$0xff]
        %v1499 = vld [vmem:[#allocation2 + $0x128] sm:$0xff]
        %v1500 = vld [vmem:[#allocation2 + $0x130] sm:$0xff]
        %v1501 = vld [vmem:[#allocation2 + $0x138] sm:$0xff]
        %v1502 = vld [vmem:[#allocation2 + $0x140] sm:$0xff]
        %v1503 = vld [vmem:[#allocation2 + $0x148] sm:$0xff]
        %v1504 = vld [vmem:[#allocation2 + $0x150] sm:$0xff]
        %v1505 = vld [vmem:[#allocation2 + $0x158] sm:$0xff]
        %v1506 = vld [vmem:[#allocation2 + $0x160] sm:$0xff]
        %v1507 = vld [vmem:[#allocation2 + $0x168] sm:$0xff]
        %v1508 = vld [vmem:[#allocation2 + $0x170] sm:$0xff]
        %v1509 = vld [vmem:[#allocation2 + $0x178] sm:$0xff]
        %v1510 = vld [vmem:[#allocation2 + $0x1e0] sm:$0xff]
        %v1511 = vld [vmem:[#allocation2 + $0x1e8] sm:$0xff]
        %v1512 = vld [vmem:[#allocation2 + $0x1f0] sm:$0xff]
        %v1513 = vld [vmem:[#allocation2 + $0x1f8] sm:$0xff]
        %v1514 = vld [vmem:[#allocation2 + $0x200] sm:$0xff]
        %v1515 = vld [vmem:[#allocation2 + $0x208] sm:$0xff]
        %v1516 = vld [vmem:[#allocation2 + $0x210] sm:$0xff]
        %v1517 = vld [vmem:[#allocation2 + $0x218] sm:$0xff]
        %v1518 = vld [vmem:[#allocation2 + $0x220] sm:$0xff]
        %v1519 = vld [vmem:[#allocation2 + $0x228] sm:$0xff]
        %v1520 = vld [vmem:[#allocation2 + $0x230] sm:$0xff]
        %v1521 = vld [vmem:[#allocation2 + $0x238] sm:$0xff]
        %v1522 = vld [vmem:[#allocation2 + $0x240] sm:$0xff]
        %v1523 = vld [vmem:[#allocation2 + $0x248] sm:$0xff]
        %v1524 = vld [vmem:[#allocation2 + $0x250] sm:$0xff]
        %v1525 = vld [vmem:[#allocation2 + $0x258] sm:$0xff]
        %v1526 = vld [vmem:[#allocation2 + $0x260] sm:$0xff]
        %v1527 = vld [vmem:[#allocation2 + $0x268] sm:$0xff]
        %v1528 = vld [vmem:[#allocation2 + $0x270] sm:$0xff]
        %v1529 = vld [vmem:[#allocation2 + $0x278] sm:$0xff]
        %v1530 = vld [vmem:[#allocation2 + $0x280] sm:$0xff]
        %v1531 = vld [vmem:[#allocation2 + $0x288] sm:$0xff]
        %v1532 = vld [vmem:[#allocation2 + $0x290] sm:$0xff]
        %v1533 = vld [vmem:[#allocation2 + $0x298] sm:$0xff]
        %v1534 = vld [vmem:[#allocation2 + $0x2a0] sm:$0xff]
        %v1535 = vld [vmem:[#allocation2 + $0x2a8] sm:$0xff]
        %v1536 = vld [vmem:[#allocation2 + $0x2b0] sm:$0xff]
        %v1537 = vld [vmem:[#allocation2 + $0x2b8] sm:$0xff]
        %v1538 = vld [vmem:[#allocation2 + $0x2c0] sm:$0xff]
        %v1539 = vld [vmem:[#allocation2 + $0x2c8] sm:$0xff]
        %v1540 = vld [vmem:[#allocation2 + $0x2d0] sm:$0xff]
        %v1541 = vld [vmem:[#allocation2 + $0x2d8] sm:$0xff]
        %v1542 = vld [vmem:[#allocation2 + $0x2e0] sm:$0xff]
        %v1543 = vld [vmem:[#allocation2 + $0x2e8] sm:$0xff]
        %v1544 = vld [vmem:[#allocation2 + $0x2f0] sm:$0xff]
        %v1545 = vld [vmem:[#allocation2 + $0x2f8] sm:$0xff]
        %v1546 = vld [vmem:[#allocation2 + $0x300] sm:$0xff]
        %v1547 = vld [vmem:[#allocation2 + $0x308] sm:$0xff]
        %v1548 = vld [vmem:[#allocation2 + $0x310] sm:$0xff]
        %v1549 = vld [vmem:[#allocation2 + $0x318] sm:$0xff]
        %v1550 = vld [vmem:[#allocation2 + $0x320] sm:$0xff]
        %v1551 = vld [vmem:[#allocation2 + $0x328] sm:$0xff]
        %v1552 = vld [vmem:[#allocation2 + $0x330] sm:$0xff]
        %v1553 = vld [vmem:[#allocation2 + $0x338] sm:$0xff]
        %v1554 = vld [vmem:[#allocation2 + $0x340] sm:$0xff]
        %v1555 = vld [vmem:[#allocation2 + $0x348] sm:$0xff]
        %v1556 = vld [vmem:[#allocation2 + $0x350] sm:$0xff]
        %v1557 = vld [vmem:[#allocation2 + $0x358] sm:$0xff]
        %v1558 = vld [vmem:[#allocation9] sm:$0xff]
        %v1559 = vld [vmem:[#allocation9 + $0x8] sm:$0xff]
        %v1560 = vld [vmem:[#allocation9 + $0x10] sm:$0xff]
        %v1561 = vld [vmem:[#allocation9 + $0x18] sm:$0xff]
        %v1562 = vld [vmem:[#allocation9 + $0x20] sm:$0xff]
        %v1563 = vld [vmem:[#allocation9 + $0x28] sm:$0xff]
        %v1564 = vld [vmem:[#allocation9 + $0x30] sm:$0xff]
        %v1565 = vld [vmem:[#allocation9 + $0x38] sm:$0xff]
        %v1566 = vld [vmem:[#allocation9 + $0x40] sm:$0xff]
        %v1567 = vld [vmem:[#allocation9 + $0x48] sm:$0xff]
        %v1568 = vld [vmem:[#allocation9 + $0x50] sm:$0xff]
        %v1569 = vld [vmem:[#allocation9 + $0x58] sm:$0xff]
        %v1570 = vld [vmem:[#allocation9 + $0x60] sm:$0xff]
        %v1571 = vld [vmem:[#allocation9 + $0x68] sm:$0xff]
        %v1572 = vld [vmem:[#allocation9 + $0x70] sm:$0xff]
        %v1573 = vld [vmem:[#allocation9 + $0x78] sm:$0xff]
        %v1574 = vld [vmem:[#allocation9 + $0x80] sm:$0xff]
        %v1575 = vld [vmem:[#allocation9 + $0x88] sm:$0xff]
        %v1576 = vld [vmem:[#allocation9 + $0x90] sm:$0xff]
        %v1577 = vld [vmem:[#allocation9 + $0x98] sm:$0xff]
        %v1578 = vld [vmem:[#allocation9 + $0xa0] sm:$0xff]
        %v1579 = vld [vmem:[#allocation9 + $0xa8] sm:$0xff]
        %v1580 = vld [vmem:[#allocation9 + $0xb0] sm:$0xff]
        %v1581 = vld [vmem:[#allocation9 + $0xb8] sm:$0xff]
        %v1582 = vld [vmem:[#allocation9 + $0xc0] sm:$0xff]
        %v1583 = vld [vmem:[#allocation9 + $0xc8] sm:$0xff]
        %v1584 = vld [vmem:[#allocation9 + $0xd0] sm:$0xff]
        %v1585 = vld [vmem:[#allocation9 + $0xd8] sm:$0xff]
        %v1586 = vld [vmem:[#allocation9 + $0xe0] sm:$0xff]
        %v1587 = vld [vmem:[#allocation9 + $0xe8] sm:$0xff]
        %v1588 = vld [vmem:[#allocation9 + $0xf0] sm:$0xff]
        %v1589 = vld [vmem:[#allocation9 + $0xf8] sm:$0xff]
        %v1590 = vld [vmem:[#allocation9 + $0x100] sm:$0xff]
        %v1591 = vld [vmem:[#allocation9 + $0x108] sm:$0xff]
        %v1592 = vld [vmem:[#allocation9 + $0x110] sm:$0xff]
        %v1593 = vld [vmem:[#allocation9 + $0x118] sm:$0xff]
        %v1594 = vld [vmem:[#allocation9 + $0x120] sm:$0xff]
        %v1595 = vld [vmem:[#allocation9 + $0x128] sm:$0xff]
        %v1596 = vld [vmem:[#allocation9 + $0x130] sm:$0xff]
        %v1597 = vld [vmem:[#allocation9 + $0x138] sm:$0xff]
        %v1598 = vld [vmem:[#allocation9 + $0x140] sm:$0xff]
        %v1599 = vld [vmem:[#allocation9 + $0x148] sm:$0xff]
        %v1600 = vld [vmem:[#allocation9 + $0x150] sm:$0xff]
        %v1601 = vld [vmem:[#allocation9 + $0x158] sm:$0xff]
        %v1602 = vld [vmem:[#allocation9 + $0x160] sm:$0xff]
        %v1603 = vld [vmem:[#allocation9 + $0x168] sm:$0xff]
        %v1604 = vld [vmem:[#allocation9 + $0x170] sm:$0xff]
        %v1605 = vld [vmem:[#allocation9 + $0x178] sm:$0xff]
        %s1606 = scalar_lea.vmem [#allocation2], 48
        %v1607 = vld [vmem:[%s1606] sm:$0xff]
        %v1608 = vld [vmem:[%s1606 + $0x8] sm:$0xff]
        %v1609 = vld [vmem:[%s1606 + $0x10] sm:$0xff]
        %v1610 = vld [vmem:[%s1606 + $0x18] sm:$0xff]
        %v1611 = vld [vmem:[%s1606 + $0x20] sm:$0xff]
        %v1612 = vld [vmem:[%s1606 + $0x28] sm:$0xff]
        %v1613 = vld [vmem:[%s1606 + $0x30] sm:$0xff]
        %v1614 = vld [vmem:[%s1606 + $0x38] sm:$0xff]
        %v1615 = vld [vmem:[%s1606 + $0x40] sm:$0xff]
        %v1616 = vld [vmem:[%s1606 + $0x48] sm:$0xff]
        %v1617 = vld [vmem:[%s1606 + $0x50] sm:$0xff]
        %v1618 = vld [vmem:[%s1606 + $0x58] sm:$0xff]
        %v1619 = vld [vmem:[%s1606 + $0x60] sm:$0xff]
        %v1620 = vld [vmem:[%s1606 + $0x68] sm:$0xff]
        %v1621 = vld [vmem:[%s1606 + $0x70] sm:$0xff]
        %v1622 = vld [vmem:[%s1606 + $0x78] sm:$0xff]
        %v1623 = vld [vmem:[%s1606 + $0x80] sm:$0xff]
        %v1624 = vld [vmem:[%s1606 + $0x88] sm:$0xff]
        %v1625 = vld [vmem:[%s1606 + $0x90] sm:$0xff]
        %v1626 = vld [vmem:[%s1606 + $0x98] sm:$0xff]
        %v1627 = vld [vmem:[%s1606 + $0xa0] sm:$0xff]
        %v1628 = vld [vmem:[%s1606 + $0xa8] sm:$0xff]
        %v1629 = vld [vmem:[%s1606 + $0xb0] sm:$0xff]
        %v1630 = vld [vmem:[%s1606 + $0xb8] sm:$0xff]
        %v1631 = vld [vmem:[%s1606 + $0xc0] sm:$0xff]
        %v1632 = vld [vmem:[%s1606 + $0xc8] sm:$0xff]
        %v1633 = vld [vmem:[%s1606 + $0xd0] sm:$0xff]
        %v1634 = vld [vmem:[%s1606 + $0xd8] sm:$0xff]
        %v1635 = vld [vmem:[%s1606 + $0xe0] sm:$0xff]
        %v1636 = vld [vmem:[%s1606 + $0xe8] sm:$0xff]
        %v1637 = vld [vmem:[%s1606 + $0xf0] sm:$0xff]
        %v1638 = vld [vmem:[%s1606 + $0xf8] sm:$0xff]
        %v1639 = vld [vmem:[%s1606 + $0x100] sm:$0xff]
        %v1640 = vld [vmem:[%s1606 + $0x108] sm:$0xff]
        %v1641 = vld [vmem:[%s1606 + $0x110] sm:$0xff]
        %v1642 = vld [vmem:[%s1606 + $0x118] sm:$0xff]
        %v1643 = vld [vmem:[%s1606 + $0x120] sm:$0xff]
        %v1644 = vld [vmem:[%s1606 + $0x128] sm:$0xff]
        %v1645 = vld [vmem:[%s1606 + $0x130] sm:$0xff]
        %v1646 = vld [vmem:[%s1606 + $0x138] sm:$0xff]
        %v1647 = vld [vmem:[%s1606 + $0x140] sm:$0xff]
        %v1648 = vld [vmem:[%s1606 + $0x148] sm:$0xff]
        %v1649 = vld [vmem:[%s1606 + $0x150] sm:$0xff]
        %v1650 = vld [vmem:[%s1606 + $0x158] sm:$0xff]
        %v1651 = vld [vmem:[%s1606 + $0x160] sm:$0xff]
        %v1652 = vld [vmem:[%s1606 + $0x168] sm:$0xff]
        %v1653 = vld [vmem:[%s1606 + $0x170] sm:$0xff]
        %v1654 = vld [vmem:[%s1606 + $0x178] sm:$0xff]
        %v1655 = vld [vmem:[%s1606 + $0x1e0] sm:$0xff]
        %v1656 = vld [vmem:[%s1606 + $0x1e8] sm:$0xff]
        %v1657 = vld [vmem:[%s1606 + $0x1f0] sm:$0xff]
        %v1658 = vld [vmem:[%s1606 + $0x1f8] sm:$0xff]
        %v1659 = vld [vmem:[%s1606 + $0x200] sm:$0xff]
        %v1660 = vld [vmem:[%s1606 + $0x208] sm:$0xff]
        %v1661 = vld [vmem:[%s1606 + $0x210] sm:$0xff]
        %v1662 = vld [vmem:[%s1606 + $0x218] sm:$0xff]
        %v1663 = vld [vmem:[%s1606 + $0x220] sm:$0xff]
        %v1664 = vld [vmem:[%s1606 + $0x228] sm:$0xff]
        %v1665 = vld [vmem:[%s1606 + $0x230] sm:$0xff]
        %v1666 = vld [vmem:[%s1606 + $0x238] sm:$0xff]
        %v1667 = vld [vmem:[%s1606 + $0x240] sm:$0xff]
        %v1668 = vld [vmem:[%s1606 + $0x248] sm:$0xff]
        %v1669 = vld [vmem:[%s1606 + $0x250] sm:$0xff]
        %v1670 = vld [vmem:[%s1606 + $0x258] sm:$0xff]
        %v1671 = vld [vmem:[%s1606 + $0x260] sm:$0xff]
        %v1672 = vld [vmem:[%s1606 + $0x268] sm:$0xff]
        %v1673 = vld [vmem:[%s1606 + $0x270] sm:$0xff]
        %v1674 = vld [vmem:[%s1606 + $0x278] sm:$0xff]
        %v1675 = vld [vmem:[%s1606 + $0x280] sm:$0xff]
        %v1676 = vld [vmem:[%s1606 + $0x288] sm:$0xff]
        %v1677 = vld [vmem:[%s1606 + $0x290] sm:$0xff]
        %v1678 = vld [vmem:[%s1606 + $0x298] sm:$0xff]
        %v1679 = vld [vmem:[%s1606 + $0x2a0] sm:$0xff]
        %v1680 = vld [vmem:[%s1606 + $0x2a8] sm:$0xff]
        %v1681 = vld [vmem:[%s1606 + $0x2b0] sm:$0xff]
        %v1682 = vld [vmem:[%s1606 + $0x2b8] sm:$0xff]
        %v1683 = vld [vmem:[%s1606 + $0x2c0] sm:$0xff]
        %v1684 = vld [vmem:[%s1606 + $0x2c8] sm:$0xff]
        %v1685 = vld [vmem:[%s1606 + $0x2d0] sm:$0xff]
        %v1686 = vld [vmem:[%s1606 + $0x2d8] sm:$0xff]
        %v1687 = vld [vmem:[%s1606 + $0x2e0] sm:$0xff]
        %v1688 = vld [vmem:[%s1606 + $0x2e8] sm:$0xff]
        %v1689 = vld [vmem:[%s1606 + $0x2f0] sm:$0xff]
        %v1690 = vld [vmem:[%s1606 + $0x2f8] sm:$0xff]
        %v1691 = vld [vmem:[%s1606 + $0x300] sm:$0xff]
        %v1692 = vld [vmem:[%s1606 + $0x308] sm:$0xff]
        %v1693 = vld [vmem:[%s1606 + $0x310] sm:$0xff]
        %v1694 = vld [vmem:[%s1606 + $0x318] sm:$0xff]
        %v1695 = vld [vmem:[%s1606 + $0x320] sm:$0xff]
        %v1696 = vld [vmem:[%s1606 + $0x328] sm:$0xff]
        %v1697 = vld [vmem:[%s1606 + $0x330] sm:$0xff]
        %v1698 = vld [vmem:[%s1606 + $0x338] sm:$0xff]
        %v1699 = vld [vmem:[%s1606 + $0x340] sm:$0xff]
        %v1700 = vld [vmem:[%s1606 + $0x348] sm:$0xff]
        %v1701 = vld [vmem:[%s1606 + $0x350] sm:$0xff]
        %v1702 = vld [vmem:[%s1606 + $0x358] sm:$0xff]
        %s1703 = scalar_lea.vmem [#allocation9], 384
        %v1704 = vld [vmem:[%s1703] sm:$0xff]
        %v1705 = vld [vmem:[%s1703 + $0x8] sm:$0xff]
        %v1706 = vld [vmem:[%s1703 + $0x10] sm:$0xff]
        %v1707 = vld [vmem:[%s1703 + $0x18] sm:$0xff]
        %v1708 = vld [vmem:[%s1703 + $0x20] sm:$0xff]
        %v1709 = vld [vmem:[%s1703 + $0x28] sm:$0xff]
        %v1710 = vld [vmem:[%s1703 + $0x30] sm:$0xff]
        %v1711 = vld [vmem:[%s1703 + $0x38] sm:$0xff]
        %v1712 = vld [vmem:[%s1703 + $0x40] sm:$0xff]
        %v1713 = vld [vmem:[%s1703 + $0x48] sm:$0xff]
        %v1714 = vld [vmem:[%s1703 + $0x50] sm:$0xff]
        %v1715 = vld [vmem:[%s1703 + $0x58] sm:$0xff]
        %v1716 = vld [vmem:[%s1703 + $0x60] sm:$0xff]
        %v1717 = vld [vmem:[%s1703 + $0x68] sm:$0xff]
        %v1718 = vld [vmem:[%s1703 + $0x70] sm:$0xff]
        %v1719 = vld [vmem:[%s1703 + $0x78] sm:$0xff]
        %v1720 = vld [vmem:[%s1703 + $0x80] sm:$0xff]
        %v1721 = vld [vmem:[%s1703 + $0x88] sm:$0xff]
        %v1722 = vld [vmem:[%s1703 + $0x90] sm:$0xff]
        %v1723 = vld [vmem:[%s1703 + $0x98] sm:$0xff]
        %v1724 = vld [vmem:[%s1703 + $0xa0] sm:$0xff]
        %v1725 = vld [vmem:[%s1703 + $0xa8] sm:$0xff]
        %v1726 = vld [vmem:[%s1703 + $0xb0] sm:$0xff]
        %v1727 = vld [vmem:[%s1703 + $0xb8] sm:$0xff]
        %v1728 = vld [vmem:[%s1703 + $0xc0] sm:$0xff]
        %v1729 = vld [vmem:[%s1703 + $0xc8] sm:$0xff]
        %v1730 = vld [vmem:[%s1703 + $0xd0] sm:$0xff]
        %v1731 = vld [vmem:[%s1703 + $0xd8] sm:$0xff]
        %v1732 = vld [vmem:[%s1703 + $0xe0] sm:$0xff]
        %v1733 = vld [vmem:[%s1703 + $0xe8] sm:$0xff]
        %v1734 = vld [vmem:[%s1703 + $0xf0] sm:$0xff]
        %v1735 = vld [vmem:[%s1703 + $0xf8] sm:$0xff]
        %v1736 = vld [vmem:[%s1703 + $0x100] sm:$0xff]
        %v1737 = vld [vmem:[%s1703 + $0x108] sm:$0xff]
        %v1738 = vld [vmem:[%s1703 + $0x110] sm:$0xff]
        %v1739 = vld [vmem:[%s1703 + $0x118] sm:$0xff]
        %v1740 = vld [vmem:[%s1703 + $0x120] sm:$0xff]
        %v1741 = vld [vmem:[%s1703 + $0x128] sm:$0xff]
        %v1742 = vld [vmem:[%s1703 + $0x130] sm:$0xff]
        %v1743 = vld [vmem:[%s1703 + $0x138] sm:$0xff]
        %v1744 = vld [vmem:[%s1703 + $0x140] sm:$0xff]
        %v1745 = vld [vmem:[%s1703 + $0x148] sm:$0xff]
        %v1746 = vld [vmem:[%s1703 + $0x150] sm:$0xff]
        %v1747 = vld [vmem:[%s1703 + $0x158] sm:$0xff]
        %v1748 = vld [vmem:[%s1703 + $0x160] sm:$0xff]
        %v1749 = vld [vmem:[%s1703 + $0x168] sm:$0xff]
        %v1750 = vld [vmem:[%s1703 + $0x170] sm:$0xff]
        %v1751 = vld [vmem:[%s1703 + $0x178] sm:$0xff]
        %1752 = vmatprep.subr.mxu0 0.0
        %1753 = vmatpush1.msra.mxu0 %v1704
        %1754 = vmatprep.subr.mxu0 0.0
        %1755 = vmatpush1.msra.mxu0 %v1705
        %1756 = vmatprep.subr.mxu0 0.0
        %1757 = vmatpush1.msra.mxu0 %v1706
        %1758 = vmatprep.subr.mxu0 0.0
        %1759 = vmatpush1.msra.mxu0 %v1707
        %1760 = vmatprep.subr.mxu0 0.0
        %1761 = vmatpush1.msra.mxu0 %v1708
        %1762 = vmatprep.subr.mxu0 0.0
        %1763 = vmatpush1.msra.mxu0 %v1709
        %1764 = vmatprep.subr.mxu0 0.0
        %1765 = vmatpush1.msra.mxu0 %v1710
        %1766 = vmatprep.subr.mxu0 0.0
        %1767 = vmatpush1.msra.mxu0 %v1711
        %1768 = vmatprep.subr.mxu0 0.0
        %1769 = vmatpush1.msra.mxu0 %v1712
        %1770 = vmatprep.subr.mxu0 0.0
        %1771 = vmatpush1.msra.mxu0 %v1713
        %1772 = vmatprep.subr.mxu0 0.0
        %1773 = vmatpush1.msra.mxu0 %v1714
        %1774 = vmatprep.subr.mxu0 0.0
        %1775 = vmatpush1.msra.mxu0 %v1715
        %1776 = vmatprep.subr.mxu0 0.0
        %1777 = vmatpush1.msra.mxu0 %v1716
        %1778 = vmatprep.subr.mxu0 0.0
        %1779 = vmatpush1.msra.mxu0 %v1717
        %1780 = vmatprep.subr.mxu0 0.0
        %1781 = vmatpush1.msra.mxu0 %v1718
        %1782 = vmatprep.subr.mxu0 0.0
        %1783 = vmatpush1.msra.mxu0 %v1719
        %1784 = vmatprep.subr.mxu0 0.0
        %1785 = vmatpush1.msra.mxu0 %v1720
        %1786 = vmatprep.subr.mxu0 0.0
        %1787 = vmatpush1.msra.mxu0 %v1721
        %1788 = vmatprep.subr.mxu0 0.0
        %1789 = vmatpush1.msra.mxu0 %v1722
        %1790 = vmatprep.subr.mxu0 0.0
        %1791 = vmatpush1.msra.mxu0 %v1723
        %1792 = vmatprep.subr.mxu0 0.0
        %1793 = vmatpush1.msra.mxu0 %v1724
        %1794 = vmatprep.subr.mxu0 0.0
        %1795 = vmatpush1.msra.mxu0 %v1725
        %1796 = vmatprep.subr.mxu0 0.0
        %1797 = vmatpush1.msra.mxu0 %v1726
        %1798 = vmatprep.subr.mxu0 0.0
        %1799 = vmatpush1.msra.mxu0 %v1727
        %1800 = vmatprep.subr.mxu0 0.0
        %1801 = vmatpush1.msra.mxu0 %v1728
        %1802 = vmatprep.subr.mxu0 0.0
        %1803 = vmatpush1.msra.mxu0 %v1729
        %1804 = vmatprep.subr.mxu0 0.0
        %1805 = vmatpush1.msra.mxu0 %v1730
        %1806 = vmatprep.subr.mxu0 0.0
        %1807 = vmatpush1.msra.mxu0 %v1731
        %1808 = vmatprep.subr.mxu0 0.0
        %1809 = vmatpush1.msra.mxu0 %v1732
        %1810 = vmatprep.subr.mxu0 0.0
        %1811 = vmatpush1.msra.mxu0 %v1733
        %1812 = vmatprep.subr.mxu0 0.0
        %1813 = vmatpush1.msra.mxu0 %v1734
        %1814 = vmatprep.subr.mxu0 0.0
        %1815 = vmatpush1.msra.mxu0 %v1735
        %1816 = vmatprep.mubr.f32.mxu0 %v1608
        %1817 = vmatmul.mubr.f32.gmra.mrb[0].mxu0 %v1607
        %v1818 = vpop.f32.mrb[0].mxu0
        %v1819 = vadd.f32 0.0, %v1818
        %v1820 = vpop.f32.mrb[0].mxu0
        %1821 = vmatprep.mubr.f32.mxu0 %v1611
        %1822 = vmatmul.mubr.f32.gmra.mrb[0].mxu0 %v1610
        %v1823 = vpop.f32.mrb[0].mxu0
        %v1824 = vadd.f32 0.0, %v1823
        %v1825 = vpop.f32.mrb[0].mxu0
        %1826 = vmatprep.mubr.f32.mxu0 %v1614
        %1827 = vmatmul.mubr.f32.gmra.mrb[0].mxu0 %v1613
        %v1828 = vpop.f32.mrb[0].mxu0
        %v1829 = vadd.f32 0.0, %v1828
        %v1830 = vpop.f32.mrb[0].mxu0
        %1831 = vmatprep.mubr.f32.mxu0 %v1617
        %1832 = vmatmul.mubr.f32.gmra.mrb[0].mxu0 %v1616
        %v1833 = vpop.f32.mrb[0].mxu0
        %v1834 = vadd.f32 0.0, %v1833
        %v1835 = vpop.f32.mrb[0].mxu0
        %1836 = vmatprep.mubr.f32.mxu0 %v1620
        %1837 = vmatmul.mubr.f32.gmra.mrb[0].mxu0 %v1619
        %v1838 = vpop.f32.mrb[0].mxu0
        %v1839 = vadd.f32 0.0, %v1838
        %v1840 = vpop.f32.mrb[0].mxu0
        %1841 = vmatprep.mubr.f32.mxu0 %v1623
        %1842 = vmatmul.mubr.f32.gmra.mrb[0].mxu0 %v1622
        %v1843 = vpop.f32.mrb[0].mxu0
        %v1844 = vadd.f32 0.0, %v1843
        %v1845 = vpop.f32.mrb[0].mxu0
        %1846 = vmatprep.mubr.f32.mxu0 %v1626
        %1847 = vmatmul.mubr.f32.gmra.mrb[0].mxu0 %v1625
        %v1848 = vpop.f32.mrb[0].mxu0
        %v1849 = vadd.f32 0.0, %v1848
        %v1850 = vpop.f32.mrb[0].mxu0
        %1851 = vmatprep.mubr.f32.mxu0 %v1629
        %1852 = vmatmul.mubr.f32.gmra.mrb[0].mxu0 %v1628
        %v1853 = vpop.f32.mrb[0].mxu0
        %v1854 = vadd.f32 0.0, %v1853
        %v1855 = vpop.f32.mrb[0].mxu0
        %1856 = vmatprep.mubr.f32.mxu0 %v1632
        %1857 = vmatmul.mubr.f32.gmra.mrb[0].mxu0 %v1631
        %v1858 = vpop.f32.mrb[0].mxu0
        %v1859 = vadd.f32 0.0, %v1858
        %v1860 = vpop.f32.mrb[0].mxu0
        %1861 = vmatprep.mubr.f32.mxu0 %v1635
        %1862 = vmatmul.mubr.f32.gmra.mrb[0].mxu0 %v1634
        %v1863 = vpop.f32.mrb[0].mxu0
        %v1864 = vadd.f32 0.0, %v1863
        %v1865 = vpop.f32.mrb[0].mxu0
        %1866 = vmatprep.mubr.f32.mxu0 %v1638
        %1867 = vmatmul.mubr.f32.gmra.mrb[0].mxu0 %v1637
        %v1868 = vpop.f32.mrb[0].mxu0
        %v1869 = vadd.f32 0.0, %v1868
        %v1870 = vpop.f32.mrb[0].mxu0
        %1871 = vmatprep.mubr.f32.mxu0 %v1641
        %1872 = vmatmul.mubr.f32.gmra.mrb[0].mxu0 %v1640
        %v1873 = vpop.f32.mrb[0].mxu0
        %v1874 = vadd.f32 0.0, %v1873
        %v1875 = vpop.f32.mrb[0].mxu0
        %1876 = vmatprep.mubr.f32.mxu0 %v1644
        %1877 = vmatmul.mubr.f32.gmra.mrb[0].mxu0 %v1643
        %v1878 = vpop.f32.mrb[0].mxu0
        %v1879 = vadd.f32 0.0, %v1878
        %v1880 = vpop.f32.mrb[0].mxu0
        %1881 = vmatprep.mubr.f32.mxu0 %v1647
        %1882 = vmatmul.mubr.f32.gmra.mrb[0].mxu0 %v1646
        %v1883 = vpop.f32.mrb[0].mxu0
        %v1884 = vadd.f32 0.0, %v1883
        %v1885 = vpop.f32.mrb[0].mxu0
        %1886 = vmatprep.mubr.f32.mxu0 %v1650
        %1887 = vmatmul.mubr.f32.gmra.mrb[0].mxu0 %v1649
        %v1888 = vpop.f32.mrb[0].mxu0
        %v1889 = vadd.f32 0.0, %v1888
        %v1890 = vpop.f32.mrb[0].mxu0
        %1891 = vmatprep.mubr.f32.mxu0 %v1653
        %1892 = vmatmul.mubr.f32.gmra.mrb[0].mxu0 %v1652
        %v1893 = vpop.f32.mrb[0].mxu0
        %v1894 = vadd.f32 0.0, %v1893
        %v1895 = vpop.f32.mrb[0].mxu0
        %1896 = vmatprep.mubr.f32.mxu0 %v1656
        %1897 = vmatmul.mubr.f32.gmra.mrb[0].mxu0 %v1655
        %v1898 = vpop.f32.mrb[0].mxu0
        %v1899 = vadd.f32 0.0, %v1898
        %v1900 = vpop.f32.mrb[0].mxu0
        %1901 = vmatprep.mubr.f32.mxu0 %v1659
        %1902 = vmatmul.mubr.f32.gmra.mrb[0].mxu0 %v1658
        %v1903 = vpop.f32.mrb[0].mxu0
        %v1904 = vadd.f32 0.0, %v1903
        %v1905 = vpop.f32.mrb[0].mxu0
        %1906 = vmatprep.mubr.f32.mxu0 %v1662
        %1907 = vmatmul.mubr.f32.gmra.mrb[0].mxu0 %v1661
        %v1908 = vpop.f32.mrb[0].mxu0
        %v1909 = vadd.f32 0.0, %v1908
        %v1910 = vpop.f32.mrb[0].mxu0
        %1911 = vmatprep.mubr.f32.mxu0 %v1665
        %1912 = vmatmul.mubr.f32.gmra.mrb[0].mxu0 %v1664
        %v1913 = vpop.f32.mrb[0].mxu0
        %v1914 = vadd.f32 0.0, %v1913
        %v1915 = vpop.f32.mrb[0].mxu0
        %1916 = vmatprep.mubr.f32.mxu0 %v1668
        %1917 = vmatmul.mubr.f32.gmra.mrb[0].mxu0 %v1667
        %v1918 = vpop.f32.mrb[0].mxu0
        %v1919 = vadd.f32 0.0, %v1918
        %v1920 = vpop.f32.mrb[0].mxu0
        %1921 = vmatprep.mubr.f32.mxu0 %v1671
        %1922 = vmatmul.mubr.f32.gmra.mrb[0].mxu0 %v1670
        %v1923 = vpop.f32.mrb[0].mxu0
        %v1924 = vadd.f32 0.0, %v1923
        %v1925 = vpop.f32.mrb[0].mxu0
        %1926 = vmatprep.mubr.f32.mxu0 %v1674
        %1927 = vmatmul.mubr.f32.gmra.mrb[0].mxu0 %v1673
        %v1928 = vpop.f32.mrb[0].mxu0
        %v1929 = vadd.f32 0.0, %v1928
        %v1930 = vpop.f32.mrb[0].mxu0
        %1931 = vmatprep.mubr.f32.mxu0 %v1677
        %1932 = vmatmul.mubr.f32.gmra.mrb[0].mxu0 %v1676
        %v1933 = vpop.f32.mrb[0].mxu0
        %v1934 = vadd.f32 0.0, %v1933
        %v1935 = vpop.f32.mrb[0].mxu0
        %1936 = vmatprep.mubr.f32.mxu0 %v1680
        %1937 = vmatmul.mubr.f32.gmra.mrb[0].mxu0 %v1679
        %v1938 = vpop.f32.mrb[0].mxu0
        %v1939 = vadd.f32 0.0, %v1938
        %v1940 = vpop.f32.mrb[0].mxu0
        %1941 = vmatprep.mubr.f32.mxu0 %v1683
        %1942 = vmatmul.mubr.f32.gmra.mrb[0].mxu0 %v1682
        %v1943 = vpop.f32.mrb[0].mxu0
        %v1944 = vadd.f32 0.0, %v1943
        %v1945 = vpop.f32.mrb[0].mxu0
        %1946 = vmatprep.mubr.f32.mxu0 %v1686
        %1947 = vmatmul.mubr.f32.gmra.mrb[0].mxu0 %v1685
        %v1948 = vpop.f32.mrb[0].mxu0
        %v1949 = vadd.f32 0.0, %v1948
        %v1950 = vpop.f32.mrb[0].mxu0
        %1951 = vmatprep.mubr.f32.mxu0 %v1689
        %1952 = vmatmul.mubr.f32.gmra.mrb[0].mxu0 %v1688
        %v1953 = vpop.f32.mrb[0].mxu0
        %v1954 = vadd.f32 0.0, %v1953
        %v1955 = vpop.f32.mrb[0].mxu0
        %1956 = vmatprep.mubr.f32.mxu0 %v1692
        %1957 = vmatmul.mubr.f32.gmra.mrb[0].mxu0 %v1691
        %v1958 = vpop.f32.mrb[0].mxu0
        %v1959 = vadd.f32 0.0, %v1958
        %v1960 = vpop.f32.mrb[0].mxu0
        %1961 = vmatprep.mubr.f32.mxu0 %v1695
        %1962 = vmatmul.mubr.f32.gmra.mrb[0].mxu0 %v1694
        %v1963 = vpop.f32.mrb[0].mxu0
        %v1964 = vadd.f32 0.0, %v1963
        %v1965 = vpop.f32.mrb[0].mxu0
        %1966 = vmatprep.mubr.f32.mxu0 %v1698
        %1967 = vmatmul.mubr.f32.gmra.mrb[0].mxu0 %v1697
        %v1968 = vpop.f32.mrb[0].mxu0
        %v1969 = vadd.f32 0.0, %v1968
        %v1970 = vpop.f32.mrb[0].mxu0
        %1971 = vmatprep.mubr.f32.mxu0 %v1701
        %1972 = vmatmul.mubr.f32.gmra.mrb[0].mxu0 %v1700
        %v1973 = vpop.f32.mrb[0].mxu0
        %v1974 = vadd.f32 0.0, %v1973
        %v1975 = vpop.f32.mrb[0].mxu0
        %1976 = vdwg.mxu0
        %1977 = vmatprep.subr.mxu0 0.0
        %1978 = vmatpush1.msra.mxu0 %v1736
        %1979 = vmatprep.subr.mxu0 0.0
        %1980 = vmatpush1.msra.mxu0 %v1737
        %1981 = vmatprep.subr.mxu0 0.0
        %1982 = vmatpush1.msra.mxu0 %v1738
        %1983 = vmatprep.subr.mxu0 0.0
        %1984 = vmatpush1.msra.mxu0 %v1739
        %1985 = vmatprep.subr.mxu0 0.0
        %1986 = vmatpush1.msra.mxu0 %v1740
        %1987 = vmatprep.subr.mxu0 0.0
        %1988 = vmatpush1.msra.mxu0 %v1741
        %1989 = vmatprep.subr.mxu0 0.0
        %1990 = vmatpush1.msra.mxu0 %v1742
        %1991 = vmatprep.subr.mxu0 0.0
        %1992 = vmatpush1.msra.mxu0 %v1743
        %1993 = vmatprep.subr.mxu0 0.0
        %1994 = vmatpush1.msra.mxu0 %v1744
        %1995 = vmatprep.subr.mxu0 0.0
        %1996 = vmatpush1.msra.mxu0 %v1745
        %1997 = vmatprep.subr.mxu0 0.0
        %1998 = vmatpush1.msra.mxu0 %v1746
        %1999 = vmatprep.subr.mxu0 0.0
        %2000 = vmatpush1.msra.mxu0 %v1747
        %2001 = vmatprep.subr.mxu0 0.0
        %2002 = vmatpush1.msra.mxu0 %v1748
        %2003 = vmatprep.subr.mxu0 0.0
        %2004 = vmatpush1.msra.mxu0 %v1749
        %2005 = vmatprep.subr.mxu0 0.0
        %2006 = vmatpush1.msra.mxu0 %v1750
        %2007 = vmatprep.subr.mxu0 0.0
        %2008 = vmatpush1.msra.mxu0 %v1751
        %2009 = vmatprep.subr.mxu0 0.0
        %2010 = vmatpush1.msra.mxu0 0.0
        %2011 = vmatprep.subr.mxu0 0.0
        %2012 = vmatpush1.msra.mxu0 0.0
        %2013 = vmatprep.subr.mxu0 0.0
        %2014 = vmatpush1.msra.mxu0 0.0
        %2015 = vmatprep.subr.mxu0 0.0
        %2016 = vmatpush1.msra.mxu0 0.0
        %2017 = vmatprep.subr.mxu0 0.0
        %2018 = vmatpush1.msra.mxu0 0.0
        %2019 = vmatprep.subr.mxu0 0.0
        %2020 = vmatpush1.msra.mxu0 0.0
        %2021 = vmatprep.subr.mxu0 0.0
        %2022 = vmatpush1.msra.mxu0 0.0
        %2023 = vmatprep.subr.mxu0 0.0
        %2024 = vmatpush1.msra.mxu0 0.0
        %2025 = vmatprep.subr.mxu0 0.0
        %2026 = vmatpush1.msra.mxu0 0.0
        %2027 = vmatprep.subr.mxu0 0.0
        %2028 = vmatpush1.msra.mxu0 0.0
        %2029 = vmatprep.subr.mxu0 0.0
        %2030 = vmatpush1.msra.mxu0 0.0
        %2031 = vmatprep.subr.mxu0 0.0
        %2032 = vmatpush1.msra.mxu0 0.0
        %2033 = vmatprep.subr.mxu0 0.0
        %2034 = vmatpush1.msra.mxu0 0.0
        %2035 = vmatprep.subr.mxu0 0.0
        %2036 = vmatpush1.msra.mxu0 0.0
        %2037 = vmatprep.subr.mxu0 0.0
        %2038 = vmatpush1.msra.mxu0 0.0
        %2039 = vmatprep.subr.mxu0 0.0
        %2040 = vmatpush1.msra.mxu0 0.0
        %2041 = vmatprep.mubr.f32.mxu0 0.0
        %2042 = vmatmul.mubr.f32.gmra.mrb[0].mxu0 %v1609
        %v2043 = vpop.f32.mrb[0].mxu0
        %v2044 = vadd.f32 %v1819, %v2043
        %v2045 = vpop.f32.mrb[0].mxu0
        %2046 = vmatprep.mubr.f32.mxu0 0.0
        %2047 = vmatmul.mubr.f32.gmra.mrb[0].mxu0 %v1612
        %v2048 = vpop.f32.mrb[0].mxu0
        %v2049 = vadd.f32 %v1824, %v2048
        %v2050 = vpop.f32.mrb[0].mxu0
        %2051 = vmatprep.mubr.f32.mxu0 0.0
        %2052 = vmatmul.mubr.f32.gmra.mrb[0].mxu0 %v1615
        %v2053 = vpop.f32.mrb[0].mxu0
        %v2054 = vadd.f32 %v1829, %v2053
        %v2055 = vpop.f32.mrb[0].mxu0
        %2056 = vmatprep.mubr.f32.mxu0 0.0
        %2057 = vmatmul.mubr.f32.gmra.mrb[0].mxu0 %v1618
        %v2058 = vpop.f32.mrb[0].mxu0
        %v2059 = vadd.f32 %v1834, %v2058
        %v2060 = vpop.f32.mrb[0].mxu0
        %2061 = vmatprep.mubr.f32.mxu0 0.0
        %2062 = vmatmul.mubr.f32.gmra.mrb[0].mxu0 %v1621
        %v2063 = vpop.f32.mrb[0].mxu0
        %v2064 = vadd.f32 %v1839, %v2063
        %v2065 = vpop.f32.mrb[0].mxu0
        %2066 = vmatprep.mubr.f32.mxu0 0.0
        %2067 = vmatmul.mubr.f32.gmra.mrb[0].mxu0 %v1624
        %v2068 = vpop.f32.mrb[0].mxu0
        %v2069 = vadd.f32 %v1844, %v2068
        %v2070 = vpop.f32.mrb[0].mxu0
        %2071 = vmatprep.mubr.f32.mxu0 0.0
        %2072 = vmatmul.mubr.f32.gmra.mrb[0].mxu0 %v1627
        %v2073 = vpop.f32.mrb[0].mxu0
        %v2074 = vadd.f32 %v1849, %v2073
        %v2075 = vpop.f32.mrb[0].mxu0
        %2076 = vmatprep.mubr.f32.mxu0 0.0
        %2077 = vmatmul.mubr.f32.gmra.mrb[0].mxu0 %v1630
        %v2078 = vpop.f32.mrb[0].mxu0
        %v2079 = vadd.f32 %v1854, %v2078
        %v2080 = vpop.f32.mrb[0].mxu0
        %2081 = vmatprep.mubr.f32.mxu0 0.0
        %2082 = vmatmul.mubr.f32.gmra.mrb[0].mxu0 %v1633
        %v2083 = vpop.f32.mrb[0].mxu0
        %v2084 = vadd.f32 %v1859, %v2083
        %v2085 = vpop.f32.mrb[0].mxu0
        %2086 = vmatprep.mubr.f32.mxu0 0.0
        %2087 = vmatmul.mubr.f32.gmra.mrb[0].mxu0 %v1636
        %v2088 = vpop.f32.mrb[0].mxu0
        %v2089 = vadd.f32 %v1864, %v2088
        %v2090 = vpop.f32.mrb[0].mxu0
        %2091 = vmatprep.mubr.f32.mxu0 0.0
        %2092 = vmatmul.mubr.f32.gmra.mrb[0].mxu0 %v1639
        %v2093 = vpop.f32.mrb[0].mxu0
        %v2094 = vadd.f32 %v1869, %v2093
        %v2095 = vpop.f32.mrb[0].mxu0
        %2096 = vmatprep.mubr.f32.mxu0 0.0
        %2097 = vmatmul.mubr.f32.gmra.mrb[0].mxu0 %v1642
        %v2098 = vpop.f32.mrb[0].mxu0
        %v2099 = vadd.f32 %v1874, %v2098
        %v2100 = vpop.f32.mrb[0].mxu0
        %2101 = vmatprep.mubr.f32.mxu0 0.0
        %2102 = vmatmul.mubr.f32.gmra.mrb[0].mxu0 %v1645
        %v2103 = vpop.f32.mrb[0].mxu0
        %v2104 = vadd.f32 %v1879, %v2103
        %v2105 = vpop.f32.mrb[0].mxu0
        %2106 = vmatprep.mubr.f32.mxu0 0.0
        %2107 = vmatmul.mubr.f32.gmra.mrb[0].mxu0 %v1648
        %v2108 = vpop.f32.mrb[0].mxu0
        %v2109 = vadd.f32 %v1884, %v2108
        %v2110 = vpop.f32.mrb[0].mxu0
        %2111 = vmatprep.mubr.f32.mxu0 0.0
        %2112 = vmatmul.mubr.f32.gmra.mrb[0].mxu0 %v1651
        %v2113 = vpop.f32.mrb[0].mxu0
        %v2114 = vadd.f32 %v1889, %v2113
        %v2115 = vpop.f32.mrb[0].mxu0
        %2116 = vmatprep.mubr.f32.mxu0 0.0
        %2117 = vmatmul.mubr.f32.gmra.mrb[0].mxu0 %v1654
        %v2118 = vpop.f32.mrb[0].mxu0
        %v2119 = vadd.f32 %v1894, %v2118
        %v2120 = vpop.f32.mrb[0].mxu0
        %2121 = vmatprep.mubr.f32.mxu0 0.0
        %2122 = vmatmul.mubr.f32.gmra.mrb[0].mxu0 %v1657
        %v2123 = vpop.f32.mrb[0].mxu0
        %v2124 = vadd.f32 %v1899, %v2123
        %v2125 = vpop.f32.mrb[0].mxu0
        %2126 = vmatprep.mubr.f32.mxu0 0.0
        %2127 = vmatmul.mubr.f32.gmra.mrb[0].mxu0 %v1660
        %v2128 = vpop.f32.mrb[0].mxu0
        %v2129 = vadd.f32 %v1904, %v2128
        %v2130 = vpop.f32.mrb[0].mxu0
        %2131 = vmatprep.mubr.f32.mxu0 0.0
        %2132 = vmatmul.mubr.f32.gmra.mrb[0].mxu0 %v1663
        %v2133 = vpop.f32.mrb[0].mxu0
        %v2134 = vadd.f32 %v1909, %v2133
        %v2135 = vpop.f32.mrb[0].mxu0
        %2136 = vmatprep.mubr.f32.mxu0 0.0
        %2137 = vmatmul.mubr.f32.gmra.mrb[0].mxu0 %v1666
        %v2138 = vpop.f32.mrb[0].mxu0
        %v2139 = vadd.f32 %v1914, %v2138
        %v2140 = vpop.f32.mrb[0].mxu0
        %2141 = vmatprep.mubr.f32.mxu0 0.0
        %2142 = vmatmul.mubr.f32.gmra.mrb[0].mxu0 %v1669
        %v2143 = vpop.f32.mrb[0].mxu0
        %v2144 = vadd.f32 %v1919, %v2143
        %v2145 = vpop.f32.mrb[0].mxu0
        %2146 = vmatprep.mubr.f32.mxu0 0.0
        %2147 = vmatmul.mubr.f32.gmra.mrb[0].mxu0 %v1672
        %v2148 = vpop.f32.mrb[0].mxu0
        %v2149 = vadd.f32 %v1924, %v2148
        %v2150 = vpop.f32.mrb[0].mxu0
        %2151 = vmatprep.mubr.f32.mxu0 0.0
        %2152 = vmatmul.mubr.f32.gmra.mrb[0].mxu0 %v1675
        %v2153 = vpop.f32.mrb[0].mxu0
        %v2154 = vadd.f32 %v1929, %v2153
        %v2155 = vpop.f32.mrb[0].mxu0
        %2156 = vmatprep.mubr.f32.mxu0 0.0
        %2157 = vmatmul.mubr.f32.gmra.mrb[0].mxu0 %v1678
        %v2158 = vpop.f32.mrb[0].mxu0
        %v2159 = vadd.f32 %v1934, %v2158
        %v2160 = vpop.f32.mrb[0].mxu0
        %2161 = vmatprep.mubr.f32.mxu0 0.0
        %2162 = vmatmul.mubr.f32.gmra.mrb[0].mxu0 %v1681
        %v2163 = vpop.f32.mrb[0].mxu0
        %v2164 = vadd.f32 %v1939, %v2163
        %v2165 = vpop.f32.mrb[0].mxu0
        %2166 = vmatprep.mubr.f32.mxu0 0.0
        %2167 = vmatmul.mubr.f32.gmra.mrb[0].mxu0 %v1684
        %v2168 = vpop.f32.mrb[0].mxu0
        %v2169 = vadd.f32 %v1944, %v2168
        %v2170 = vpop.f32.mrb[0].mxu0
        %2171 = vmatprep.mubr.f32.mxu0 0.0
        %2172 = vmatmul.mubr.f32.gmra.mrb[0].mxu0 %v1687
        %v2173 = vpop.f32.mrb[0].mxu0
        %v2174 = vadd.f32 %v1949, %v2173
        %v2175 = vpop.f32.mrb[0].mxu0
        %2176 = vmatprep.mubr.f32.mxu0 0.0
        %2177 = vmatmul.mubr.f32.gmra.mrb[0].mxu0 %v1690
        %v2178 = vpop.f32.mrb[0].mxu0
        %v2179 = vadd.f32 %v1954, %v2178
        %v2180 = vpop.f32.mrb[0].mxu0
        %2181 = vmatprep.mubr.f32.mxu0 0.0
        %2182 = vmatmul.mubr.f32.gmra.mrb[0].mxu0 %v1693
        %v2183 = vpop.f32.mrb[0].mxu0
        %v2184 = vadd.f32 %v1959, %v2183
        %v2185 = vpop.f32.mrb[0].mxu0
        %2186 = vmatprep.mubr.f32.mxu0 0.0
        %2187 = vmatmul.mubr.f32.gmra.mrb[0].mxu0 %v1696
        %v2188 = vpop.f32.mrb[0].mxu0
        %v2189 = vadd.f32 %v1964, %v2188
        %v2190 = vpop.f32.mrb[0].mxu0
        %2191 = vmatprep.mubr.f32.mxu0 0.0
        %2192 = vmatmul.mubr.f32.gmra.mrb[0].mxu0 %v1699
        %v2193 = vpop.f32.mrb[0].mxu0
        %v2194 = vadd.f32 %v1969, %v2193
        %v2195 = vpop.f32.mrb[0].mxu0
        %2196 = vmatprep.mubr.f32.mxu0 0.0
        %2197 = vmatmul.mubr.f32.gmra.mrb[0].mxu0 %v1702
        %v2198 = vpop.f32.mrb[0].mxu0
        %v2199 = vadd.f32 %v1974, %v2198
        %v2200 = vpop.f32.mrb[0].mxu0
        %2201 = vdwg.mxu0
        %2202 = vmatprep.subr.mxu0 0.0
        %2203 = vmatpush1.msra.mxu0 %v1558
        %2204 = vmatprep.subr.mxu0 0.0
        %2205 = vmatpush1.msra.mxu0 %v1559
        %2206 = vmatprep.subr.mxu0 0.0
        %2207 = vmatpush1.msra.mxu0 %v1560
        %2208 = vmatprep.subr.mxu0 0.0
        %2209 = vmatpush1.msra.mxu0 %v1561
        %2210 = vmatprep.subr.mxu0 0.0
        %2211 = vmatpush1.msra.mxu0 %v1562
        %2212 = vmatprep.subr.mxu0 0.0
        %2213 = vmatpush1.msra.mxu0 %v1563
        %2214 = vmatprep.subr.mxu0 0.0
        %2215 = vmatpush1.msra.mxu0 %v1564
        %2216 = vmatprep.subr.mxu0 0.0
        %2217 = vmatpush1.msra.mxu0 %v1565
        %2218 = vmatprep.subr.mxu0 0.0
        %2219 = vmatpush1.msra.mxu0 %v1566
        %2220 = vmatprep.subr.mxu0 0.0
        %2221 = vmatpush1.msra.mxu0 %v1567
        %2222 = vmatprep.subr.mxu0 0.0
        %2223 = vmatpush1.msra.mxu0 %v1568
        %2224 = vmatprep.subr.mxu0 0.0
        %2225 = vmatpush1.msra.mxu0 %v1569
        %2226 = vmatprep.subr.mxu0 0.0
        %2227 = vmatpush1.msra.mxu0 %v1570
        %2228 = vmatprep.subr.mxu0 0.0
        %2229 = vmatpush1.msra.mxu0 %v1571
        %2230 = vmatprep.subr.mxu0 0.0
        %2231 = vmatpush1.msra.mxu0 %v1572
        %2232 = vmatprep.subr.mxu0 0.0
        %2233 = vmatpush1.msra.mxu0 %v1573
        %2234 = vmatprep.subr.mxu0 0.0
        %2235 = vmatpush1.msra.mxu0 %v1574
        %2236 = vmatprep.subr.mxu0 0.0
        %2237 = vmatpush1.msra.mxu0 %v1575
        %2238 = vmatprep.subr.mxu0 0.0
        %2239 = vmatpush1.msra.mxu0 %v1576
        %2240 = vmatprep.subr.mxu0 0.0
        %2241 = vmatpush1.msra.mxu0 %v1577
        %2242 = vmatprep.subr.mxu0 0.0
        %2243 = vmatpush1.msra.mxu0 %v1578
        %2244 = vmatprep.subr.mxu0 0.0
        %2245 = vmatpush1.msra.mxu0 %v1579
        %2246 = vmatprep.subr.mxu0 0.0
        %2247 = vmatpush1.msra.mxu0 %v1580
        %2248 = vmatprep.subr.mxu0 0.0
        %2249 = vmatpush1.msra.mxu0 %v1581
        %2250 = vmatprep.subr.mxu0 0.0
        %2251 = vmatpush1.msra.mxu0 %v1582
        %2252 = vmatprep.subr.mxu0 0.0
        %2253 = vmatpush1.msra.mxu0 %v1583
        %2254 = vmatprep.subr.mxu0 0.0
        %2255 = vmatpush1.msra.mxu0 %v1584
        %2256 = vmatprep.subr.mxu0 0.0
        %2257 = vmatpush1.msra.mxu0 %v1585
        %2258 = vmatprep.subr.mxu0 0.0
        %2259 = vmatpush1.msra.mxu0 %v1586
        %2260 = vmatprep.subr.mxu0 0.0
        %2261 = vmatpush1.msra.mxu0 %v1587
        %2262 = vmatprep.subr.mxu0 0.0
        %2263 = vmatpush1.msra.mxu0 %v1588
        %2264 = vmatprep.subr.mxu0 0.0
        %2265 = vmatpush1.msra.mxu0 %v1589
        %2266 = vmatprep.mubr.f32.mxu0 %v1463
        %2267 = vmatmul.mubr.f32.gmra.mrb[0].mxu0 %v1462
        %v2268 = vpop.f32.mrb[0].mxu0
        %v2269 = vadd.f32 %v2044, %v2268
        %v2270 = vpop.f32.mrb[0].mxu0
        %2271 = vmatprep.mubr.f32.mxu0 %v1466
        %2272 = vmatmul.mubr.f32.gmra.mrb[0].mxu0 %v1465
        %v2273 = vpop.f32.mrb[0].mxu0
        %v2274 = vadd.f32 %v2049, %v2273
        %v2275 = vpop.f32.mrb[0].mxu0
        %2276 = vmatprep.mubr.f32.mxu0 %v1469
        %2277 = vmatmul.mubr.f32.gmra.mrb[0].mxu0 %v1468
        %v2278 = vpop.f32.mrb[0].mxu0
        %v2279 = vadd.f32 %v2054, %v2278
        %v2280 = vpop.f32.mrb[0].mxu0
        %2281 = vmatprep.mubr.f32.mxu0 %v1472
        %2282 = vmatmul.mubr.f32.gmra.mrb[0].mxu0 %v1471
        %v2283 = vpop.f32.mrb[0].mxu0
        %v2284 = vadd.f32 %v2059, %v2283
        %v2285 = vpop.f32.mrb[0].mxu0
        %2286 = vmatprep.mubr.f32.mxu0 %v1475
        %2287 = vmatmul.mubr.f32.gmra.mrb[0].mxu0 %v1474
        %v2288 = vpop.f32.mrb[0].mxu0
        %v2289 = vadd.f32 %v2064, %v2288
        %v2290 = vpop.f32.mrb[0].mxu0
        %2291 = vmatprep.mubr.f32.mxu0 %v1478
        %2292 = vmatmul.mubr.f32.gmra.mrb[0].mxu0 %v1477
        %v2293 = vpop.f32.mrb[0].mxu0
        %v2294 = vadd.f32 %v2069, %v2293
        %v2295 = vpop.f32.mrb[0].mxu0
        %2296 = vmatprep.mubr.f32.mxu0 %v1481
        %2297 = vmatmul.mubr.f32.gmra.mrb[0].mxu0 %v1480
        %v2298 = vpop.f32.mrb[0].mxu0
        %v2299 = vadd.f32 %v2074, %v2298
        %v2300 = vpop.f32.mrb[0].mxu0
        %2301 = vmatprep.mubr.f32.mxu0 %v1484
        %2302 = vmatmul.mubr.f32.gmra.mrb[0].mxu0 %v1483
        %v2303 = vpop.f32.mrb[0].mxu0
        %v2304 = vadd.f32 %v2079, %v2303
        %v2305 = vpop.f32.mrb[0].mxu0
        %2306 = vmatprep.mubr.f32.mxu0 %v1487
        %2307 = vmatmul.mubr.f32.gmra.mrb[0].mxu0 %v1486
        %v2308 = vpop.f32.mrb[0].mxu0
        %v2309 = vadd.f32 %v2084, %v2308
        %v2310 = vpop.f32.mrb[0].mxu0
        %2311 = vmatprep.mubr.f32.mxu0 %v1490
        %2312 = vmatmul.mubr.f32.gmra.mrb[0].mxu0 %v1489
        %v2313 = vpop.f32.mrb[0].mxu0
        %v2314 = vadd.f32 %v2089, %v2313
        %v2315 = vpop.f32.mrb[0].mxu0
        %2316 = vmatprep.mubr.f32.mxu0 %v1493
        %2317 = vmatmul.mubr.f32.gmra.mrb[0].mxu0 %v1492
        %v2318 = vpop.f32.mrb[0].mxu0
        %v2319 = vadd.f32 %v2094, %v2318
        %v2320 = vpop.f32.mrb[0].mxu0
        %2321 = vmatprep.mubr.f32.mxu0 %v1496
        %2322 = vmatmul.mubr.f32.gmra.mrb[0].mxu0 %v1495
        %v2323 = vpop.f32.mrb[0].mxu0
        %v2324 = vadd.f32 %v2099, %v2323
        %v2325 = vpop.f32.mrb[0].mxu0
        %2326 = vmatprep.mubr.f32.mxu0 %v1499
        %2327 = vmatmul.mubr.f32.gmra.mrb[0].mxu0 %v1498
        %v2328 = vpop.f32.mrb[0].mxu0
        %v2329 = vadd.f32 %v2104, %v2328
        %v2330 = vpop.f32.mrb[0].mxu0
        %2331 = vmatprep.mubr.f32.mxu0 %v1502
        %2332 = vmatmul.mubr.f32.gmra.mrb[0].mxu0 %v1501
        %v2333 = vpop.f32.mrb[0].mxu0
        %v2334 = vadd.f32 %v2109, %v2333
        %v2335 = vpop.f32.mrb[0].mxu0
        %2336 = vmatprep.mubr.f32.mxu0 %v1505
        %2337 = vmatmul.mubr.f32.gmra.mrb[0].mxu0 %v1504
        %v2338 = vpop.f32.mrb[0].mxu0
        %v2339 = vadd.f32 %v2114, %v2338
        %v2340 = vpop.f32.mrb[0].mxu0
        %2341 = vmatprep.mubr.f32.mxu0 %v1508
        %2342 = vmatmul.mubr.f32.gmra.mrb[0].mxu0 %v1507
        %v2343 = vpop.f32.mrb[0].mxu0
        %v2344 = vadd.f32 %v2119, %v2343
        %v2345 = vpop.f32.mrb[0].mxu0
        %2346 = vmatprep.mubr.f32.mxu0 %v1511
        %2347 = vmatmul.mubr.f32.gmra.mrb[0].mxu0 %v1510
        %v2348 = vpop.f32.mrb[0].mxu0
        %v2349 = vadd.f32 %v2124, %v2348
        %v2350 = vpop.f32.mrb[0].mxu0
        %2351 = vmatprep.mubr.f32.mxu0 %v1514
        %2352 = vmatmul.mubr.f32.gmra.mrb[0].mxu0 %v1513
        %v2353 = vpop.f32.mrb[0].mxu0
        %v2354 = vadd.f32 %v2129, %v2353
        %v2355 = vpop.f32.mrb[0].mxu0
        %2356 = vmatprep.mubr.f32.mxu0 %v1517
        %2357 = vmatmul.mubr.f32.gmra.mrb[0].mxu0 %v1516
        %v2358 = vpop.f32.mrb[0].mxu0
        %v2359 = vadd.f32 %v2134, %v2358
        %v2360 = vpop.f32.mrb[0].mxu0
        %2361 = vmatprep.mubr.f32.mxu0 %v1520
        %2362 = vmatmul.mubr.f32.gmra.mrb[0].mxu0 %v1519
        %v2363 = vpop.f32.mrb[0].mxu0
        %v2364 = vadd.f32 %v2139, %v2363
        %v2365 = vpop.f32.mrb[0].mxu0
        %2366 = vmatprep.mubr.f32.mxu0 %v1523
        %2367 = vmatmul.mubr.f32.gmra.mrb[0].mxu0 %v1522
        %v2368 = vpop.f32.mrb[0].mxu0
        %v2369 = vadd.f32 %v2144, %v2368
        %v2370 = vpop.f32.mrb[0].mxu0
        %2371 = vmatprep.mubr.f32.mxu0 %v1526
        %2372 = vmatmul.mubr.f32.gmra.mrb[0].mxu0 %v1525
        %v2373 = vpop.f32.mrb[0].mxu0
        %v2374 = vadd.f32 %v2149, %v2373
        %v2375 = vpop.f32.mrb[0].mxu0
        %2376 = vmatprep.mubr.f32.mxu0 %v1529
        %2377 = vmatmul.mubr.f32.gmra.mrb[0].mxu0 %v1528
        %v2378 = vpop.f32.mrb[0].mxu0
        %v2379 = vadd.f32 %v2154, %v2378
        %v2380 = vpop.f32.mrb[0].mxu0
        %2381 = vmatprep.mubr.f32.mxu0 %v1532
        %2382 = vmatmul.mubr.f32.gmra.mrb[0].mxu0 %v1531
        %v2383 = vpop.f32.mrb[0].mxu0
        %v2384 = vadd.f32 %v2159, %v2383
        %v2385 = vpop.f32.mrb[0].mxu0
        %2386 = vmatprep.mubr.f32.mxu0 %v1535
        %2387 = vmatmul.mubr.f32.gmra.mrb[0].mxu0 %v1534
        %v2388 = vpop.f32.mrb[0].mxu0
        %v2389 = vadd.f32 %v2164, %v2388
        %v2390 = vpop.f32.mrb[0].mxu0
        %2391 = vmatprep.mubr.f32.mxu0 %v1538
        %2392 = vmatmul.mubr.f32.gmra.mrb[0].mxu0 %v1537
        %v2393 = vpop.f32.mrb[0].mxu0
        %v2394 = vadd.f32 %v2169, %v2393
        %v2395 = vpop.f32.mrb[0].mxu0
        %2396 = vmatprep.mubr.f32.mxu0 %v1541
        %2397 = vmatmul.mubr.f32.gmra.mrb[0].mxu0 %v1540
        %v2398 = vpop.f32.mrb[0].mxu0
        %v2399 = vadd.f32 %v2174, %v2398
        %v2400 = vpop.f32.mrb[0].mxu0
        %2401 = vmatprep.mubr.f32.mxu0 %v1544
        %2402 = vmatmul.mubr.f32.gmra.mrb[0].mxu0 %v1543
        %v2403 = vpop.f32.mrb[0].mxu0
        %v2404 = vadd.f32 %v2179, %v2403
        %v2405 = vpop.f32.mrb[0].mxu0
        %2406 = vmatprep.mubr.f32.mxu0 %v1547
        %2407 = vmatmul.mubr.f32.gmra.mrb[0].mxu0 %v1546
        %v2408 = vpop.f32.mrb[0].mxu0
        %v2409 = vadd.f32 %v2184, %v2408
        %v2410 = vpop.f32.mrb[0].mxu0
        %2411 = vmatprep.mubr.f32.mxu0 %v1550
        %2412 = vmatmul.mubr.f32.gmra.mrb[0].mxu0 %v1549
        %v2413 = vpop.f32.mrb[0].mxu0
        %v2414 = vadd.f32 %v2189, %v2413
        %v2415 = vpop.f32.mrb[0].mxu0
        %2416 = vmatprep.mubr.f32.mxu0 %v1553
        %2417 = vmatmul.mubr.f32.gmra.mrb[0].mxu0 %v1552
        %v2418 = vpop.f32.mrb[0].mxu0
        %v2419 = vadd.f32 %v2194, %v2418
        %v2420 = vpop.f32.mrb[0].mxu0
        %2421 = vmatprep.mubr.f32.mxu0 %v1556
        %2422 = vmatmul.mubr.f32.gmra.mrb[0].mxu0 %v1555
        %v2423 = vpop.f32.mrb[0].mxu0
        %v2424 = vadd.f32 %v2199, %v2423
        %v2425 = vpop.f32.mrb[0].mxu0
        %2426 = vdwg.mxu0
        %2427 = vmatprep.subr.mxu0 0.0
        %2428 = vmatpush1.msra.mxu0 %v1590
        %2429 = vmatprep.subr.mxu0 0.0
        %2430 = vmatpush1.msra.mxu0 %v1591
        %2431 = vmatprep.subr.mxu0 0.0
        %2432 = vmatpush1.msra.mxu0 %v1592
        %2433 = vmatprep.subr.mxu0 0.0
        %2434 = vmatpush1.msra.mxu0 %v1593
        %2435 = vmatprep.subr.mxu0 0.0
        %2436 = vmatpush1.msra.mxu0 %v1594
        %2437 = vmatprep.subr.mxu0 0.0
        %2438 = vmatpush1.msra.mxu0 %v1595
        %2439 = vmatprep.subr.mxu0 0.0
        %2440 = vmatpush1.msra.mxu0 %v1596
        %2441 = vmatprep.subr.mxu0 0.0
        %2442 = vmatpush1.msra.mxu0 %v1597
        %2443 = vmatprep.subr.mxu0 0.0
        %2444 = vmatpush1.msra.mxu0 %v1598
        %2445 = vmatprep.subr.mxu0 0.0
        %2446 = vmatpush1.msra.mxu0 %v1599
        %2447 = vmatprep.subr.mxu0 0.0
        %2448 = vmatpush1.msra.mxu0 %v1600
        %2449 = vmatprep.subr.mxu0 0.0
        %2450 = vmatpush1.msra.mxu0 %v1601
        %2451 = vmatprep.subr.mxu0 0.0
        %2452 = vmatpush1.msra.mxu0 %v1602
        %2453 = vmatprep.subr.mxu0 0.0
        %2454 = vmatpush1.msra.mxu0 %v1603
        %2455 = vmatprep.subr.mxu0 0.0
        %2456 = vmatpush1.msra.mxu0 %v1604
        %2457 = vmatprep.subr.mxu0 0.0
        %2458 = vmatpush1.msra.mxu0 %v1605
        %2459 = vmatprep.subr.mxu0 0.0
        %2460 = vmatpush1.msra.mxu0 0.0
        %2461 = vmatprep.subr.mxu0 0.0
        %2462 = vmatpush1.msra.mxu0 0.0
        %2463 = vmatprep.subr.mxu0 0.0
        %2464 = vmatpush1.msra.mxu0 0.0
        %2465 = vmatprep.subr.mxu0 0.0
        %2466 = vmatpush1.msra.mxu0 0.0
        %2467 = vmatprep.subr.mxu0 0.0
        %2468 = vmatpush1.msra.mxu0 0.0
        %2469 = vmatprep.subr.mxu0 0.0
        %2470 = vmatpush1.msra.mxu0 0.0
        %2471 = vmatprep.subr.mxu0 0.0
        %2472 = vmatpush1.msra.mxu0 0.0
        %2473 = vmatprep.subr.mxu0 0.0
        %2474 = vmatpush1.msra.mxu0 0.0
        %2475 = vmatprep.subr.mxu0 0.0
        %2476 = vmatpush1.msra.mxu0 0.0
        %2477 = vmatprep.subr.mxu0 0.0
        %2478 = vmatpush1.msra.mxu0 0.0
        %2479 = vmatprep.subr.mxu0 0.0
        %2480 = vmatpush1.msra.mxu0 0.0
        %2481 = vmatprep.subr.mxu0 0.0
        %2482 = vmatpush1.msra.mxu0 0.0
        %2483 = vmatprep.subr.mxu0 0.0
        %2484 = vmatpush1.msra.mxu0 0.0
        %2485 = vmatprep.subr.mxu0 0.0
        %2486 = vmatpush1.msra.mxu0 0.0
        %2487 = vmatprep.subr.mxu0 0.0
        %2488 = vmatpush1.msra.mxu0 0.0
        %2489 = vmatprep.subr.mxu0 0.0
        %2490 = vmatpush1.msra.mxu0 0.0
        %2491 = vmatprep.mubr.f32.mxu0 0.0
        %2492 = vmatmul.mubr.f32.gmra.mrb[0].mxu0 %v1464
        %v2493 = vpop.f32.mrb[0].mxu0
        %v2494 = vadd.f32 %v2269, %v2493
        %v2495 = vpop.f32.mrb[0].mxu0
        %2496 = vmatprep.mubr.f32.mxu0 0.0
        %2497 = vmatmul.mubr.f32.gmra.mrb[0].mxu0 %v1467
        %v2498 = vpop.f32.mrb[0].mxu0
        %v2499 = vadd.f32 %v2274, %v2498
        %v2500 = vpop.f32.mrb[0].mxu0
        %2501 = vmatprep.mubr.f32.mxu0 0.0
        %2502 = vmatmul.mubr.f32.gmra.mrb[0].mxu0 %v1470
        %v2503 = vpop.f32.mrb[0].mxu0
        %v2504 = vadd.f32 %v2279, %v2503
        %v2505 = vpop.f32.mrb[0].mxu0
        %2506 = vmatprep.mubr.f32.mxu0 0.0
        %2507 = vmatmul.mubr.f32.gmra.mrb[0].mxu0 %v1473
        %v2508 = vpop.f32.mrb[0].mxu0
        %v2509 = vadd.f32 %v2284, %v2508
        %v2510 = vpop.f32.mrb[0].mxu0
        %2511 = vmatprep.mubr.f32.mxu0 0.0
        %2512 = vmatmul.mubr.f32.gmra.mrb[0].mxu0 %v1476
        %v2513 = vpop.f32.mrb[0].mxu0
        %v2514 = vadd.f32 %v2289, %v2513
        %v2515 = vpop.f32.mrb[0].mxu0
        %2516 = vmatprep.mubr.f32.mxu0 0.0
        %2517 = vmatmul.mubr.f32.gmra.mrb[0].mxu0 %v1479
        %v2518 = vpop.f32.mrb[0].mxu0
        %v2519 = vadd.f32 %v2294, %v2518
        %v2520 = vpop.f32.mrb[0].mxu0
        %2521 = vmatprep.mubr.f32.mxu0 0.0
        %2522 = vmatmul.mubr.f32.gmra.mrb[0].mxu0 %v1482
        %v2523 = vpop.f32.mrb[0].mxu0
        %v2524 = vadd.f32 %v2299, %v2523
        %v2525 = vpop.f32.mrb[0].mxu0
        %2526 = vmatprep.mubr.f32.mxu0 0.0
        %2527 = vmatmul.mubr.f32.gmra.mrb[0].mxu0 %v1485
        %v2528 = vpop.f32.mrb[0].mxu0
        %v2529 = vadd.f32 %v2304, %v2528
        %v2530 = vpop.f32.mrb[0].mxu0
        %2531 = vmatprep.mubr.f32.mxu0 0.0
        %2532 = vmatmul.mubr.f32.gmra.mrb[0].mxu0 %v1488
        %v2533 = vpop.f32.mrb[0].mxu0
        %v2534 = vadd.f32 %v2309, %v2533
        %v2535 = vpop.f32.mrb[0].mxu0
        %2536 = vmatprep.mubr.f32.mxu0 0.0
        %2537 = vmatmul.mubr.f32.gmra.mrb[0].mxu0 %v1491
        %v2538 = vpop.f32.mrb[0].mxu0
        %v2539 = vadd.f32 %v2314, %v2538
        %v2540 = vpop.f32.mrb[0].mxu0
        %2541 = vmatprep.mubr.f32.mxu0 0.0
        %2542 = vmatmul.mubr.f32.gmra.mrb[0].mxu0 %v1494
        %v2543 = vpop.f32.mrb[0].mxu0
        %v2544 = vadd.f32 %v2319, %v2543
        %v2545 = vpop.f32.mrb[0].mxu0
        %2546 = vmatprep.mubr.f32.mxu0 0.0
        %2547 = vmatmul.mubr.f32.gmra.mrb[0].mxu0 %v1497
        %v2548 = vpop.f32.mrb[0].mxu0
        %v2549 = vadd.f32 %v2324, %v2548
        %v2550 = vpop.f32.mrb[0].mxu0
        %2551 = vmatprep.mubr.f32.mxu0 0.0
        %2552 = vmatmul.mubr.f32.gmra.mrb[0].mxu0 %v1500
        %v2553 = vpop.f32.mrb[0].mxu0
        %v2554 = vadd.f32 %v2329, %v2553
        %v2555 = vpop.f32.mrb[0].mxu0
        %2556 = vmatprep.mubr.f32.mxu0 0.0
        %2557 = vmatmul.mubr.f32.gmra.mrb[0].mxu0 %v1503
        %v2558 = vpop.f32.mrb[0].mxu0
        %v2559 = vadd.f32 %v2334, %v2558
        %v2560 = vpop.f32.mrb[0].mxu0
        %2561 = vmatprep.mubr.f32.mxu0 0.0
        %2562 = vmatmul.mubr.f32.gmra.mrb[0].mxu0 %v1506
        %v2563 = vpop.f32.mrb[0].mxu0
        %v2564 = vadd.f32 %v2339, %v2563
        %v2565 = vpop.f32.mrb[0].mxu0
        %2566 = vmatprep.mubr.f32.mxu0 0.0
        %2567 = vmatmul.mubr.f32.gmra.mrb[0].mxu0 %v1509
        %v2568 = vpop.f32.mrb[0].mxu0
        %v2569 = vadd.f32 %v2344, %v2568
        %v2570 = vpop.f32.mrb[0].mxu0
        %2571 = vmatprep.mubr.f32.mxu0 0.0
        %2572 = vmatmul.mubr.f32.gmra.mrb[0].mxu0 %v1512
        %v2573 = vpop.f32.mrb[0].mxu0
        %v2574 = vadd.f32 %v2349, %v2573
        %v2575 = vpop.f32.mrb[0].mxu0
        %2576 = vmatprep.mubr.f32.mxu0 0.0
        %2577 = vmatmul.mubr.f32.gmra.mrb[0].mxu0 %v1515
        %v2578 = vpop.f32.mrb[0].mxu0
        %v2579 = vadd.f32 %v2354, %v2578
        %v2580 = vpop.f32.mrb[0].mxu0
        %2581 = vmatprep.mubr.f32.mxu0 0.0
        %2582 = vmatmul.mubr.f32.gmra.mrb[0].mxu0 %v1518
        %v2583 = vpop.f32.mrb[0].mxu0
        %v2584 = vadd.f32 %v2359, %v2583
        %v2585 = vpop.f32.mrb[0].mxu0
        %2586 = vmatprep.mubr.f32.mxu0 0.0
        %2587 = vmatmul.mubr.f32.gmra.mrb[0].mxu0 %v1521
        %v2588 = vpop.f32.mrb[0].mxu0
        %v2589 = vadd.f32 %v2364, %v2588
        %v2590 = vpop.f32.mrb[0].mxu0
        %2591 = vmatprep.mubr.f32.mxu0 0.0
        %2592 = vmatmul.mubr.f32.gmra.mrb[0].mxu0 %v1524
        %v2593 = vpop.f32.mrb[0].mxu0
        %v2594 = vadd.f32 %v2369, %v2593
        %v2595 = vpop.f32.mrb[0].mxu0
        %2596 = vmatprep.mubr.f32.mxu0 0.0
        %2597 = vmatmul.mubr.f32.gmra.mrb[0].mxu0 %v1527
        %v2598 = vpop.f32.mrb[0].mxu0
        %v2599 = vadd.f32 %v2374, %v2598
        %v2600 = vpop.f32.mrb[0].mxu0
        %2601 = vmatprep.mubr.f32.mxu0 0.0
        %2602 = vmatmul.mubr.f32.gmra.mrb[0].mxu0 %v1530
        %v2603 = vpop.f32.mrb[0].mxu0
        %v2604 = vadd.f32 %v2379, %v2603
        %v2605 = vpop.f32.mrb[0].mxu0
        %2606 = vmatprep.mubr.f32.mxu0 0.0
        %2607 = vmatmul.mubr.f32.gmra.mrb[0].mxu0 %v1533
        %v2608 = vpop.f32.mrb[0].mxu0
        %v2609 = vadd.f32 %v2384, %v2608
        %v2610 = vpop.f32.mrb[0].mxu0
        %2611 = vmatprep.mubr.f32.mxu0 0.0
        %2612 = vmatmul.mubr.f32.gmra.mrb[0].mxu0 %v1536
        %v2613 = vpop.f32.mrb[0].mxu0
        %v2614 = vadd.f32 %v2389, %v2613
        %v2615 = vpop.f32.mrb[0].mxu0
        %2616 = vmatprep.mubr.f32.mxu0 0.0
        %2617 = vmatmul.mubr.f32.gmra.mrb[0].mxu0 %v1539
        %v2618 = vpop.f32.mrb[0].mxu0
        %v2619 = vadd.f32 %v2394, %v2618
        %v2620 = vpop.f32.mrb[0].mxu0
        %2621 = vmatprep.mubr.f32.mxu0 0.0
        %2622 = vmatmul.mubr.f32.gmra.mrb[0].mxu0 %v1542
        %v2623 = vpop.f32.mrb[0].mxu0
        %v2624 = vadd.f32 %v2399, %v2623
        %v2625 = vpop.f32.mrb[0].mxu0
        %2626 = vmatprep.mubr.f32.mxu0 0.0
        %2627 = vmatmul.mubr.f32.gmra.mrb[0].mxu0 %v1545
        %v2628 = vpop.f32.mrb[0].mxu0
        %v2629 = vadd.f32 %v2404, %v2628
        %v2630 = vpop.f32.mrb[0].mxu0
        %2631 = vmatprep.mubr.f32.mxu0 0.0
        %2632 = vmatmul.mubr.f32.gmra.mrb[0].mxu0 %v1548
        %v2633 = vpop.f32.mrb[0].mxu0
        %v2634 = vadd.f32 %v2409, %v2633
        %v2635 = vpop.f32.mrb[0].mxu0
        %2636 = vmatprep.mubr.f32.mxu0 0.0
        %2637 = vmatmul.mubr.f32.gmra.mrb[0].mxu0 %v1551
        %v2638 = vpop.f32.mrb[0].mxu0
        %v2639 = vadd.f32 %v2414, %v2638
        %v2640 = vpop.f32.mrb[0].mxu0
        %2641 = vmatprep.mubr.f32.mxu0 0.0
        %2642 = vmatmul.mubr.f32.gmra.mrb[0].mxu0 %v1554
        %v2643 = vpop.f32.mrb[0].mxu0
        %v2644 = vadd.f32 %v2419, %v2643
        %v2645 = vpop.f32.mrb[0].mxu0
        %2646 = vmatprep.mubr.f32.mxu0 0.0
        %2647 = vmatmul.mubr.f32.gmra.mrb[0].mxu0 %v1557
        %v2648 = vpop.f32.mrb[0].mxu0
        %v2649 = vadd.f32 %v2424, %v2648
        %v2650 = vpop.f32.mrb[0].mxu0
        %2651 = vdwg.mxu0
        %s2652 = scalar_lea.vmem [#allocation2], 96
        %v2653 = vld [vmem:[%s2652] sm:$0xff]
        %v2654 = vld [vmem:[%s2652 + $0x8] sm:$0xff]
        %v2655 = vld [vmem:[%s2652 + $0x10] sm:$0xff]
        %v2656 = vld [vmem:[%s2652 + $0x18] sm:$0xff]
        %v2657 = vld [vmem:[%s2652 + $0x20] sm:$0xff]
        %v2658 = vld [vmem:[%s2652 + $0x28] sm:$0xff]
        %v2659 = vld [vmem:[%s2652 + $0x30] sm:$0xff]
        %v2660 = vld [vmem:[%s2652 + $0x38] sm:$0xff]
        %v2661 = vld [vmem:[%s2652 + $0x40] sm:$0xff]
        %v2662 = vld [vmem:[%s2652 + $0x48] sm:$0xff]
        %v2663 = vld [vmem:[%s2652 + $0x50] sm:$0xff]
        %v2664 = vld [vmem:[%s2652 + $0x58] sm:$0xff]
        %v2665 = vld [vmem:[%s2652 + $0x60] sm:$0xff]
        %v2666 = vld [vmem:[%s2652 + $0x68] sm:$0xff]
        %v2667 = vld [vmem:[%s2652 + $0x70] sm:$0xff]
        %v2668 = vld [vmem:[%s2652 + $0x78] sm:$0xff]
        %v2669 = vld [vmem:[%s2652 + $0x80] sm:$0xff]
        %v2670 = vld [vmem:[%s2652 + $0x88] sm:$0xff]
        %v2671 = vld [vmem:[%s2652 + $0x90] sm:$0xff]
        %v2672 = vld [vmem:[%s2652 + $0x98] sm:$0xff]
        %v2673 = vld [vmem:[%s2652 + $0xa0] sm:$0xff]
        %v2674 = vld [vmem:[%s2652 + $0xa8] sm:$0xff]
        %v2675 = vld [vmem:[%s2652 + $0xb0] sm:$0xff]
        %v2676 = vld [vmem:[%s2652 + $0xb8] sm:$0xff]
        %v2677 = vld [vmem:[%s2652 + $0xc0] sm:$0xff]
        %v2678 = vld [vmem:[%s2652 + $0xc8] sm:$0xff]
        %v2679 = vld [vmem:[%s2652 + $0xd0] sm:$0xff]
        %v2680 = vld [vmem:[%s2652 + $0xd8] sm:$0xff]
        %v2681 = vld [vmem:[%s2652 + $0xe0] sm:$0xff]
        %v2682 = vld [vmem:[%s2652 + $0xe8] sm:$0xff]
        %v2683 = vld [vmem:[%s2652 + $0xf0] sm:$0xff]
        %v2684 = vld [vmem:[%s2652 + $0xf8] sm:$0xff]
        %v2685 = vld [vmem:[%s2652 + $0x100] sm:$0xff]
        %v2686 = vld [vmem:[%s2652 + $0x108] sm:$0xff]
        %v2687 = vld [vmem:[%s2652 + $0x110] sm:$0xff]
        %v2688 = vld [vmem:[%s2652 + $0x118] sm:$0xff]
        %v2689 = vld [vmem:[%s2652 + $0x120] sm:$0xff]
        %v2690 = vld [vmem:[%s2652 + $0x128] sm:$0xff]
        %v2691 = vld [vmem:[%s2652 + $0x130] sm:$0xff]
        %v2692 = vld [vmem:[%s2652 + $0x138] sm:$0xff]
        %v2693 = vld [vmem:[%s2652 + $0x140] sm:$0xff]
        %v2694 = vld [vmem:[%s2652 + $0x148] sm:$0xff]
        %v2695 = vld [vmem:[%s2652 + $0x150] sm:$0xff]
        %v2696 = vld [vmem:[%s2652 + $0x158] sm:$0xff]
        %v2697 = vld [vmem:[%s2652 + $0x160] sm:$0xff]
        %v2698 = vld [vmem:[%s2652 + $0x168] sm:$0xff]
        %v2699 = vld [vmem:[%s2652 + $0x170] sm:$0xff]
        %v2700 = vld [vmem:[%s2652 + $0x178] sm:$0xff]
        %v2701 = vld [vmem:[%s2652 + $0x1e0] sm:$0xff]
        %v2702 = vld [vmem:[%s2652 + $0x1e8] sm:$0xff]
        %v2703 = vld [vmem:[%s2652 + $0x1f0] sm:$0xff]
        %v2704 = vld [vmem:[%s2652 + $0x1f8] sm:$0xff]
        %v2705 = vld [vmem:[%s2652 + $0x200] sm:$0xff]
        %v2706 = vld [vmem:[%s2652 + $0x208] sm:$0xff]
        %v2707 = vld [vmem:[%s2652 + $0x210] sm:$0xff]
        %v2708 = vld [vmem:[%s2652 + $0x218] sm:$0xff]
        %v2709 = vld [vmem:[%s2652 + $0x220] sm:$0xff]
        %v2710 = vld [vmem:[%s2652 + $0x228] sm:$0xff]
        %v2711 = vld [vmem:[%s2652 + $0x230] sm:$0xff]
        %v2712 = vld [vmem:[%s2652 + $0x238] sm:$0xff]
        %v2713 = vld [vmem:[%s2652 + $0x240] sm:$0xff]
        %v2714 = vld [vmem:[%s2652 + $0x248] sm:$0xff]
        %v2715 = vld [vmem:[%s2652 + $0x250] sm:$0xff]
        %v2716 = vld [vmem:[%s2652 + $0x258] sm:$0xff]
        %v2717 = vld [vmem:[%s2652 + $0x260] sm:$0xff]
        %v2718 = vld [vmem:[%s2652 + $0x268] sm:$0xff]
        %v2719 = vld [vmem:[%s2652 + $0x270] sm:$0xff]
        %v2720 = vld [vmem:[%s2652 + $0x278] sm:$0xff]
        %v2721 = vld [vmem:[%s2652 + $0x280] sm:$0xff]
        %v2722 = vld [vmem:[%s2652 + $0x288] sm:$0xff]
        %v2723 = vld [vmem:[%s2652 + $0x290] sm:$0xff]
        %v2724 = vld [vmem:[%s2652 + $0x298] sm:$0xff]
        %v2725 = vld [vmem:[%s2652 + $0x2a0] sm:$0xff]
        %v2726 = vld [vmem:[%s2652 + $0x2a8] sm:$0xff]
        %v2727 = vld [vmem:[%s2652 + $0x2b0] sm:$0xff]
        %v2728 = vld [vmem:[%s2652 + $0x2b8] sm:$0xff]
        %v2729 = vld [vmem:[%s2652 + $0x2c0] sm:$0xff]
        %v2730 = vld [vmem:[%s2652 + $0x2c8] sm:$0xff]
        %v2731 = vld [vmem:[%s2652 + $0x2d0] sm:$0xff]
        %v2732 = vld [vmem:[%s2652 + $0x2d8] sm:$0xff]
        %v2733 = vld [vmem:[%s2652 + $0x2e0] sm:$0xff]
        %v2734 = vld [vmem:[%s2652 + $0x2e8] sm:$0xff]
        %v2735 = vld [vmem:[%s2652 + $0x2f0] sm:$0xff]
        %v2736 = vld [vmem:[%s2652 + $0x2f8] sm:$0xff]
        %v2737 = vld [vmem:[%s2652 + $0x300] sm:$0xff]
        %v2738 = vld [vmem:[%s2652 + $0x308] sm:$0xff]
        %v2739 = vld [vmem:[%s2652 + $0x310] sm:$0xff]
        %v2740 = vld [vmem:[%s2652 + $0x318] sm:$0xff]
        %v2741 = vld [vmem:[%s2652 + $0x320] sm:$0xff]
        %v2742 = vld [vmem:[%s2652 + $0x328] sm:$0xff]
        %v2743 = vld [vmem:[%s2652 + $0x330] sm:$0xff]
        %v2744 = vld [vmem:[%s2652 + $0x338] sm:$0xff]
        %v2745 = vld [vmem:[%s2652 + $0x340] sm:$0xff]
        %v2746 = vld [vmem:[%s2652 + $0x348] sm:$0xff]
        %v2747 = vld [vmem:[%s2652 + $0x350] sm:$0xff]
        %v2748 = vld [vmem:[%s2652 + $0x358] sm:$0xff]
        %s2749 = scalar_lea.vmem [#allocation9], 768
        %v2750 = vld [vmem:[%s2749] sm:$0xff]
        %v2751 = vld [vmem:[%s2749 + $0x8] sm:$0xff]
        %v2752 = vld [vmem:[%s2749 + $0x10] sm:$0xff]
        %v2753 = vld [vmem:[%s2749 + $0x18] sm:$0xff]
        %v2754 = vld [vmem:[%s2749 + $0x20] sm:$0xff]
        %v2755 = vld [vmem:[%s2749 + $0x28] sm:$0xff]
        %v2756 = vld [vmem:[%s2749 + $0x30] sm:$0xff]
        %v2757 = vld [vmem:[%s2749 + $0x38] sm:$0xff]
        %v2758 = vld [vmem:[%s2749 + $0x40] sm:$0xff]
        %v2759 = vld [vmem:[%s2749 + $0x48] sm:$0xff]
        %v2760 = vld [vmem:[%s2749 + $0x50] sm:$0xff]
        %v2761 = vld [vmem:[%s2749 + $0x58] sm:$0xff]
        %v2762 = vld [vmem:[%s2749 + $0x60] sm:$0xff]
        %v2763 = vld [vmem:[%s2749 + $0x68] sm:$0xff]
        %v2764 = vld [vmem:[%s2749 + $0x70] sm:$0xff]
        %v2765 = vld [vmem:[%s2749 + $0x78] sm:$0xff]
        %v2766 = vld [vmem:[%s2749 + $0x80] sm:$0xff]
        %v2767 = vld [vmem:[%s2749 + $0x88] sm:$0xff]
        %v2768 = vld [vmem:[%s2749 + $0x90] sm:$0xff]
        %v2769 = vld [vmem:[%s2749 + $0x98] sm:$0xff]
        %v2770 = vld [vmem:[%s2749 + $0xa0] sm:$0xff]
        %v2771 = vld [vmem:[%s2749 + $0xa8] sm:$0xff]
        %v2772 = vld [vmem:[%s2749 + $0xb0] sm:$0xff]
        %v2773 = vld [vmem:[%s2749 + $0xb8] sm:$0xff]
        %v2774 = vld [vmem:[%s2749 + $0xc0] sm:$0xff]
        %v2775 = vld [vmem:[%s2749 + $0xc8] sm:$0xff]
        %v2776 = vld [vmem:[%s2749 + $0xd0] sm:$0xff]
        %v2777 = vld [vmem:[%s2749 + $0xd8] sm:$0xff]
        %v2778 = vld [vmem:[%s2749 + $0xe0] sm:$0xff]
        %v2779 = vld [vmem:[%s2749 + $0xe8] sm:$0xff]
        %v2780 = vld [vmem:[%s2749 + $0xf0] sm:$0xff]
        %v2781 = vld [vmem:[%s2749 + $0xf8] sm:$0xff]
        %v2782 = vld [vmem:[%s2749 + $0x100] sm:$0xff]
        %v2783 = vld [vmem:[%s2749 + $0x108] sm:$0xff]
        %v2784 = vld [vmem:[%s2749 + $0x110] sm:$0xff]
        %v2785 = vld [vmem:[%s2749 + $0x118] sm:$0xff]
        %v2786 = vld [vmem:[%s2749 + $0x120] sm:$0xff]
        %v2787 = vld [vmem:[%s2749 + $0x128] sm:$0xff]
        %v2788 = vld [vmem:[%s2749 + $0x130] sm:$0xff]
        %v2789 = vld [vmem:[%s2749 + $0x138] sm:$0xff]
        %v2790 = vld [vmem:[%s2749 + $0x140] sm:$0xff]
        %v2791 = vld [vmem:[%s2749 + $0x148] sm:$0xff]
        %v2792 = vld [vmem:[%s2749 + $0x150] sm:$0xff]
        %v2793 = vld [vmem:[%s2749 + $0x158] sm:$0xff]
        %v2794 = vld [vmem:[%s2749 + $0x160] sm:$0xff]
        %v2795 = vld [vmem:[%s2749 + $0x168] sm:$0xff]
        %v2796 = vld [vmem:[%s2749 + $0x170] sm:$0xff]
        %v2797 = vld [vmem:[%s2749 + $0x178] sm:$0xff]
        %2798 = vmatprep.subr.mxu0 0.0
        %2799 = vmatpush1.msra.mxu0 %v2750
        %2800 = vmatprep.subr.mxu0 0.0
        %2801 = vmatpush1.msra.mxu0 %v2751
        %2802 = vmatprep.subr.mxu0 0.0
        %2803 = vmatpush1.msra.mxu0 %v2752
        %2804 = vmatprep.subr.mxu0 0.0
        %2805 = vmatpush1.msra.mxu0 %v2753
        %2806 = vmatprep.subr.mxu0 0.0
        %2807 = vmatpush1.msra.mxu0 %v2754
        %2808 = vmatprep.subr.mxu0 0.0
        %2809 = vmatpush1.msra.mxu0 %v2755
        %2810 = vmatprep.subr.mxu0 0.0
        %2811 = vmatpush1.msra.mxu0 %v2756
        %2812 = vmatprep.subr.mxu0 0.0
        %2813 = vmatpush1.msra.mxu0 %v2757
        %2814 = vmatprep.subr.mxu0 0.0
        %2815 = vmatpush1.msra.mxu0 %v2758
        %2816 = vmatprep.subr.mxu0 0.0
        %2817 = vmatpush1.msra.mxu0 %v2759
        %2818 = vmatprep.subr.mxu0 0.0
        %2819 = vmatpush1.msra.mxu0 %v2760
        %2820 = vmatprep.subr.mxu0 0.0
        %2821 = vmatpush1.msra.mxu0 %v2761
        %2822 = vmatprep.subr.mxu0 0.0
        %2823 = vmatpush1.msra.mxu0 %v2762
        %2824 = vmatprep.subr.mxu0 0.0
        %2825 = vmatpush1.msra.mxu0 %v2763
        %2826 = vmatprep.subr.mxu0 0.0
        %2827 = vmatpush1.msra.mxu0 %v2764
        %2828 = vmatprep.subr.mxu0 0.0
        %2829 = vmatpush1.msra.mxu0 %v2765
        %2830 = vmatprep.subr.mxu0 0.0
        %2831 = vmatpush1.msra.mxu0 %v2766
        %2832 = vmatprep.subr.mxu0 0.0
        %2833 = vmatpush1.msra.mxu0 %v2767
        %2834 = vmatprep.subr.mxu0 0.0
        %2835 = vmatpush1.msra.mxu0 %v2768
        %2836 = vmatprep.subr.mxu0 0.0
        %2837 = vmatpush1.msra.mxu0 %v2769
        %2838 = vmatprep.subr.mxu0 0.0
        %2839 = vmatpush1.msra.mxu0 %v2770
        %2840 = vmatprep.subr.mxu0 0.0
        %2841 = vmatpush1.msra.mxu0 %v2771
        %2842 = vmatprep.subr.mxu0 0.0
        %2843 = vmatpush1.msra.mxu0 %v2772
        %2844 = vmatprep.subr.mxu0 0.0
        %2845 = vmatpush1.msra.mxu0 %v2773
        %2846 = vmatprep.subr.mxu0 0.0
        %2847 = vmatpush1.msra.mxu0 %v2774
        %2848 = vmatprep.subr.mxu0 0.0
        %2849 = vmatpush1.msra.mxu0 %v2775
        %2850 = vmatprep.subr.mxu0 0.0
        %2851 = vmatpush1.msra.mxu0 %v2776
        %2852 = vmatprep.subr.mxu0 0.0
        %2853 = vmatpush1.msra.mxu0 %v2777
        %2854 = vmatprep.subr.mxu0 0.0
        %2855 = vmatpush1.msra.mxu0 %v2778
        %2856 = vmatprep.subr.mxu0 0.0
        %2857 = vmatpush1.msra.mxu0 %v2779
        %2858 = vmatprep.subr.mxu0 0.0
        %2859 = vmatpush1.msra.mxu0 %v2780
        %2860 = vmatprep.subr.mxu0 0.0
        %2861 = vmatpush1.msra.mxu0 %v2781
        %2862 = vmatprep.mubr.f32.mxu0 %v2654
        %2863 = vmatmul.mubr.f32.gmra.mrb[0].mxu0 %v2653
        %v2864 = vpop.f32.mrb[0].mxu0
        %v2865 = vadd.f32 0.0, %v2864
        %v2866 = vpop.f32.mrb[0].mxu0
        %2867 = vmatprep.mubr.f32.mxu0 %v2657
        %2868 = vmatmul.mubr.f32.gmra.mrb[0].mxu0 %v2656
        %v2869 = vpop.f32.mrb[0].mxu0
        %v2870 = vadd.f32 0.0, %v2869
        %v2871 = vpop.f32.mrb[0].mxu0
        %2872 = vmatprep.mubr.f32.mxu0 %v2660
        %2873 = vmatmul.mubr.f32.gmra.mrb[0].mxu0 %v2659
        %v2874 = vpop.f32.mrb[0].mxu0
        %v2875 = vadd.f32 0.0, %v2874
        %v2876 = vpop.f32.mrb[0].mxu0
        %2877 = vmatprep.mubr.f32.mxu0 %v2663
        %2878 = vmatmul.mubr.f32.gmra.mrb[0].mxu0 %v2662
        %v2879 = vpop.f32.mrb[0].mxu0
        %v2880 = vadd.f32 0.0, %v2879
        %v2881 = vpop.f32.mrb[0].mxu0
        %2882 = vmatprep.mubr.f32.mxu0 %v2666
        %2883 = vmatmul.mubr.f32.gmra.mrb[0].mxu0 %v2665
        %v2884 = vpop.f32.mrb[0].mxu0
        %v2885 = vadd.f32 0.0, %v2884
        %v2886 = vpop.f32.mrb[0].mxu0
        %2887 = vmatprep.mubr.f32.mxu0 %v2669
        %2888 = vmatmul.mubr.f32.gmra.mrb[0].mxu0 %v2668
        %v2889 = vpop.f32.mrb[0].mxu0
        %v2890 = vadd.f32 0.0, %v2889
        %v2891 = vpop.f32.mrb[0].mxu0
        %2892 = vmatprep.mubr.f32.mxu0 %v2672
        %2893 = vmatmul.mubr.f32.gmra.mrb[0].mxu0 %v2671
        %v2894 = vpop.f32.mrb[0].mxu0
        %v2895 = vadd.f32 0.0, %v2894
        %v2896 = vpop.f32.mrb[0].mxu0
        %2897 = vmatprep.mubr.f32.mxu0 %v2675
        %2898 = vmatmul.mubr.f32.gmra.mrb[0].mxu0 %v2674
        %v2899 = vpop.f32.mrb[0].mxu0
        %v2900 = vadd.f32 0.0, %v2899
        %v2901 = vpop.f32.mrb[0].mxu0
        %2902 = vmatprep.mubr.f32.mxu0 %v2678
        %2903 = vmatmul.mubr.f32.gmra.mrb[0].mxu0 %v2677
        %v2904 = vpop.f32.mrb[0].mxu0
        %v2905 = vadd.f32 0.0, %v2904
        %v2906 = vpop.f32.mrb[0].mxu0
        %2907 = vmatprep.mubr.f32.mxu0 %v2681
        %2908 = vmatmul.mubr.f32.gmra.mrb[0].mxu0 %v2680
        %v2909 = vpop.f32.mrb[0].mxu0
        %v2910 = vadd.f32 0.0, %v2909
        %v2911 = vpop.f32.mrb[0].mxu0
        %2912 = vmatprep.mubr.f32.mxu0 %v2684
        %2913 = vmatmul.mubr.f32.gmra.mrb[0].mxu0 %v2683
        %v2914 = vpop.f32.mrb[0].mxu0
        %v2915 = vadd.f32 0.0, %v2914
        %v2916 = vpop.f32.mrb[0].mxu0
        %2917 = vmatprep.mubr.f32.mxu0 %v2687
        %2918 = vmatmul.mubr.f32.gmra.mrb[0].mxu0 %v2686
        %v2919 = vpop.f32.mrb[0].mxu0
        %v2920 = vadd.f32 0.0, %v2919
        %v2921 = vpop.f32.mrb[0].mxu0
        %2922 = vmatprep.mubr.f32.mxu0 %v2690
        %2923 = vmatmul.mubr.f32.gmra.mrb[0].mxu0 %v2689
        %v2924 = vpop.f32.mrb[0].mxu0
        %v2925 = vadd.f32 0.0, %v2924
        %v2926 = vpop.f32.mrb[0].mxu0
        %2927 = vmatprep.mubr.f32.mxu0 %v2693
        %2928 = vmatmul.mubr.f32.gmra.mrb[0].mxu0 %v2692
        %v2929 = vpop.f32.mrb[0].mxu0
        %v2930 = vadd.f32 0.0, %v2929
        %v2931 = vpop.f32.mrb[0].mxu0
        %2932 = vmatprep.mubr.f32.mxu0 %v2696
        %2933 = vmatmul.mubr.f32.gmra.mrb[0].mxu0 %v2695
        %v2934 = vpop.f32.mrb[0].mxu0
        %v2935 = vadd.f32 0.0, %v2934
        %v2936 = vpop.f32.mrb[0].mxu0
        %2937 = vmatprep.mubr.f32.mxu0 %v2699
        %2938 = vmatmul.mubr.f32.gmra.mrb[0].mxu0 %v2698
        %v2939 = vpop.f32.mrb[0].mxu0
        %v2940 = vadd.f32 0.0, %v2939
        %v2941 = vpop.f32.mrb[0].mxu0
        %2942 = vmatprep.mubr.f32.mxu0 %v2702
        %2943 = vmatmul.mubr.f32.gmra.mrb[0].mxu0 %v2701
        %v2944 = vpop.f32.mrb[0].mxu0
        %v2945 = vadd.f32 0.0, %v2944
        %v2946 = vpop.f32.mrb[0].mxu0
        %2947 = vmatprep.mubr.f32.mxu0 %v2705
        %2948 = vmatmul.mubr.f32.gmra.mrb[0].mxu0 %v2704
        %v2949 = vpop.f32.mrb[0].mxu0
        %v2950 = vadd.f32 0.0, %v2949
        %v2951 = vpop.f32.mrb[0].mxu0
        %2952 = vmatprep.mubr.f32.mxu0 %v2708
        %2953 = vmatmul.mubr.f32.gmra.mrb[0].mxu0 %v2707
        %v2954 = vpop.f32.mrb[0].mxu0
        %v2955 = vadd.f32 0.0, %v2954
        %v2956 = vpop.f32.mrb[0].mxu0
        %2957 = vmatprep.mubr.f32.mxu0 %v2711
        %2958 = vmatmul.mubr.f32.gmra.mrb[0].mxu0 %v2710
        %v2959 = vpop.f32.mrb[0].mxu0
        %v2960 = vadd.f32 0.0, %v2959
        %v2961 = vpop.f32.mrb[0].mxu0
        %2962 = vmatprep.mubr.f32.mxu0 %v2714
        %2963 = vmatmul.mubr.f32.gmra.mrb[0].mxu0 %v2713
        %v2964 = vpop.f32.mrb[0].mxu0
        %v2965 = vadd.f32 0.0, %v2964
        %v2966 = vpop.f32.mrb[0].mxu0
        %2967 = vmatprep.mubr.f32.mxu0 %v2717
        %2968 = vmatmul.mubr.f32.gmra.mrb[0].mxu0 %v2716
        %v2969 = vpop.f32.mrb[0].mxu0
        %v2970 = vadd.f32 0.0, %v2969
        %v2971 = vpop.f32.mrb[0].mxu0
        %2972 = vmatprep.mubr.f32.mxu0 %v2720
        %2973 = vmatmul.mubr.f32.gmra.mrb[0].mxu0 %v2719
        %v2974 = vpop.f32.mrb[0].mxu0
        %v2975 = vadd.f32 0.0, %v2974
        %v2976 = vpop.f32.mrb[0].mxu0
        %2977 = vmatprep.mubr.f32.mxu0 %v2723
        %2978 = vmatmul.mubr.f32.gmra.mrb[0].mxu0 %v2722
        %v2979 = vpop.f32.mrb[0].mxu0
        %v2980 = vadd.f32 0.0, %v2979
        %v2981 = vpop.f32.mrb[0].mxu0
        %2982 = vmatprep.mubr.f32.mxu0 %v2726
        %2983 = vmatmul.mubr.f32.gmra.mrb[0].mxu0 %v2725
        %v2984 = vpop.f32.mrb[0].mxu0
        %v2985 = vadd.f32 0.0, %v2984
        %v2986 = vpop.f32.mrb[0].mxu0
        %2987 = vmatprep.mubr.f32.mxu0 %v2729
        %2988 = vmatmul.mubr.f32.gmra.mrb[0].mxu0 %v2728
        %v2989 = vpop.f32.mrb[0].mxu0
        %v2990 = vadd.f32 0.0, %v2989
        %v2991 = vpop.f32.mrb[0].mxu0
        %2992 = vmatprep.mubr.f32.mxu0 %v2732
        %2993 = vmatmul.mubr.f32.gmra.mrb[0].mxu0 %v2731
        %v2994 = vpop.f32.mrb[0].mxu0
        %v2995 = vadd.f32 0.0, %v2994
        %v2996 = vpop.f32.mrb[0].mxu0
        %2997 = vmatprep.mubr.f32.mxu0 %v2735
        %2998 = vmatmul.mubr.f32.gmra.mrb[0].mxu0 %v2734
        %v2999 = vpop.f32.mrb[0].mxu0
        %v3000 = vadd.f32 0.0, %v2999
        %v3001 = vpop.f32.mrb[0].mxu0
        %3002 = vmatprep.mubr.f32.mxu0 %v2738
        %3003 = vmatmul.mubr.f32.gmra.mrb[0].mxu0 %v2737
        %v3004 = vpop.f32.mrb[0].mxu0
        %v3005 = vadd.f32 0.0, %v3004
        %v3006 = vpop.f32.mrb[0].mxu0
        %3007 = vmatprep.mubr.f32.mxu0 %v2741
        %3008 = vmatmul.mubr.f32.gmra.mrb[0].mxu0 %v2740
        %v3009 = vpop.f32.mrb[0].mxu0
        %v3010 = vadd.f32 0.0, %v3009
        %v3011 = vpop.f32.mrb[0].mxu0
        %3012 = vmatprep.mubr.f32.mxu0 %v2744
        %3013 = vmatmul.mubr.f32.gmra.mrb[0].mxu0 %v2743
        %v3014 = vpop.f32.mrb[0].mxu0
        %v3015 = vadd.f32 0.0, %v3014
        %v3016 = vpop.f32.mrb[0].mxu0
        %3017 = vmatprep.mubr.f32.mxu0 %v2747
        %3018 = vmatmul.mubr.f32.gmra.mrb[0].mxu0 %v2746
        %v3019 = vpop.f32.mrb[0].mxu0
        %v3020 = vadd.f32 0.0, %v3019
        %v3021 = vpop.f32.mrb[0].mxu0
        %3022 = vdwg.mxu0
        %3023 = vmatprep.subr.mxu0 0.0
        %3024 = vmatpush1.msra.mxu0 %v2782
        %3025 = vmatprep.subr.mxu0 0.0
        %3026 = vmatpush1.msra.mxu0 %v2783
        %3027 = vmatprep.subr.mxu0 0.0
        %3028 = vmatpush1.msra.mxu0 %v2784
        %3029 = vmatprep.subr.mxu0 0.0
        %3030 = vmatpush1.msra.mxu0 %v2785
        %3031 = vmatprep.subr.mxu0 0.0
        %3032 = vmatpush1.msra.mxu0 %v2786
        %3033 = vmatprep.subr.mxu0 0.0
        %3034 = vmatpush1.msra.mxu0 %v2787
        %3035 = vmatprep.subr.mxu0 0.0
        %3036 = vmatpush1.msra.mxu0 %v2788
        %3037 = vmatprep.subr.mxu0 0.0
        %3038 = vmatpush1.msra.mxu0 %v2789
        %3039 = vmatprep.subr.mxu0 0.0
        %3040 = vmatpush1.msra.mxu0 %v2790
        %3041 = vmatprep.subr.mxu0 0.0
        %3042 = vmatpush1.msra.mxu0 %v2791
        %3043 = vmatprep.subr.mxu0 0.0
        %3044 = vmatpush1.msra.mxu0 %v2792
        %3045 = vmatprep.subr.mxu0 0.0
        %3046 = vmatpush1.msra.mxu0 %v2793
        %3047 = vmatprep.subr.mxu0 0.0
        %3048 = vmatpush1.msra.mxu0 %v2794
        %3049 = vmatprep.subr.mxu0 0.0
        %3050 = vmatpush1.msra.mxu0 %v2795
        %3051 = vmatprep.subr.mxu0 0.0
        %3052 = vmatpush1.msra.mxu0 %v2796
        %3053 = vmatprep.subr.mxu0 0.0
        %3054 = vmatpush1.msra.mxu0 %v2797
        %3055 = vmatprep.subr.mxu0 0.0
        %3056 = vmatpush1.msra.mxu0 0.0
        %3057 = vmatprep.subr.mxu0 0.0
        %3058 = vmatpush1.msra.mxu0 0.0
        %3059 = vmatprep.subr.mxu0 0.0
        %3060 = vmatpush1.msra.mxu0 0.0
        %3061 = vmatprep.subr.mxu0 0.0
        %3062 = vmatpush1.msra.mxu0 0.0
        %3063 = vmatprep.subr.mxu0 0.0
        %3064 = vmatpush1.msra.mxu0 0.0
        %3065 = vmatprep.subr.mxu0 0.0
        %3066 = vmatpush1.msra.mxu0 0.0
        %3067 = vmatprep.subr.mxu0 0.0
        %3068 = vmatpush1.msra.mxu0 0.0
        %3069 = vmatprep.subr.mxu0 0.0
        %3070 = vmatpush1.msra.mxu0 0.0
        %3071 = vmatprep.subr.mxu0 0.0
        %3072 = vmatpush1.msra.mxu0 0.0
        %3073 = vmatprep.subr.mxu0 0.0
        %3074 = vmatpush1.msra.mxu0 0.0
        %3075 = vmatprep.subr.mxu0 0.0
        %3076 = vmatpush1.msra.mxu0 0.0
        %3077 = vmatprep.subr.mxu0 0.0
        %3078 = vmatpush1.msra.mxu0 0.0
        %3079 = vmatprep.subr.mxu0 0.0
        %3080 = vmatpush1.msra.mxu0 0.0
        %3081 = vmatprep.subr.mxu0 0.0
        %3082 = vmatpush1.msra.mxu0 0.0
        %3083 = vmatprep.subr.mxu0 0.0
        %3084 = vmatpush1.msra.mxu0 0.0
        %3085 = vmatprep.subr.mxu0 0.0
        %3086 = vmatpush1.msra.mxu0 0.0
        %3087 = vmatprep.mubr.f32.mxu0 0.0
        %3088 = vmatmul.mubr.f32.gmra.mrb[0].mxu0 %v2655
        %v3089 = vpop.f32.mrb[0].mxu0
        %v3090 = vadd.f32 %v2865, %v3089
        %v3091 = vpop.f32.mrb[0].mxu0
        %3092 = vmatprep.mubr.f32.mxu0 0.0
        %3093 = vmatmul.mubr.f32.gmra.mrb[0].mxu0 %v2658
        %v3094 = vpop.f32.mrb[0].mxu0
        %v3095 = vadd.f32 %v2870, %v3094
        %v3096 = vpop.f32.mrb[0].mxu0
        %3097 = vmatprep.mubr.f32.mxu0 0.0
        %3098 = vmatmul.mubr.f32.gmra.mrb[0].mxu0 %v2661
        %v3099 = vpop.f32.mrb[0].mxu0
        %v3100 = vadd.f32 %v2875, %v3099
        %v3101 = vpop.f32.mrb[0].mxu0
        %3102 = vmatprep.mubr.f32.mxu0 0.0
        %3103 = vmatmul.mubr.f32.gmra.mrb[0].mxu0 %v2664
        %v3104 = vpop.f32.mrb[0].mxu0
        %v3105 = vadd.f32 %v2880, %v3104
        %v3106 = vpop.f32.mrb[0].mxu0
        %3107 = vmatprep.mubr.f32.mxu0 0.0
        %3108 = vmatmul.mubr.f32.gmra.mrb[0].mxu0 %v2667
        %v3109 = vpop.f32.mrb[0].mxu0
        %v3110 = vadd.f32 %v2885, %v3109
        %v3111 = vpop.f32.mrb[0].mxu0
        %3112 = vmatprep.mubr.f32.mxu0 0.0
        %3113 = vmatmul.mubr.f32.gmra.mrb[0].mxu0 %v2670
        %v3114 = vpop.f32.mrb[0].mxu0
        %v3115 = vadd.f32 %v2890, %v3114
        %v3116 = vpop.f32.mrb[0].mxu0
        %3117 = vmatprep.mubr.f32.mxu0 0.0
        %3118 = vmatmul.mubr.f32.gmra.mrb[0].mxu0 %v2673
        %v3119 = vpop.f32.mrb[0].mxu0
        %v3120 = vadd.f32 %v2895, %v3119
        %v3121 = vpop.f32.mrb[0].mxu0
        %3122 = vmatprep.mubr.f32.mxu0 0.0
        %3123 = vmatmul.mubr.f32.gmra.mrb[0].mxu0 %v2676
        %v3124 = vpop.f32.mrb[0].mxu0
        %v3125 = vadd.f32 %v2900, %v3124
        %v3126 = vpop.f32.mrb[0].mxu0
        %3127 = vmatprep.mubr.f32.mxu0 0.0
        %3128 = vmatmul.mubr.f32.gmra.mrb[0].mxu0 %v2679
        %v3129 = vpop.f32.mrb[0].mxu0
        %v3130 = vadd.f32 %v2905, %v3129
        %v3131 = vpop.f32.mrb[0].mxu0
        %3132 = vmatprep.mubr.f32.mxu0 0.0
        %3133 = vmatmul.mubr.f32.gmra.mrb[0].mxu0 %v2682
        %v3134 = vpop.f32.mrb[0].mxu0
        %v3135 = vadd.f32 %v2910, %v3134
        %v3136 = vpop.f32.mrb[0].mxu0
        %3137 = vmatprep.mubr.f32.mxu0 0.0
        %3138 = vmatmul.mubr.f32.gmra.mrb[0].mxu0 %v2685
        %v3139 = vpop.f32.mrb[0].mxu0
        %v3140 = vadd.f32 %v2915, %v3139
        %v3141 = vpop.f32.mrb[0].mxu0
        %3142 = vmatprep.mubr.f32.mxu0 0.0
        %3143 = vmatmul.mubr.f32.gmra.mrb[0].mxu0 %v2688
        %v3144 = vpop.f32.mrb[0].mxu0
        %v3145 = vadd.f32 %v2920, %v3144
        %v3146 = vpop.f32.mrb[0].mxu0
        %3147 = vmatprep.mubr.f32.mxu0 0.0
        %3148 = vmatmul.mubr.f32.gmra.mrb[0].mxu0 %v2691
        %v3149 = vpop.f32.mrb[0].mxu0
        %v3150 = vadd.f32 %v2925, %v3149
        %v3151 = vpop.f32.mrb[0].mxu0
        %3152 = vmatprep.mubr.f32.mxu0 0.0
        %3153 = vmatmul.mubr.f32.gmra.mrb[0].mxu0 %v2694
        %v3154 = vpop.f32.mrb[0].mxu0
        %v3155 = vadd.f32 %v2930, %v3154
        %v3156 = vpop.f32.mrb[0].mxu0
        %3157 = vmatprep.mubr.f32.mxu0 0.0
        %3158 = vmatmul.mubr.f32.gmra.mrb[0].mxu0 %v2697
        %v3159 = vpop.f32.mrb[0].mxu0
        %v3160 = vadd.f32 %v2935, %v3159
        %v3161 = vpop.f32.mrb[0].mxu0
        %3162 = vmatprep.mubr.f32.mxu0 0.0
        %3163 = vmatmul.mubr.f32.gmra.mrb[0].mxu0 %v2700
        %v3164 = vpop.f32.mrb[0].mxu0
        %v3165 = vadd.f32 %v2940, %v3164
        %v3166 = vpop.f32.mrb[0].mxu0
        %3167 = vmatprep.mubr.f32.mxu0 0.0
        %3168 = vmatmul.mubr.f32.gmra.mrb[0].mxu0 %v2703
        %v3169 = vpop.f32.mrb[0].mxu0
        %v3170 = vadd.f32 %v2945, %v3169
        %v3171 = vpop.f32.mrb[0].mxu0
        %3172 = vmatprep.mubr.f32.mxu0 0.0
        %3173 = vmatmul.mubr.f32.gmra.mrb[0].mxu0 %v2706
        %v3174 = vpop.f32.mrb[0].mxu0
        %v3175 = vadd.f32 %v2950, %v3174
        %v3176 = vpop.f32.mrb[0].mxu0
        %3177 = vmatprep.mubr.f32.mxu0 0.0
        %3178 = vmatmul.mubr.f32.gmra.mrb[0].mxu0 %v2709
        %v3179 = vpop.f32.mrb[0].mxu0
        %v3180 = vadd.f32 %v2955, %v3179
        %v3181 = vpop.f32.mrb[0].mxu0
        %3182 = vmatprep.mubr.f32.mxu0 0.0
        %3183 = vmatmul.mubr.f32.gmra.mrb[0].mxu0 %v2712
        %v3184 = vpop.f32.mrb[0].mxu0
        %v3185 = vadd.f32 %v2960, %v3184
        %v3186 = vpop.f32.mrb[0].mxu0
        %3187 = vmatprep.mubr.f32.mxu0 0.0
        %3188 = vmatmul.mubr.f32.gmra.mrb[0].mxu0 %v2715
        %v3189 = vpop.f32.mrb[0].mxu0
        %v3190 = vadd.f32 %v2965, %v3189
        %v3191 = vpop.f32.mrb[0].mxu0
        %3192 = vmatprep.mubr.f32.mxu0 0.0
        %3193 = vmatmul.mubr.f32.gmra.mrb[0].mxu0 %v2718
        %v3194 = vpop.f32.mrb[0].mxu0
        %v3195 = vadd.f32 %v2970, %v3194
        %v3196 = vpop.f32.mrb[0].mxu0
        %3197 = vmatprep.mubr.f32.mxu0 0.0
        %3198 = vmatmul.mubr.f32.gmra.mrb[0].mxu0 %v2721
        %v3199 = vpop.f32.mrb[0].mxu0
        %v3200 = vadd.f32 %v2975, %v3199
        %v3201 = vpop.f32.mrb[0].mxu0
        %3202 = vmatprep.mubr.f32.mxu0 0.0
        %3203 = vmatmul.mubr.f32.gmra.mrb[0].mxu0 %v2724
        %v3204 = vpop.f32.mrb[0].mxu0
        %v3205 = vadd.f32 %v2980, %v3204
        %v3206 = vpop.f32.mrb[0].mxu0
        %3207 = vmatprep.mubr.f32.mxu0 0.0
        %3208 = vmatmul.mubr.f32.gmra.mrb[0].mxu0 %v2727
        %v3209 = vpop.f32.mrb[0].mxu0
        %v3210 = vadd.f32 %v2985, %v3209
        %v3211 = vpop.f32.mrb[0].mxu0
        %3212 = vmatprep.mubr.f32.mxu0 0.0
        %3213 = vmatmul.mubr.f32.gmra.mrb[0].mxu0 %v2730
        %v3214 = vpop.f32.mrb[0].mxu0
        %v3215 = vadd.f32 %v2990, %v3214
        %v3216 = vpop.f32.mrb[0].mxu0
        %3217 = vmatprep.mubr.f32.mxu0 0.0
        %3218 = vmatmul.mubr.f32.gmra.mrb[0].mxu0 %v2733
        %v3219 = vpop.f32.mrb[0].mxu0
        %v3220 = vadd.f32 %v2995, %v3219
        %v3221 = vpop.f32.mrb[0].mxu0
        %3222 = vmatprep.mubr.f32.mxu0 0.0
        %3223 = vmatmul.mubr.f32.gmra.mrb[0].mxu0 %v2736
        %v3224 = vpop.f32.mrb[0].mxu0
        %v3225 = vadd.f32 %v3000, %v3224
        %v3226 = vpop.f32.mrb[0].mxu0
        %3227 = vmatprep.mubr.f32.mxu0 0.0
        %3228 = vmatmul.mubr.f32.gmra.mrb[0].mxu0 %v2739
        %v3229 = vpop.f32.mrb[0].mxu0
        %v3230 = vadd.f32 %v3005, %v3229
        %v3231 = vpop.f32.mrb[0].mxu0
        %3232 = vmatprep.mubr.f32.mxu0 0.0
        %3233 = vmatmul.mubr.f32.gmra.mrb[0].mxu0 %v2742
        %v3234 = vpop.f32.mrb[0].mxu0
        %v3235 = vadd.f32 %v3010, %v3234
        %v3236 = vpop.f32.mrb[0].mxu0
        %3237 = vmatprep.mubr.f32.mxu0 0.0
        %3238 = vmatmul.mubr.f32.gmra.mrb[0].mxu0 %v2745
        %v3239 = vpop.f32.mrb[0].mxu0
        %v3240 = vadd.f32 %v3015, %v3239
        %v3241 = vpop.f32.mrb[0].mxu0
        %3242 = vmatprep.mubr.f32.mxu0 0.0
        %3243 = vmatmul.mubr.f32.gmra.mrb[0].mxu0 %v2748
        %v3244 = vpop.f32.mrb[0].mxu0
        %v3245 = vadd.f32 %v3020, %v3244
        %v3246 = vpop.f32.mrb[0].mxu0
        %3247 = vdwg.mxu0
        %v3248 = vadd.f32 %v2494, %v3090
        %v3249 = vadd.f32 %v2499, %v3095
        %v3250 = vadd.f32 %v2504, %v3100
        %v3251 = vadd.f32 %v2509, %v3105
        %v3252 = vadd.f32 %v2514, %v3110
        %v3253 = vadd.f32 %v2519, %v3115
        %v3254 = vadd.f32 %v2524, %v3120
        %v3255 = vadd.f32 %v2529, %v3125
        %v3256 = vadd.f32 %v2534, %v3130
        %v3257 = vadd.f32 %v2539, %v3135
        %v3258 = vadd.f32 %v2544, %v3140
        %v3259 = vadd.f32 %v2549, %v3145
        %v3260 = vadd.f32 %v2554, %v3150
        %v3261 = vadd.f32 %v2559, %v3155
        %v3262 = vadd.f32 %v2564, %v3160
        %v3263 = vadd.f32 %v2569, %v3165
        %v3264 = vadd.f32 %v2574, %v3170
        %v3265 = vadd.f32 %v2579, %v3175
        %v3266 = vadd.f32 %v2584, %v3180
        %v3267 = vadd.f32 %v2589, %v3185
        %v3268 = vadd.f32 %v2594, %v3190
        %v3269 = vadd.f32 %v2599, %v3195
        %v3270 = vadd.f32 %v2604, %v3200
        %v3271 = vadd.f32 %v2609, %v3205
        %v3272 = vadd.f32 %v2614, %v3210
        %v3273 = vadd.f32 %v2619, %v3215
        %v3274 = vadd.f32 %v2624, %v3220
        %v3275 = vadd.f32 %v2629, %v3225
        %v3276 = vadd.f32 %v2634, %v3230
        %v3277 = vadd.f32 %v2639, %v3235
        %v3278 = vadd.f32 %v2644, %v3240
        %v3279 = vadd.f32 %v2649, %v3245
        %v3280 = vld [vmem:[%s5] sm:$0x1]
        %v3282 = vlaneseq
        %v3283 = vshrl.u32 %v3282, 7
        %v3284 = vsub.s32 0, %v3283
        %v3285 = vrot.slane %v3280, %v3284
        %v3287 = vadd.f32 %v3248, %v3285
        %v3288 = vadd.f32 %v3249, %v3285
        %v3289 = vadd.f32 %v3250, %v3285
        %v3290 = vadd.f32 %v3251, %v3285
        %v3291 = vadd.f32 %v3252, %v3285
        %v3292 = vadd.f32 %v3253, %v3285
        %v3293 = vadd.f32 %v3254, %v3285
        %v3294 = vadd.f32 %v3255, %v3285
        %v3295 = vadd.f32 %v3256, %v3285
        %v3296 = vadd.f32 %v3257, %v3285
        %v3297 = vadd.f32 %v3258, %v3285
        %v3298 = vadd.f32 %v3259, %v3285
        %v3299 = vadd.f32 %v3260, %v3285
        %v3300 = vadd.f32 %v3261, %v3285
        %v3301 = vadd.f32 %v3262, %v3285
        %v3302 = vadd.f32 %v3263, %v3285
        %v3303 = vadd.f32 %v3264, %v3285
        %v3304 = vadd.f32 %v3265, %v3285
        %v3305 = vadd.f32 %v3266, %v3285
        %v3306 = vadd.f32 %v3267, %v3285
        %v3307 = vadd.f32 %v3268, %v3285
        %v3308 = vadd.f32 %v3269, %v3285
        %v3309 = vadd.f32 %v3270, %v3285
        %v3310 = vadd.f32 %v3271, %v3285
        %v3311 = vadd.f32 %v3272, %v3285
        %v3312 = vadd.f32 %v3273, %v3285
        %v3313 = vadd.f32 %v3274, %v3285
        %v3314 = vadd.f32 %v3275, %v3285
        %v3315 = vadd.f32 %v3276, %v3285
        %v3316 = vadd.f32 %v3277, %v3285
        %v3317 = vadd.f32 %v3278, %v3285
        %v3318 = vadd.f32 %v3279, %v3285
        %v3319 = vxor.u32 %v3287, 2147483648
        %v3320 = vxor.u32 %v3288, 2147483648
        %v3321 = vxor.u32 %v3289, 2147483648
        %v3322 = vxor.u32 %v3290, 2147483648
        %v3323 = vxor.u32 %v3291, 2147483648
        %v3324 = vxor.u32 %v3292, 2147483648
        %v3325 = vxor.u32 %v3293, 2147483648
        %v3326 = vxor.u32 %v3294, 2147483648
        %v3327 = vxor.u32 %v3295, 2147483648
        %v3328 = vxor.u32 %v3296, 2147483648
        %v3329 = vxor.u32 %v3297, 2147483648
        %v3330 = vxor.u32 %v3298, 2147483648
        %v3331 = vxor.u32 %v3299, 2147483648
        %v3332 = vxor.u32 %v3300, 2147483648
        %v3333 = vxor.u32 %v3301, 2147483648
        %v3334 = vxor.u32 %v3302, 2147483648
        %v3335 = vxor.u32 %v3303, 2147483648
        %v3336 = vxor.u32 %v3304, 2147483648
        %v3337 = vxor.u32 %v3305, 2147483648
        %v3338 = vxor.u32 %v3306, 2147483648
        %v3339 = vxor.u32 %v3307, 2147483648
        %v3340 = vxor.u32 %v3308, 2147483648
        %v3341 = vxor.u32 %v3309, 2147483648
        %v3342 = vxor.u32 %v3310, 2147483648
        %v3343 = vxor.u32 %v3311, 2147483648
        %v3344 = vxor.u32 %v3312, 2147483648
        %v3345 = vxor.u32 %v3313, 2147483648
        %v3346 = vxor.u32 %v3314, 2147483648
        %v3347 = vxor.u32 %v3315, 2147483648
        %v3348 = vxor.u32 %v3316, 2147483648
        %v3349 = vxor.u32 %v3317, 2147483648
        %v3350 = vxor.u32 %v3318, 2147483648
        %v3351 = vmul.f32 %v3319, 1.442695
        %v3352 = vpow.pop %v3351
        %v3353 = vmul.f32 %v3320, 1.442695
        %v3354 = vpow.pop %v3353
        %v3355 = vmul.f32 %v3321, 1.442695
        %v3356 = vpow.pop %v3355
        %v3357 = vmul.f32 %v3322, 1.442695
        %v3358 = vpow.pop %v3357
        %v3359 = vmul.f32 %v3323, 1.442695
        %v3360 = vpow.pop %v3359
        %v3361 = vmul.f32 %v3324, 1.442695
        %v3362 = vpow.pop %v3361
        %v3363 = vmul.f32 %v3325, 1.442695
        %v3364 = vpow.pop %v3363
        %v3365 = vmul.f32 %v3326, 1.442695
        %v3366 = vpow.pop %v3365
        %v3367 = vmul.f32 %v3327, 1.442695
        %v3368 = vpow.pop %v3367
        %v3369 = vmul.f32 %v3328, 1.442695
        %v3370 = vpow.pop %v3369
        %v3371 = vmul.f32 %v3329, 1.442695
        %v3372 = vpow.pop %v3371
        %v3373 = vmul.f32 %v3330, 1.442695
        %v3374 = vpow.pop %v3373
        %v3375 = vmul.f32 %v3331, 1.442695
        %v3376 = vpow.pop %v3375
        %v3377 = vmul.f32 %v3332, 1.442695
        %v3378 = vpow.pop %v3377
        %v3379 = vmul.f32 %v3333, 1.442695
        %v3380 = vpow.pop %v3379
        %v3381 = vmul.f32 %v3334, 1.442695
        %v3382 = vpow.pop %v3381
        %v3383 = vmul.f32 %v3335, 1.442695
        %v3384 = vpow.pop %v3383
        %v3385 = vmul.f32 %v3336, 1.442695
        %v3386 = vpow.pop %v3385
        %v3387 = vmul.f32 %v3337, 1.442695
        %v3388 = vpow.pop %v3387
        %v3389 = vmul.f32 %v3338, 1.442695
        %v3390 = vpow.pop %v3389
        %v3391 = vmul.f32 %v3339, 1.442695
        %v3392 = vpow.pop %v3391
        %v3393 = vmul.f32 %v3340, 1.442695
        %v3394 = vpow.pop %v3393
        %v3395 = vmul.f32 %v3341, 1.442695
        %v3396 = vpow.pop %v3395
        %v3397 = vmul.f32 %v3342, 1.442695
        %v3398 = vpow.pop %v3397
        %v3399 = vmul.f32 %v3343, 1.442695
        %v3400 = vpow.pop %v3399
        %v3401 = vmul.f32 %v3344, 1.442695
        %v3402 = vpow.pop %v3401
        %v3403 = vmul.f32 %v3345, 1.442695
        %v3404 = vpow.pop %v3403
        %v3405 = vmul.f32 %v3346, 1.442695
        %v3406 = vpow.pop %v3405
        %v3407 = vmul.f32 %v3347, 1.442695
        %v3408 = vpow.pop %v3407
        %v3409 = vmul.f32 %v3348, 1.442695
        %v3410 = vpow.pop %v3409
        %v3411 = vmul.f32 %v3349, 1.442695
        %v3412 = vpow.pop %v3411
        %v3413 = vmul.f32 %v3350, 1.442695
        %v3414 = vpow.pop %v3413
        %v3415 = vadd.f32 %v3352, 1.0
        %v3416 = vadd.f32 %v3354, 1.0
        %v3417 = vadd.f32 %v3356, 1.0
        %v3418 = vadd.f32 %v3358, 1.0
        %v3419 = vadd.f32 %v3360, 1.0
        %v3420 = vadd.f32 %v3362, 1.0
        %v3421 = vadd.f32 %v3364, 1.0
        %v3422 = vadd.f32 %v3366, 1.0
        %v3423 = vadd.f32 %v3368, 1.0
        %v3424 = vadd.f32 %v3370, 1.0
        %v3425 = vadd.f32 %v3372, 1.0
        %v3426 = vadd.f32 %v3374, 1.0
        %v3427 = vadd.f32 %v3376, 1.0
        %v3428 = vadd.f32 %v3378, 1.0
        %v3429 = vadd.f32 %v3380, 1.0
        %v3430 = vadd.f32 %v3382, 1.0
        %v3431 = vadd.f32 %v3384, 1.0
        %v3432 = vadd.f32 %v3386, 1.0
        %v3433 = vadd.f32 %v3388, 1.0
        %v3434 = vadd.f32 %v3390, 1.0
        %v3435 = vadd.f32 %v3392, 1.0
        %v3436 = vadd.f32 %v3394, 1.0
        %v3437 = vadd.f32 %v3396, 1.0
        %v3438 = vadd.f32 %v3398, 1.0
        %v3439 = vadd.f32 %v3400, 1.0
        %v3440 = vadd.f32 %v3402, 1.0
        %v3441 = vadd.f32 %v3404, 1.0
        %v3442 = vadd.f32 %v3406, 1.0
        %v3443 = vadd.f32 %v3408, 1.0
        %v3444 = vadd.f32 %v3410, 1.0
        %v3445 = vadd.f32 %v3412, 1.0
        %v3446 = vadd.f32 %v3414, 1.0
        %v3447 = vrcp.pop %v3415
        %v3448 = vmul.f32 1.0, %v3447
        %v3449 = vrcp.pop %v3416
        %v3450 = vmul.f32 1.0, %v3449
        %v3451 = vrcp.pop %v3417
        %v3452 = vmul.f32 1.0, %v3451
        %v3453 = vrcp.pop %v3418
        %v3454 = vmul.f32 1.0, %v3453
        %v3455 = vrcp.pop %v3419
        %v3456 = vmul.f32 1.0, %v3455
        %v3457 = vrcp.pop %v3420
        %v3458 = vmul.f32 1.0, %v3457
        %v3459 = vrcp.pop %v3421
        %v3460 = vmul.f32 1.0, %v3459
        %v3461 = vrcp.pop %v3422
        %v3462 = vmul.f32 1.0, %v3461
        %v3463 = vrcp.pop %v3423
        %v3464 = vmul.f32 1.0, %v3463
        %v3465 = vrcp.pop %v3424
        %v3466 = vmul.f32 1.0, %v3465
        %v3467 = vrcp.pop %v3425
        %v3468 = vmul.f32 1.0, %v3467
        %v3469 = vrcp.pop %v3426
        %v3470 = vmul.f32 1.0, %v3469
        %v3471 = vrcp.pop %v3427
        %v3472 = vmul.f32 1.0, %v3471
        %v3473 = vrcp.pop %v3428
        %v3474 = vmul.f32 1.0, %v3473
        %v3475 = vrcp.pop %v3429
        %v3476 = vmul.f32 1.0, %v3475
        %v3477 = vrcp.pop %v3430
        %v3478 = vmul.f32 1.0, %v3477
        %v3479 = vrcp.pop %v3431
        %v3480 = vmul.f32 1.0, %v3479
        %v3481 = vrcp.pop %v3432
        %v3482 = vmul.f32 1.0, %v3481
        %v3483 = vrcp.pop %v3433
        %v3484 = vmul.f32 1.0, %v3483
        %v3485 = vrcp.pop %v3434
        %v3486 = vmul.f32 1.0, %v3485
        %v3487 = vrcp.pop %v3435
        %v3488 = vmul.f32 1.0, %v3487
        %v3489 = vrcp.pop %v3436
        %v3490 = vmul.f32 1.0, %v3489
        %v3491 = vrcp.pop %v3437
        %v3492 = vmul.f32 1.0, %v3491
        %v3493 = vrcp.pop %v3438
        %v3494 = vmul.f32 1.0, %v3493
        %v3495 = vrcp.pop %v3439
        %v3496 = vmul.f32 1.0, %v3495
        %v3497 = vrcp.pop %v3440
        %v3498 = vmul.f32 1.0, %v3497
        %v3499 = vrcp.pop %v3441
        %v3500 = vmul.f32 1.0, %v3499
        %v3501 = vrcp.pop %v3442
        %v3502 = vmul.f32 1.0, %v3501
        %v3503 = vrcp.pop %v3443
        %v3504 = vmul.f32 1.0, %v3503
        %v3505 = vrcp.pop %v3444
        %v3506 = vmul.f32 1.0, %v3505
        %v3507 = vrcp.pop %v3445
        %v3508 = vmul.f32 1.0, %v3507
        %v3509 = vrcp.pop %v3446
        %v3510 = vmul.f32 1.0, %v3509
        %v3511 = vmul.f32 %v3287, %v3448
        %v3512 = vmul.f32 %v3288, %v3450
        %v3513 = vmul.f32 %v3289, %v3452
        %v3514 = vmul.f32 %v3290, %v3454
        %v3515 = vmul.f32 %v3291, %v3456
        %v3516 = vmul.f32 %v3292, %v3458
        %v3517 = vmul.f32 %v3293, %v3460
        %v3518 = vmul.f32 %v3294, %v3462
        %v3519 = vmul.f32 %v3295, %v3464
        %v3520 = vmul.f32 %v3296, %v3466
        %v3521 = vmul.f32 %v3297, %v3468
        %v3522 = vmul.f32 %v3298, %v3470
        %v3523 = vmul.f32 %v3299, %v3472
        %v3524 = vmul.f32 %v3300, %v3474
        %v3525 = vmul.f32 %v3301, %v3476
        %v3526 = vmul.f32 %v3302, %v3478
        %v3527 = vmul.f32 %v3303, %v3480
        %v3528 = vmul.f32 %v3304, %v3482
        %v3529 = vmul.f32 %v3305, %v3484
        %v3530 = vmul.f32 %v3306, %v3486
        %v3531 = vmul.f32 %v3307, %v3488
        %v3532 = vmul.f32 %v3308, %v3490
        %v3533 = vmul.f32 %v3309, %v3492
        %v3534 = vmul.f32 %v3310, %v3494
        %v3535 = vmul.f32 %v3311, %v3496
        %v3536 = vmul.f32 %v3312, %v3498
        %v3537 = vmul.f32 %v3313, %v3500
        %v3538 = vmul.f32 %v3314, %v3502
        %v3539 = vmul.f32 %v3315, %v3504
        %v3540 = vmul.f32 %v3316, %v3506
        %v3541 = vmul.f32 %v3317, %v3508
        %v3542 = vmul.f32 %v3318, %v3510
        %v3543 = vadd.f32 %v3511, %v419
        %v3544 = vadd.f32 %v3512, %v420
        %v3545 = vadd.f32 %v3513, %v421
        %v3546 = vadd.f32 %v3514, %v422
        %v3547 = vadd.f32 %v3515, %v423
        %v3548 = vadd.f32 %v3516, %v424
        %v3549 = vadd.f32 %v3517, %v425
        %v3550 = vadd.f32 %v3518, %v426
        %v3551 = vadd.f32 %v3519, %v427
        %v3552 = vadd.f32 %v3520, %v428
        %v3553 = vadd.f32 %v3521, %v429
        %v3554 = vadd.f32 %v3522, %v430
        %v3555 = vadd.f32 %v3523, %v431
        %v3556 = vadd.f32 %v3524, %v432
        %v3557 = vadd.f32 %v3525, %v433
        %v3558 = vadd.f32 %v3526, %v434
        %v3559 = vadd.f32 %v3527, %v435
        %v3560 = vadd.f32 %v3528, %v436
        %v3561 = vadd.f32 %v3529, %v437
        %v3562 = vadd.f32 %v3530, %v438
        %v3563 = vadd.f32 %v3531, %v439
        %v3564 = vadd.f32 %v3532, %v440
        %v3565 = vadd.f32 %v3533, %v441
        %v3566 = vadd.f32 %v3534, %v442
        %v3567 = vadd.f32 %v3535, %v443
        %v3568 = vadd.f32 %v3536, %v444
        %v3569 = vadd.f32 %v3537, %v445
        %v3570 = vadd.f32 %v3538, %v446
        %v3571 = vadd.f32 %v3539, %v447
        %v3572 = vadd.f32 %v3540, %v448
        %v3573 = vadd.f32 %v3541, %v449
        %v3574 = vadd.f32 %v3542, %v450
        %3575 = vst [vmem:[%s413] sm:$0xff] %v3543
        %3576 = vst [vmem:[%s413 + $0x8] sm:$0xff] %v3544
        %3577 = vst [vmem:[%s413 + $0x10] sm:$0xff] %v3545
        %3578 = vst [vmem:[%s413 + $0x18] sm:$0xff] %v3546
        %3579 = vst [vmem:[%s413 + $0x20] sm:$0xff] %v3547
        %3580 = vst [vmem:[%s413 + $0x28] sm:$0xff] %v3548
        %3581 = vst [vmem:[%s413 + $0x30] sm:$0xff] %v3549
        %3582 = vst [vmem:[%s413 + $0x38] sm:$0xff] %v3550
        %3583 = vst [vmem:[%s413 + $0x40] sm:$0xff] %v3551
        %3584 = vst [vmem:[%s413 + $0x48] sm:$0xff] %v3552
        %3585 = vst [vmem:[%s413 + $0x50] sm:$0xff] %v3553
        %3586 = vst [vmem:[%s413 + $0x58] sm:$0xff] %v3554
        %3587 = vst [vmem:[%s413 + $0x60] sm:$0xff] %v3555
        %3588 = vst [vmem:[%s413 + $0x68] sm:$0xff] %v3556
        %3589 = vst [vmem:[%s413 + $0x70] sm:$0xff] %v3557
        %3590 = vst [vmem:[%s413 + $0x78] sm:$0xff] %v3558
        %3591 = vst [vmem:[%s413 + $0x80] sm:$0xff] %v3559
        %3592 = vst [vmem:[%s413 + $0x88] sm:$0xff] %v3560
        %3593 = vst [vmem:[%s413 + $0x90] sm:$0xff] %v3561
        %3594 = vst [vmem:[%s413 + $0x98] sm:$0xff] %v3562
        %3595 = vst [vmem:[%s413 + $0xa0] sm:$0xff] %v3563
        %3596 = vst [vmem:[%s413 + $0xa8] sm:$0xff] %v3564
        %3597 = vst [vmem:[%s413 + $0xb0] sm:$0xff] %v3565
        %3598 = vst [vmem:[%s413 + $0xb8] sm:$0xff] %v3566
        %3599 = vst [vmem:[%s413 + $0xc0] sm:$0xff] %v3567
        %3600 = vst [vmem:[%s413 + $0xc8] sm:$0xff] %v3568
        %3601 = vst [vmem:[%s413 + $0xd0] sm:$0xff] %v3569
        %3602 = vst [vmem:[%s413 + $0xd8] sm:$0xff] %v3570
        %3603 = vst [vmem:[%s413 + $0xe0] sm:$0xff] %v3571
        %3604 = vst [vmem:[%s413 + $0xe8] sm:$0xff] %v3572
        %3605 = vst [vmem:[%s413 + $0xf0] sm:$0xff] %v3573
        %3606 = vst [vmem:[%s413 + $0xf8] sm:$0xff] %v3574
        %s3607 = sand.u32 %s189, 1
        %s3608 = scalar_lea.sflag [#allocation5], %s3607
        %s3609 = sand.u32 %s189, 1
        %s3610 = smul.addr %s3609, 256
        %s3611 = scalar_lea.vmem [#allocation11], %s3610
        // Predicated region
        $region69: #{tpu_custom_call.1} parent=43 // pred_check
          %p3612 = pneg %p199
        $region70: #{tpu_custom_call.1} parent=43 // pred_check_branch
          %3614 = sbr.rel (%p3612) target = $region72
        $region71: #{tpu_custom_call.1} parent=43 // pred_region
          #allocation17 [shape = 'u32[6]{0}', space=smem, size = 0x18, scoped, tag = 'DMA stride descriptor']
          %s3615 = smul.u32 2, %s31
          %s3616 = smul.u32 8, %s32
          %s3618 = ssub.s32 4096, 4096
          %3619 = vsyncadd %s3608, %s3618
          %s3620 = smul.addr %s3616, 2
          %s3621 = smul.addr %s3615, 32
          %s3622 = sadd.s32 %s3620, %s3621
          %s3623 = smul.addr %s3622, 128
          %s3624 = scalar_lea.hbm %s6, %s3623
          %s3626 = sshll.u32 1, 14
          %s3627 = sxor.u32 4294967295, %s3626
          %s3630 = sshll.u32 7, 18
          %s3631 = sxor.u32 4294967295, %s3630
          %s3632 = sand.u32 0, %s3631
          %s3634 = sor.u32 %s3632, 0
          %s3636 = sshll.u32 3, 24
          %s3637 = sxor.u32 4294967295, %s3636
          %s3638 = sand.u32 %s3634, %s3637
          %s3640 = sor.u32 %s3638, 0
          %s3641 = sshll.u32 %s3611, 4
          %s3642 = int_to_ptr.vmem [resolvable:$true] %s3641
          %3648 = sst [smem:[#allocation17]] 2048
          %s3649 = scalar_lea.smem [#allocation17], 1
          %3650 = sst [smem:[%s3649]] 4096
          %s3651 = scalar_lea.smem [#allocation17], 2
          %3652 = sst [smem:[%s3651]] 16
          %s3653 = scalar_lea.smem [#allocation17], 3
          %3654 = sst [smem:[%s3653]] 128
          %s3655 = scalar_lea.smem [#allocation17], 4
          %3656 = sst [smem:[%s3655]] 128
          %s3657 = scalar_lea.smem [#allocation17], 5
          %3658 = sst [smem:[%s3657]] 8
          %3660 = dma.general %s3642, 4096, %s3624, %s3608, [#allocation16], [#allocation17], %s3640, 0
        $region72: #{tpu_custom_call.1} parent=43 // pred_fallthru
          _
      $region44: #{tpu_custom_call.1} parent=5 // pred_fallthru
        _
      %p3661 = scmp.le.s32.totalorder 2, %s22
      // Predicated region
      $region73: #{tpu_custom_call.1} parent=5 // pred_check
        %p3662 = pneg %p3661
      $region74: #{tpu_custom_call.1} parent=5 // pred_check_branch
        %3664 = sbr.rel (%p3662) target = $region76
      $region75: #{tpu_custom_call.1} parent=5 // pred_region
        %s3665 = ssub.s32 %s22, 2
        // Predicated region
        $region77: #{tpu_custom_call.1} parent=75 // pred_check
          %p3666 = pneg %p205
        $region78: #{tpu_custom_call.1} parent=75 // pred_check_branch
          %3668 = sbr.rel (%p3666) target = $region80
        $region79: #{tpu_custom_call.1} parent=75 // pred_region
          %s3669 = sand.u32 %s190, 1
          %s3670 = scalar_lea.sflag [#allocation5], %s3669
          %s3671 = sand.u32 %s190, 1
          %s3672 = smul.addr %s3671, 256
          %s3673 = scalar_lea.vmem [#allocation11], %s3672
          %3674 = dma.done %s3670, 4096
        $region80: #{tpu_custom_call.1} parent=75 // pred_fallthru
          _
      $region76: #{tpu_custom_call.1} parent=5 // pred_fallthru
        _
    $region6: #{tpu_custom_call.1} parent=1 // loop_footer
      %s26 = sadd.s32 1, %s22
    $region7: #{tpu_custom_call.1} parent=1 // loop_footer_branch
      %21 = sbr.rel target = $region3
    $region8: #{tpu_custom_call.1} parent=1 // loop_exit
      _
    %3675 = vsyncpa [#allocation4], 1
    %s3676 = scalar_lea.sflag [#allocation4], 1
    %3677 = vsyncpa %s3676, 1
    %3678 = vsyncpa [#allocation7], 1
    %s3679 = scalar_lea.sflag [#allocation7], 1
    %3680 = vsyncpa %s3679, 1
    %3681 = vsyncpa [#allocation10], 1
    %3682 = vsyncpa [#allocation5], 1
    %s3683 = scalar_lea.sflag [#allocation5], 1
    %3684 = vsyncpa %s3683, 1

</llo_original>
